<compile_context>
chip_gen: v6e
topology: v6e:2x2x1
jax: 0.10.0
libtpu: 0.0.40
codegen_flags: <defaults>
</compile_context>

<pallas_src>
import functools

import jax
import jax.numpy as jnp
from jax.experimental import pallas as pl
from jax.experimental.pallas import tpu as pltpu

EPS = 1e-5                     # GroupNorm default eps in PyTorch
CONV_DTYPE = jnp.bfloat16      # MXU-native dtype for the conv path


# ----------------------------------------------------------------------------
# Pallas kernel: one ResNet layer for one batch element (channel-major layout).
# ----------------------------------------------------------------------------
def _resnet_layer_kernel(x_ref, film_ref, cvec_ref, gmat_ref, wg_ref, vmask_ref,
                         out_ref, hn_scr, buf_ref, acc_ref,
                         *, tap_groups, lead, s_valid, sp_r):
    C = x_ref.shape[1]

    vmask = vmask_ref[...]                       # (1, Sp_r), 1.0 on real voxels

    # ---- SiLU (SiLU(0) = 0, so pad voxels stay zero) ----
    h = x_ref[0]                                 # (C, Sp_r) f32, pad voxels == 0
    h = h * jax.nn.sigmoid(h)

    # ---- GroupNorm: stats in f32 over (group channels x valid spatial) ----
    # Pad voxels are exactly zero, so plain row sums / s_valid are exact means.
    inv_cnt = 1.0 / float(s_valid)
    mean_c = jnp.sum(h, axis=1, keepdims=True) * inv_cnt             # (C, 1)
    msq_c = jnp.sum(h * h, axis=1, keepdims=True) * inv_cnt          # (C, 1)
    # One fused (C,C)x(C,2) dot averages both stats within each group.
    gstats = jnp.dot(gmat_ref[...], jnp.concatenate([mean_c, msq_c], axis=1),
                     preferred_element_type=jnp.float32)              # (C, 2)
    gmean = gstats[:, 0:1]
    gmsq = gstats[:, 1:2]
    # E[h^2]-E[h]^2 kept in f32; post-SiLU activations are O(1) here so
    # cancellation is benign.  TODO(synk): centered second pass if activations
    # can become large.
    inv = jax.lax.rsqrt(gmsq - gmean * gmean + EPS)                   # (C, 1)

    cvec = cvec_ref[...]                          # (C, 3): gn_w | gn_b | conv_bias
    gn_w = cvec[:, 0:1]
    gn_b = cvec[:, 1:2]
    cb = cvec[:, 2:3]

    # vmask re-zeroes pad voxels (the affine shift would make them nonzero);
    # the normalized activation enters the conv path as bf16.
    hn = ((h - gmean) * (inv * gn_w) + gn_b) * vmask                  # (C, Sp_r)
    hn_scr[:, lead:lead + sp_r] = hn.astype(CONV_DTYPE)

    # ---- Conv3d(kernel=K, stride=1, padding='same') as kd-grouped im2col ----
    # hn already carries the spatial zero padding inside its Sp_r columns, so a
    # plain shifted slice is the correctly zero-padded neighbour: no masking.
    # Halo columns of hn_scr are never written: they are only read by output
    # columns that the final select discards, so even Inf/NaN garbage there
    # cannot reach a valid voxel.
    for g, offs in enumerate(tap_groups):        # static: one group per kd plane
        for t, off in enumerate(offs):           # static: K^2 taps per group
            buf_ref[t * C:(t + 1) * C, :] = hn_scr[:, off:off + sp_r]
        part = jnp.dot(wg_ref[g], buf_ref[...],
                       preferred_element_type=jnp.float32)            # (C, Sp_r)
        if g == 0:
            acc_ref[...] = part
        else:
            acc_ref[...] += part

    # ---- FiLM modulation + residual; pad voxels forced to exactly zero ----
    film = film_ref[0]                            # (C, 2): gamma | beta
    gamma = film[:, 0:1]
    beta = film[:, 1:2]
    # x re-loaded from the still-resident VMEM input block (cheaper than
    # keeping a (C, Sp_r) value live across GroupNorm + conv).
    resid = x_ref[0] + gamma * (acc_ref[...] + cb) + beta
    out_ref[0] = jnp.where(vmask > 0.0, resid, 0.0)


# ----------------------------------------------------------------------------
# Wrapper glue
# ----------------------------------------------------------------------------
def _full_spec(arr):
    r = arr.ndim
    return pl.BlockSpec(arr.shape, lambda n, _r=r: (0,) * _r)


def _vmem_cap_bytes():
    try:
        return int(pltpu.get_tpu_info().vmem_capacity_bytes)
    except Exception:  # pragma: no cover - conservative (v7x-sized) fallback
        return 64 * 1024 * 1024


def _layer_pallas_call(x, film, p, vmask, D, H, W, K, sp_r):
    N, C, _ = x.shape
    Hp, Wp = H + K - 1, W + K - 1
    hpwp = Hp * Wp
    pad_lo = (K - 1) // 2
    pad_hi = (K - 1) - pad_lo
    lead = pad_lo * (hpwp + Wp + 1)
    trail = pad_hi * (hpwp + Wp + 1)
    scr_cols = lead + sp_r + trail
    # Tap offsets grouped by kd plane (rows tap-major, matching w_grp layout).
    tap_groups = tuple(
        tuple(lead + (kd - pad_lo) * hpwp + (kh - pad_lo) * Wp + (kw - pad_lo)
              for kh in range(K) for kw in range(K))
        for kd in range(K))

    w_grp, cvec, gmat = p["w_grp"], p["cvec"], p["gmat"]

    kernel = functools.partial(_resnet_layer_kernel, tap_groups=tap_groups,
                               lead=lead, s_valid=D * H * W, sp_r=sp_r)

    # VMEM budget: 2x (per-sample blocks), 2x (constant param blocks, counted
    # conservatively as double-buffered), single-copy scratch, plus headroom;
    # clamped to the generation's physical VMEM capacity.
    blk_b = 2 * (C * sp_r * 4) + C * 2 * 4                 # x + out + film
    param_b = (w_grp.size * w_grp.dtype.itemsize + gmat.size * 4
               + cvec.size * 4 + vmask.size * 4)
    scratch_b = (C * scr_cols * 2) + (K * K * C * sp_r * 2) + (C * sp_r * 4)
    need = 2 * blk_b + 2 * param_b + scratch_b + (4 << 20)
    cap = max(_vmem_cap_bytes() - (8 << 20), 32 << 20)
    vmem_limit = int(min(max(need, 32 << 20), cap))

    grid_spec = pltpu.PrefetchScalarGridSpec(
        num_scalar_prefetch=0,
        grid=(N,),
        in_specs=[
            pl.BlockSpec((1, C, sp_r), lambda n: (n, 0, 0)),  # latent (per sample)
            pl.BlockSpec((1, C, 2), lambda n: (n, 0, 0)),     # gamma|beta
            _full_spec(cvec),                                 # gn_w|gn_b|conv_bias
            _full_spec(gmat),                                 # group-average matrix
            _full_spec(w_grp),                                # bf16 conv weights
            _full_spec(vmask),                                # valid-voxel mask
        ],
        out_specs=pl.BlockSpec((1, C, sp_r), lambda n: (n, 0, 0)),
        scratch_shapes=[
            pltpu.VMEM((C, scr_cols), CONV_DTYPE),            # hn + halo (bf16)
            pltpu.VMEM((K * K * C, sp_r), CONV_DTYPE),        # kd-plane im2col
            pltpu.VMEM((C, sp_r), jnp.float32),               # conv accumulator
        ],
    )

    return pl.pallas_call(
        kernel,
        grid_spec=grid_spec,
        out_shape=jax.ShapeDtypeStruct((N, C, sp_r), jnp.float32),
        compiler_params=pltpu.CompilerParams(
            dimension_semantics=("parallel",),
            vmem_limit_bytes=vmem_limit),
    )(x, film, cvec, gmat, w_grp, vmask)


def resnet_forward(latent_ncdhw, condition, params, kernel_size):
    """latent_ncdhw: (N, C, D, H, W) float32; condition: (N, d_condition)."""
    N, C, D, H, W = latent_ncdhw.shape
    K = kernel_size
    pad_lo = (K - 1) // 2
    pad_hi = (K - 1) - pad_lo
    Dp, Hp, Wp = D + K - 1, H + K - 1, W + K - 1
    sp = Dp * Hp * Wp
    sp_r = ((sp + 127) // 128) * 128          # lane-dense flattened spatial axis

    # Pack to channel-major, spatially zero-padded, flattened layout (N, C, sp_r).
    xp = jnp.pad(latent_ncdhw, ((0, 0), (0, 0), (pad_lo, pad_hi),
                                (pad_lo, pad_hi), (pad_lo, pad_hi)))
    x = jnp.pad(xp.reshape(N, C, sp), ((0, 0), (0, 0), (0, sp_r - sp)))

    # Validity mask over padded-flat positions (1.0 on real voxels).  Every
    # layer forces pad voxels to exactly 0 on output, which the next layer's
    # GroupNorm stats and im2col zero padding rely on.
    dpos, hpos, wpos = jnp.meshgrid(jnp.arange(Dp), jnp.arange(Hp),
                                    jnp.arange(Wp), indexing="ij")
    valid = ((dpos >= pad_lo) & (dpos < pad_lo + D) &
             (hpos >= pad_lo) & (hpos < pad_lo + H) &
             (wpos >= pad_lo) & (wpos < pad_lo + W))
    vmask = jnp.pad(valid.reshape(1, sp).astype(jnp.float32),
                    ((0, 0), (0, sp_r - sp)))

    # TODO(synk): spatial-tile grid axis + two-pass GroupNorm for volumes that
    # exceed v7x's 64 MiB VMEM; whole padded volumes fit comfortably here.
    # TODO(synk): fuse the layer loop into the kernel for multi-layer stacks on
    # v5e/v6e (layers as an 'arbitrary' grid axis, x held in a VMEM accumulator).
    for p in params:
        # FiLM MLP hoisted out of the kernel: one batched matmul over all N.
        h1 = condition @ p["w1"] + p["b1"]
        h1 = h1 * jax.nn.sigmoid(h1)
        gb = h1 @ p["w2"] + p["b2"]
        film = jnp.stack([gb[:, :C], gb[:, C:]], axis=-1)    # (N, C, 2)
        x = _layer_pallas_call(x, film, p, vmask, D, H, W, K, sp_r)

    out = x[:, :, :sp].reshape(N, C, Dp, Hp, Wp)
    return out[:, :, pad_lo:pad_lo + D, pad_lo:pad_lo + H, pad_lo:pad_lo + W]


# ----------------------------------------------------------------------------
# Deterministic parameter init (shapes follow the PyTorch module)
# ----------------------------------------------------------------------------
def init_params(key, d_model, d_condition, kernel_size, layers):
    C = d_model
    K = kernel_size
    G = max(C // 16, 1)
    Cg = C // G
    gidx = jnp.arange(C) // Cg
    gmat = (gidx[:, None] == gidx[None, :]).astype(jnp.float32) / Cg  # (C, C)

    params = []
    for l in range(layers):
        ks = jax.random.split(jax.random.fold_in(key, l), 8)
        conv_w = 0.1 * jax.random.normal(ks[6], (C, C, K, K, K), jnp.float32)
        gn_w = 1.0 + 0.1 * jax.random.normal(ks[4], (C, 1), jnp.float32)
        gn_b = 0.1 * jax.random.normal(ks[5], (C, 1), jnp.float32)
        cb = 0.1 * jax.random.normal(ks[7], (C, 1), jnp.float32)
        p = {
            # FiLM MLP: Linear(d_condition->d_model), SiLU, Linear(d_model->2*d_model)
            "w1": 0.2 * jax.random.normal(ks[0], (d_condition, C), jnp.float32),
            "b1": 0.1 * jax.random.normal(ks[1], (1, C), jnp.float32),
            "w2": 0.2 * jax.random.normal(ks[2], (C, 2 * C), jnp.float32),
            "b2": 0.1 * jax.random.normal(ks[3], (1, 2 * C), jnp.float32),
            # Raw module parameters (used by the pure-JAX reference)
            "gn_w": gn_w, "gn_b": gn_b, "conv_w": conv_w, "cb": cb,
            # Kernel-side derived parameters
            "gmat": gmat,
            # per-channel constants packed into one block: gn_w | gn_b | conv_bias
            "cvec": jnp.concatenate([gn_w, gn_b, cb], axis=1),         # (C, 3)
            # kd-grouped im2col weights, bf16: (K, C_out, K^2*C_in),
            # rows tap-major ((kh,kw) blocks of C_in) within each kd plane.
            "w_grp": jnp.transpose(conv_w, (2, 0, 3, 4, 1))
                        .reshape(K, C, K * K * C).astype(CONV_DTYPE),
        }
        params.append(p)
    return params


# ----------------------------------------------------------------------------
# Pure-JAX reference (mirrors the PyTorch semantics) for verification
# ----------------------------------------------------------------------------
def reference_forward(latent, condition, params, groups, kernel_size):
    x = latent
    N, C, D, H, W = x.shape
    Cg = C // groups
    pad_lo = (kernel_size - 1) // 2
    pad_hi = (kernel_size - 1) - pad_lo
    for p in params:
        h = x * jax.nn.sigmoid(x)                               # SiLU
        hg = h.reshape(N, groups, Cg, D, H, W)                  # GroupNorm
        mean = hg.mean(axis=(2, 3, 4, 5), keepdims=True)
        var = ((hg - mean) ** 2).mean(axis=(2, 3, 4, 5), keepdims=True)
        hn = ((hg - mean) / jnp.sqrt(var + EPS)).reshape(N, C, D, H, W)
        hn = hn * p["gn_w"].reshape(1, C, 1, 1, 1) + p["gn_b"].reshape(1, C, 1, 1, 1)
        hp = jnp.pad(hn, ((0, 0), (0, 0), (pad_lo, pad_hi),
                          (pad_lo, pad_hi), (pad_lo, pad_hi)))
        conv = jax.lax.conv_general_dilated(
            hp, p["conv_w"], window_strides=(1, 1, 1), padding="VALID",
            dimension_numbers=("NCDHW", "OIDHW", "NCDHW"))
        conv = conv + p["cb"].reshape(1, C, 1, 1, 1)
        h1 = condition @ p["w1"] + p["b1"]                      # FiLM MLP
        h1 = h1 * jax.nn.sigmoid(h1)
        gb = h1 @ p["w2"] + p["b2"]
        gamma = gb[:, :C].reshape(N, C, 1, 1, 1)
        beta = gb[:, C:].reshape(N, C, 1, 1, 1)
        x = x + gamma * conv + beta
    return x


if __name__ == "__main__":
    # Small, module-consistent shapes.
    d_model, d_condition, kernel_size, layers = 32, 32, 2, 1
    N, D, H, W = 2, 8, 8, 8

    key = jax.random.PRNGKey(0)
    k1, k2, k3 = jax.random.split(key, 3)
    latent = jax.random.normal(k1, (N, d_model, D, H, W), jnp.float32)
    condition = jax.random.normal(k2, (N, d_condition), jnp.float32)
    params = init_params(k3, d_model, d_condition, kernel_size, layers)

    out = resnet_forward(latent, condition, params, kernel_size)
    out = jax.block_until_ready(out)

    ref = reference_forward(latent, condition, params,
                            max(d_model // 16, 1), kernel_size)
    assert out.shape == latent.shape
    max_err = float(jnp.max(jnp.abs(out - ref)))
    # bf16 conv path (|w|~0.1, |hn|~1, contraction K^3*C=256, f32 accumulate)
    # gives O(1e-2) absolute error vs the f32 reference.
    if not max_err < 1e-1:
        raise AssertionError(f"kernel/reference mismatch, max abs err = {max_err}")

    print("KERNEL_OK")
</pallas_src>

<mosaic_0001>
module attributes {stable_mosaic.version = 11 : i64} {
  func.func @_resnet_layer_kernel(%arg0: i32, %arg1: memref<1x32x768xf32, #tpu.memory_space<vmem>>, %arg2: memref<1x32x2xf32, #tpu.memory_space<vmem>>, %arg3: memref<32x3xf32, #tpu.memory_space<vmem>>, %arg4: memref<32x32xf32, #tpu.memory_space<vmem>>, %arg5: memref<2x32x128xbf16, #tpu.memory_space<vmem>>, %arg6: memref<1x768xf32, #tpu.memory_space<vmem>>, %arg7: memref<1x32x768xf32, #tpu.memory_space<vmem>>, %arg8: memref<32x859xbf16, #tpu.memory_space<vmem>>, %arg9: memref<128x768xbf16, #tpu.memory_space<vmem>>, %arg10: memref<32x768xf32, #tpu.memory_space<vmem>>) attributes {dimension_semantics = [#tpu.dimension_semantics<parallel>], iteration_bounds = array<i64: 2>, scalar_prefetch = 0 : i64, scratch_operands = 3 : i64, tpu.core_type = #tpu.core_type<tc>, window_params = [{transform_indices = @transform_0, window_bounds = array<i64: 1, 32, 768>}, {transform_indices = @transform_1, window_bounds = array<i64: 1, 32, 2>}, {pipeline_mode = #tpu.pipeline_mode<synchronous>, transform_indices = @transform_2, window_bounds = array<i64: 32, 3>}, {pipeline_mode = #tpu.pipeline_mode<synchronous>, transform_indices = @transform_3, window_bounds = array<i64: 32, 32>}, {pipeline_mode = #tpu.pipeline_mode<synchronous>, transform_indices = @transform_4, window_bounds = array<i64: 2, 32, 128>}, {pipeline_mode = #tpu.pipeline_mode<synchronous>, transform_indices = @transform_5, window_bounds = array<i64: 1, 768>}, {transform_indices = @transform_6, window_bounds = array<i64: 1, 32, 768>}]} {
    %c0 = arith.constant 0 : index
    %c0_0 = arith.constant 0 : index
    %0 = vector.load %arg6[%c0, %c0_0] : memref<1x768xf32, #tpu.memory_space<vmem>>, vector<1x768xf32>
    %c0_1 = arith.constant 0 : index
    %c0_2 = arith.constant 0 : index
    %c0_3 = arith.constant 0 : index
    %1 = vector.load %arg1[%c0_1, %c0_2, %c0_3] : memref<1x32x768xf32, #tpu.memory_space<vmem>>, vector<1x32x768xf32>
    %2 = vector.shape_cast %1 : vector<1x32x768xf32> to vector<32x768xf32>
    %3 = arith.negf %2 : vector<32x768xf32>
    %4 = math.exp %3 : vector<32x768xf32>
    %cst = arith.constant 1.000000e+00 : f32
    %5 = vector.broadcast %cst : f32 to vector<32x768xf32>
    %6 = arith.addf %5, %4 : vector<32x768xf32>
    %7 = arith.divf %5, %6 : vector<32x768xf32>
    %8 = arith.mulf %2, %7 : vector<32x768xf32>
    %cst_4 = arith.constant dense<0.000000e+00> : vector<32xf32>
    %9 = vector.multi_reduction <add>, %8, %cst_4 [1] : vector<32x768xf32> to vector<32xf32>
    %10 = vector.shape_cast %9 : vector<32xf32> to vector<32x1xf32>
    %cst_5 = arith.constant 0.001953125 : f32
    %11 = vector.broadcast %cst_5 : f32 to vector<32x1xf32>
    %12 = arith.mulf %10, %11 : vector<32x1xf32>
    %13 = arith.mulf %8, %8 : vector<32x768xf32>
    %cst_6 = arith.constant dense<0.000000e+00> : vector<32xf32>
    %14 = vector.multi_reduction <add>, %13, %cst_6 [1] : vector<32x768xf32> to vector<32xf32>
    %15 = vector.shape_cast %14 : vector<32xf32> to vector<32x1xf32>
    %cst_7 = arith.constant 0.001953125 : f32
    %16 = vector.broadcast %cst_7 : f32 to vector<32x1xf32>
    %17 = arith.mulf %15, %16 : vector<32x1xf32>
    %c0_8 = arith.constant 0 : index
    %c0_9 = arith.constant 0 : index
    %18 = vector.load %arg4[%c0_8, %c0_9] : memref<32x32xf32, #tpu.memory_space<vmem>>, vector<32x32xf32>
    %19 = tpu.concatenate %12, %17 in 1 : vector<32x1xf32>, vector<32x1xf32> -> vector<32x2xf32>
    %cst_10 = arith.constant dense<0.000000e+00> : vector<32x2xf32>
    %20 = tpu.matmul %18, %19, %cst_10 {dimension_numbers = #tpu.dot_dimension_numbers<[1], [0], [0], [1], [0, 0, 1, 1], [], []>} : vector<32x32xf32>, vector<32x2xf32>, vector<32x2xf32> -> vector<32x2xf32>
    %21 = vector.extract_strided_slice %20 {offsets = [0, 0], sizes = [32, 1], strides = [1, 1]} : vector<32x2xf32> to vector<32x1xf32>
    %22 = vector.extract_strided_slice %20 {offsets = [0, 1], sizes = [32, 1], strides = [1, 1]} : vector<32x2xf32> to vector<32x1xf32>
    %23 = arith.mulf %21, %21 : vector<32x1xf32>
    %24 = arith.subf %22, %23 : vector<32x1xf32>
    %cst_11 = arith.constant 9.99999974E-6 : f32
    %25 = vector.broadcast %cst_11 : f32 to vector<32x1xf32>
    %26 = arith.addf %24, %25 : vector<32x1xf32>
    %27 = math.rsqrt %26 : vector<32x1xf32>
    %c0_12 = arith.constant 0 : index
    %c0_13 = arith.constant 0 : index
    %28 = vector.load %arg3[%c0_12, %c0_13] : memref<32x3xf32, #tpu.memory_space<vmem>>, vector<32x3xf32>
    %29 = vector.extract_strided_slice %28 {offsets = [0, 0], sizes = [32, 1], strides = [1, 1]} : vector<32x3xf32> to vector<32x1xf32>
    %30 = vector.extract_strided_slice %28 {offsets = [0, 1], sizes = [32, 1], strides = [1, 1]} : vector<32x3xf32> to vector<32x1xf32>
    %31 = vector.extract_strided_slice %28 {offsets = [0, 2], sizes = [32, 1], strides = [1, 1]} : vector<32x3xf32> to vector<32x1xf32>
    %32 = vector.broadcast %21 : vector<32x1xf32> to vector<32x768xf32>
    %33 = arith.subf %8, %32 : vector<32x768xf32>
    %34 = arith.mulf %27, %29 : vector<32x1xf32>
    %35 = vector.broadcast %34 : vector<32x1xf32> to vector<32x768xf32>
    %36 = arith.mulf %33, %35 : vector<32x768xf32>
    %37 = vector.broadcast %30 : vector<32x1xf32> to vector<32x768xf32>
    %38 = arith.addf %36, %37 : vector<32x768xf32>
    %39 = vector.broadcast %0 : vector<1x768xf32> to vector<32x768xf32>
    %40 = arith.mulf %38, %39 : vector<32x768xf32>
    %41 = arith.truncf %40 : vector<32x768xf32> to vector<32x768xbf16>
    %c0_14 = arith.constant 0 : index
    %c0_15 = arith.constant 0 : index
    %42 = vector.load %arg8[%c0_14, %c0_15] : memref<32x859xbf16, #tpu.memory_space<vmem>>, vector<32x768xbf16>
    tpu.vector_store %arg8[%c0_14, %c0_15], %41 {strides = array<i32>} : memref<32x859xbf16, #tpu.memory_space<vmem>>, vector<32x768xbf16>,
    %c0_16 = arith.constant 0 : index
    %c0_17 = arith.constant 0 : index
    %43 = vector.load %arg8[%c0_16, %c0_17] : memref<32x859xbf16, #tpu.memory_space<vmem>>, vector<32x768xbf16>
    %c0_18 = arith.constant 0 : index
    %c0_19 = arith.constant 0 : index
    %44 = vector.load %arg9[%c0_18, %c0_19] : memref<128x768xbf16, #tpu.memory_space<vmem>>, vector<32x768xbf16>
    tpu.vector_store %arg9[%c0_18, %c0_19], %43 {strides = array<i32>} : memref<128x768xbf16, #tpu.memory_space<vmem>>, vector<32x768xbf16>,
    %c0_20 = arith.constant 0 : index
    %c1 = arith.constant 1 : index
    %45 = vector.load %arg8[%c0_20, %c1] : memref<32x859xbf16, #tpu.memory_space<vmem>>, vector<32x768xbf16>
    %c32 = arith.constant 32 : index
    %c0_21 = arith.constant 0 : index
    %46 = vector.load %arg9[%c32, %c0_21] : memref<128x768xbf16, #tpu.memory_space<vmem>>, vector<32x768xbf16>
    tpu.vector_store %arg9[%c32, %c0_21], %45 {strides = array<i32>} : memref<128x768xbf16, #tpu.memory_space<vmem>>, vector<32x768xbf16>,
    %c0_22 = arith.constant 0 : index
    %c9 = arith.constant 9 : index
    %47 = vector.load %arg8[%c0_22, %c9] : memref<32x859xbf16, #tpu.memory_space<vmem>>, vector<32x768xbf16>
    %c64 = arith.constant 64 : index
    %c0_23 = arith.constant 0 : index
    %48 = vector.load %arg9[%c64, %c0_23] : memref<128x768xbf16, #tpu.memory_space<vmem>>, vector<32x768xbf16>
    tpu.vector_store %arg9[%c64, %c0_23], %47 {strides = array<i32>} : memref<128x768xbf16, #tpu.memory_space<vmem>>, vector<32x768xbf16>,
    %c0_24 = arith.constant 0 : index
    %c10 = arith.constant 10 : index
    %49 = vector.load %arg8[%c0_24, %c10] : memref<32x859xbf16, #tpu.memory_space<vmem>>, vector<32x768xbf16>
    %c96 = arith.constant 96 : index
    %c0_25 = arith.constant 0 : index
    %50 = vector.load %arg9[%c96, %c0_25] : memref<128x768xbf16, #tpu.memory_space<vmem>>, vector<32x768xbf16>
    tpu.vector_store %arg9[%c96, %c0_25], %49 {strides = array<i32>} : memref<128x768xbf16, #tpu.memory_space<vmem>>, vector<32x768xbf16>,
    %c0_26 = arith.constant 0 : index
    %c0_27 = arith.constant 0 : index
    %c0_28 = arith.constant 0 : index
    %51 = vector.load %arg5[%c0_26, %c0_27, %c0_28] : memref<2x32x128xbf16, #tpu.memory_space<vmem>>, vector<1x32x128xbf16>
    %52 = vector.shape_cast %51 : vector<1x32x128xbf16> to vector<32x128xbf16>
    %c0_29 = arith.constant 0 : index
    %c0_30 = arith.constant 0 : index
    %53 = vector.load %arg9[%c0_29, %c0_30] : memref<128x768xbf16, #tpu.memory_space<vmem>>, vector<128x768xbf16>
    %cst_31 = arith.constant dense<0.000000e+00> : vector<32x768xf32>
    %54 = tpu.matmul %52, %53, %cst_31 {dimension_numbers = #tpu.dot_dimension_numbers<[1], [0], [0], [1], [0, 0, 1, 1], [], []>} : vector<32x128xbf16>, vector<128x768xbf16>, vector<32x768xf32> -> vector<32x768xf32>
    %c0_32 = arith.constant 0 : index
    %c0_33 = arith.constant 0 : index
    %55 = vector.load %arg10[%c0_32, %c0_33] : memref<32x768xf32, #tpu.memory_space<vmem>>, vector<32x768xf32>
    tpu.vector_store %arg10[%c0_32, %c0_33], %54 {strides = array<i32>} : memref<32x768xf32, #tpu.memory_space<vmem>>, vector<32x768xf32>,
    %c0_34 = arith.constant 0 : index
    %c81 = arith.constant 81 : index
    %56 = vector.load %arg8[%c0_34, %c81] : memref<32x859xbf16, #tpu.memory_space<vmem>>, vector<32x768xbf16>
    %c0_35 = arith.constant 0 : index
    %c0_36 = arith.constant 0 : index
    %57 = vector.load %arg9[%c0_35, %c0_36] : memref<128x768xbf16, #tpu.memory_space<vmem>>, vector<32x768xbf16>
    tpu.vector_store %arg9[%c0_35, %c0_36], %56 {strides = array<i32>} : memref<128x768xbf16, #tpu.memory_space<vmem>>, vector<32x768xbf16>,
    %c0_37 = arith.constant 0 : index
    %c82 = arith.constant 82 : index
    %58 = vector.load %arg8[%c0_37, %c82] : memref<32x859xbf16, #tpu.memory_space<vmem>>, vector<32x768xbf16>
    %c32_38 = arith.constant 32 : index
    %c0_39 = arith.constant 0 : index
    %59 = vector.load %arg9[%c32_38, %c0_39] : memref<128x768xbf16, #tpu.memory_space<vmem>>, vector<32x768xbf16>
    tpu.vector_store %arg9[%c32_38, %c0_39], %58 {strides = array<i32>} : memref<128x768xbf16, #tpu.memory_space<vmem>>, vector<32x768xbf16>,
    %c0_40 = arith.constant 0 : index
    %c90 = arith.constant 90 : index
    %60 = vector.load %arg8[%c0_40, %c90] : memref<32x859xbf16, #tpu.memory_space<vmem>>, vector<32x768xbf16>
    %c64_41 = arith.constant 64 : index
    %c0_42 = arith.constant 0 : index
    %61 = vector.load %arg9[%c64_41, %c0_42] : memref<128x768xbf16, #tpu.memory_space<vmem>>, vector<32x768xbf16>
    tpu.vector_store %arg9[%c64_41, %c0_42], %60 {strides = array<i32>} : memref<128x768xbf16, #tpu.memory_space<vmem>>, vector<32x768xbf16>,
    %c0_43 = arith.constant 0 : index
    %c91 = arith.constant 91 : index
    %62 = vector.load %arg8[%c0_43, %c91] : memref<32x859xbf16, #tpu.memory_space<vmem>>, vector<32x768xbf16>
    %c96_44 = arith.constant 96 : index
    %c0_45 = arith.constant 0 : index
    %63 = vector.load %arg9[%c96_44, %c0_45] : memref<128x768xbf16, #tpu.memory_space<vmem>>, vector<32x768xbf16>
    tpu.vector_store %arg9[%c96_44, %c0_45], %62 {strides = array<i32>} : memref<128x768xbf16, #tpu.memory_space<vmem>>, vector<32x768xbf16>,
    %c1_46 = arith.constant 1 : index
    %c0_47 = arith.constant 0 : index
    %c0_48 = arith.constant 0 : index
    %64 = vector.load %arg5[%c1_46, %c0_47, %c0_48] : memref<2x32x128xbf16, #tpu.memory_space<vmem>>, vector<1x32x128xbf16>
    %65 = vector.shape_cast %64 : vector<1x32x128xbf16> to vector<32x128xbf16>
    %c0_49 = arith.constant 0 : index
    %c0_50 = arith.constant 0 : index
    %66 = vector.load %arg9[%c0_49, %c0_50] : memref<128x768xbf16, #tpu.memory_space<vmem>>, vector<128x768xbf16>
    %cst_51 = arith.constant dense<0.000000e+00> : vector<32x768xf32>
    %67 = tpu.matmul %65, %66, %cst_51 {dimension_numbers = #tpu.dot_dimension_numbers<[1], [0], [0], [1], [0, 0, 1, 1], [], []>} : vector<32x128xbf16>, vector<128x768xbf16>, vector<32x768xf32> -> vector<32x768xf32>
    %c0_52 = arith.constant 0 : index
    %c0_53 = arith.constant 0 : index
    %68 = vector.load %arg10[%c0_52, %c0_53] : memref<32x768xf32, #tpu.memory_space<vmem>>, vector<32x768xf32>
    %69 = arith.addf %68, %67 : vector<32x768xf32>
    %c0_54 = arith.constant 0 : index
    %c0_55 = arith.constant 0 : index
    %70 = vector.load %arg10[%c0_54, %c0_55] : memref<32x768xf32, #tpu.memory_space<vmem>>, vector<32x768xf32>
    tpu.vector_store %arg10[%c0_54, %c0_55], %69 {strides = array<i32>} : memref<32x768xf32, #tpu.memory_space<vmem>>, vector<32x768xf32>,
    %c0_56 = arith.constant 0 : index
    %c0_57 = arith.constant 0 : index
    %c0_58 = arith.constant 0 : index
    %71 = vector.load %arg2[%c0_56, %c0_57, %c0_58] : memref<1x32x2xf32, #tpu.memory_space<vmem>>, vector<1x32x2xf32>
    %72 = vector.shape_cast %71 : vector<1x32x2xf32> to vector<32x2xf32>
    %73 = vector.extract_strided_slice %72 {offsets = [0, 0], sizes = [32, 1], strides = [1, 1]} : vector<32x2xf32> to vector<32x1xf32>
    %74 = vector.extract_strided_slice %72 {offsets = [0, 1], sizes = [32, 1], strides = [1, 1]} : vector<32x2xf32> to vector<32x1xf32>
    %c0_59 = arith.constant 0 : index
    %c0_60 = arith.constant 0 : index
    %c0_61 = arith.constant 0 : index
    %75 = vector.load %arg1[%c0_59, %c0_60, %c0_61] : memref<1x32x768xf32, #tpu.memory_space<vmem>>, vector<1x32x768xf32>
    %76 = vector.shape_cast %75 : vector<1x32x768xf32> to vector<32x768xf32>
    %c0_62 = arith.constant 0 : index
    %c0_63 = arith.constant 0 : index
    %77 = vector.load %arg10[%c0_62, %c0_63] : memref<32x768xf32, #tpu.memory_space<vmem>>, vector<32x768xf32>
    %78 = vector.broadcast %31 : vector<32x1xf32> to vector<32x768xf32>
    %79 = arith.addf %77, %78 : vector<32x768xf32>
    %80 = vector.broadcast %73 : vector<32x1xf32> to vector<32x768xf32>
    %81 = arith.mulf %80, %79 : vector<32x768xf32>
    %82 = arith.addf %76, %81 : vector<32x768xf32>
    %83 = vector.broadcast %74 : vector<32x1xf32> to vector<32x768xf32>
    %84 = arith.addf %82, %83 : vector<32x768xf32>
    %cst_64 = arith.constant 0.000000e+00 : f32
    %85 = vector.broadcast %cst_64 : f32 to vector<1x768xf32>
    %86 = arith.cmpf ogt, %0, %85 : vector<1x768xf32>
    %cst_65 = arith.constant 0.000000e+00 : f32
    %87 = vector.shape_cast %86 : vector<1x768xi1> to vector<1x768xi1>
    %88 = vector.broadcast %87 : vector<1x768xi1> to vector<32x768xi1>
    %89 = vector.broadcast %cst_65 : f32 to vector<32x768xf32>
    %90 = arith.select %88, %84, %89 : vector<32x768xi1>, vector<32x768xf32>
    %c0_66 = arith.constant 0 : index
    %c0_67 = arith.constant 0 : index
    %c0_68 = arith.constant 0 : index
    %91 = vector.load %arg7[%c0_66, %c0_67, %c0_68] : memref<1x32x768xf32, #tpu.memory_space<vmem>>, vector<1x32x768xf32>
    %92 = vector.shape_cast %91 : vector<1x32x768xf32> to vector<32x768xf32>
    %93 = vector.shape_cast %90 : vector<32x768xf32> to vector<1x32x768xf32>
    tpu.vector_store %arg7[%c0_66, %c0_67, %c0_68], %93 {strides = array<i32>} : memref<1x32x768xf32, #tpu.memory_space<vmem>>, vector<1x32x768xf32>,
    return
  }
  func.func @transform_0(%arg0: i32) -> (i32, i32, i32) {
    %c0_i32 = arith.constant 0 : i32
    %c0_i32_0 = arith.constant 0 : i32
    %c0_i32_1 = arith.constant 0 : i32
    return %arg0, %c0_i32, %c0_i32_0 : i32, i32, i32
  }
  func.func @transform_1(%arg0: i32) -> (i32, i32, i32) {
    %c0_i32 = arith.constant 0 : i32
    %c0_i32_0 = arith.constant 0 : i32
    %c0_i32_1 = arith.constant 0 : i32
    return %arg0, %c0_i32, %c0_i32_0 : i32, i32, i32
  }
  func.func @transform_2(%arg0: i32) -> (i32, i32) {
    %c0_i32 = arith.constant 0 : i32
    %c0_i32_0 = arith.constant 0 : i32
    %c0_i32_1 = arith.constant 0 : i32
    return %c0_i32, %c0_i32_0 : i32, i32
  }
  func.func @transform_3(%arg0: i32) -> (i32, i32) {
    %c0_i32 = arith.constant 0 : i32
    %c0_i32_0 = arith.constant 0 : i32
    %c0_i32_1 = arith.constant 0 : i32
    return %c0_i32, %c0_i32_0 : i32, i32
  }
  func.func @transform_4(%arg0: i32) -> (i32, i32, i32) {
    %c0_i32 = arith.constant 0 : i32
    %c0_i32_0 = arith.constant 0 : i32
    %c0_i32_1 = arith.constant 0 : i32
    %c0_i32_2 = arith.constant 0 : i32
    return %c0_i32, %c0_i32_0, %c0_i32_1 : i32, i32, i32
  }
  func.func @transform_5(%arg0: i32) -> (i32, i32) {
    %c0_i32 = arith.constant 0 : i32
    %c0_i32_0 = arith.constant 0 : i32
    %c0_i32_1 = arith.constant 0 : i32
    return %c0_i32, %c0_i32_0 : i32, i32
  }
  func.func @transform_6(%arg0: i32) -> (i32, i32, i32) {
    %c0_i32 = arith.constant 0 : i32
    %c0_i32_0 = arith.constant 0 : i32
    %c0_i32_1 = arith.constant 0 : i32
    return %arg0, %c0_i32, %c0_i32_0 : i32, i32, i32
  }
}

</mosaic_0001>

<llo_original>
// kernel: tpu_custom_call.1
$region0: #{tpu_custom_call.1}
  #allocation0 [shape = 'u32[]', space=smem, size = 0x4, offset = 0x4, fixed_abs, tag = 'smem constant byte address 0x4 - core index']
  #allocation1 [shape = 'u32[144,128]{1,0:T(1,128)}', space=vmem, size = 0x12000, scoped, tag = 'internal scratch']
  #allocation2 [shape = 'bf16[32,859]{1,0:T(8,128)(2,1)}', space=vmem, size = 0xe000, scoped, tag = 'scratch operand']
  #allocation3 [shape = 'bf16[128,768]{1,0:T(8,128)(2,1)}', space=vmem, size = 0x30000, scoped, tag = 'scratch operand']
  #allocation4 [shape = 'f32[32,768]{1,0:T(8,128)}', space=vmem, size = 0x18000, scoped, tag = 'scratch operand']
  %s0 = inlined_call_operand.hbm [shape: f32[2,32,768], index: 0, kind: input, shape index: {}]
  %s1 = inlined_call_operand.vmem [shape: f32[2,32,2], index: 1, kind: input, shape index: {}]
  %s2 = inlined_call_operand.vmem [shape: f32[32,3], index: 2, kind: input, shape index: {}]
  %s3 = inlined_call_operand.vmem [shape: f32[32,32], index: 3, kind: input, shape index: {}]
  %s4 = inlined_call_operand.vmem [shape: bf16[2,32,128], index: 4, kind: input, shape index: {}]
  %s5 = inlined_call_operand.vmem [shape: f32[1,768], index: 5, kind: input, shape index: {}]
  %s6 = inlined_call_operand.hbm [shape: f32[2,32,768], index: 6, kind: output, shape index: {}]
  %s7 = sld [smem:[#allocation0]]
  $region61: #{tpu_custom_call.1} parent=0
    _
  %s9 = ssub.s32 1, %s7
  %s10 = scalar_select 0, %s9, %s7
  $region1: #{tpu_custom_call.1} parent=0
    #allocation5 [shape = 'u8[196608]{0}', space=vmem, size = 0x30000, scoped, tag = 'input window, operand 0']
    #allocation6 [shape = 's32[2]{0}', space=sflag, size = 0x8, scoped, tag = 'scoped memory for tpu_custom_call.1']
    #allocation7 [shape = 's32[2]{0}', space=sflag, size = 0x8, scoped, tag = 'scoped memory for tpu_custom_call.1']
    #allocation8 [shape = 'u8[196608]{0}', space=vmem, size = 0x30000, scoped, tag = 'output window, operand 0']
    %11 = vsyncpa [#allocation6], 0
    %s12 = scalar_lea.sflag [#allocation6], 1
    %13 = vsyncpa %s12, 0
    %14 = vsyncpa [#allocation7], 0
    %s15 = scalar_lea.sflag [#allocation7], 1
    %16 = vsyncpa %s15, 0
    loop: start=0, step=1, limit=4
    $region2: #{tpu_custom_call.1} parent=1 // loop_pre_header
      _
    $region3: #{tpu_custom_call.1} parent=1 // loop_header
      %s18 = sphi 0, %s22
      %p19 = scmp.ge.s32.totalorder %s18, 4
      %s28 = sphi 0, %s30
      %s31 = sphi 0, %s28
      %s32 = sphi 0, %s31
      %s48 = sphi 0, %s32
      %s54 = sphi 0, %s56
      %s57 = sphi 0, %s54
      %s58 = sphi 0, %s57
      %s74 = sphi 0, %s58
      %s78 = sphi 0, %s78
      %s80 = sphi 0, %s78
      %s81 = sphi 0, %s80
      %s95 = sphi 0, %s81
      %s99 = sphi 0, %s99
      %s101 = sphi 0, %s99
      %s102 = sphi 0, %s101
      %s116 = sphi 0, %s102
      %s120 = sphi 0, %s120
      %s122 = sphi 0, %s120
      %s123 = sphi 0, %s122
      %s137 = sphi 0, %s123
      %s141 = sphi 0, %s141
      %s143 = sphi 0, %s141
      %s144 = sphi 0, %s143
      %s158 = sphi 0, %s144
      %s164 = sphi 0, %s166
      %s167 = sphi 0, %s164
      %s168 = sphi 0, %s167
      %s184 = sphi 0, %s168
    $region4: #{tpu_custom_call.1} parent=1 // loop_header_branch
      %21 = sbr.rel (%p19) target = $region8
    $region5: #{tpu_custom_call.1} parent=1 // loop_body
      %s23 = ssub.s32 %s18, 1
      %s24 = ssub.s32 %s18, 2
      %s25 = sadd.s32 %s18, 1
      %s26 = ssub.s32 %s18, %s25
      %p27 = scmp.eq.s32.totalorder %s26, 0
      %s29 = sadd.s32 %s28, 1
      %s30 = scalar_select %p27, %s28, %s29
      %p33 = pneg %p27
      %p34 = scmp.eq.s32.totalorder %s18, 1
      %p35 = por %p33, %p34
      %p36 = scmp.ne.s32.totalorder %s28, %s31
      %p37 = scmp.eq.s32.totalorder %s18, 0
      %p38 = por %p36, %p37
      %p39 = scmp.ne.s32.totalorder %s28, %s31
      %p40 = scmp.eq.s32.totalorder %s23, 1
      %p41 = por %p39, %p40
      %p42 = scmp.ne.s32.totalorder %s31, %s32
      %p43 = scmp.eq.s32.totalorder %s23, 0
      %p44 = por %p42, %p43
      %p45 = scmp.ne.s32.totalorder %s31, %s32
      %p46 = scmp.eq.s32.totalorder %s24, 1
      %p47 = por %p45, %p46
      %p49 = scmp.ne.s32.totalorder %s32, %s48
      %p50 = scmp.eq.s32.totalorder %s24, 0
      %p51 = por %p49, %p50
      %s52 = ssub.s32 %s18, %s25
      %p53 = scmp.eq.s32.totalorder %s52, 0
      %s55 = sadd.s32 %s54, 1
      %s56 = scalar_select %p53, %s54, %s55
      %p59 = pneg %p53
      %p60 = scmp.eq.s32.totalorder %s18, 1
      %p61 = por %p59, %p60
      %p62 = scmp.ne.s32.totalorder %s54, %s57
      %p63 = scmp.eq.s32.totalorder %s18, 0
      %p64 = por %p62, %p63
      %p65 = scmp.ne.s32.totalorder %s54, %s57
      %p66 = scmp.eq.s32.totalorder %s23, 1
      %p67 = por %p65, %p66
      %p68 = scmp.ne.s32.totalorder %s57, %s58
      %p69 = scmp.eq.s32.totalorder %s23, 0
      %p70 = por %p68, %p69
      %p71 = scmp.ne.s32.totalorder %s57, %s58
      %p72 = scmp.eq.s32.totalorder %s24, 1
      %p73 = por %p71, %p72
      %p75 = scmp.ne.s32.totalorder %s58, %s74
      %p76 = scmp.eq.s32.totalorder %s24, 0
      %p77 = por %p75, %p76
      %s79 = sadd.s32 %s78, 1
      %p82 = scmp.eq.s32.totalorder %s18, 1
      %p83 = scmp.ne.s32.totalorder %s78, %s80
      %p84 = scmp.eq.s32.totalorder %s18, 0
      %p85 = por %p83, %p84
      %p86 = scmp.ne.s32.totalorder %s78, %s80
      %p87 = scmp.eq.s32.totalorder %s23, 1
      %p88 = por %p86, %p87
      %p89 = scmp.ne.s32.totalorder %s80, %s81
      %p90 = scmp.eq.s32.totalorder %s23, 0
      %p91 = por %p89, %p90
      %p92 = scmp.ne.s32.totalorder %s80, %s81
      %p93 = scmp.eq.s32.totalorder %s24, 1
      %p94 = por %p92, %p93
      %p96 = scmp.ne.s32.totalorder %s81, %s95
      %p97 = scmp.eq.s32.totalorder %s24, 0
      %p98 = por %p96, %p97
      %s100 = sadd.s32 %s99, 1
      %p103 = scmp.eq.s32.totalorder %s18, 1
      %p104 = scmp.ne.s32.totalorder %s99, %s101
      %p105 = scmp.eq.s32.totalorder %s18, 0
      %p106 = por %p104, %p105
      %p107 = scmp.ne.s32.totalorder %s99, %s101
      %p108 = scmp.eq.s32.totalorder %s23, 1
      %p109 = por %p107, %p108
      %p110 = scmp.ne.s32.totalorder %s101, %s102
      %p111 = scmp.eq.s32.totalorder %s23, 0
      %p112 = por %p110, %p111
      %p113 = scmp.ne.s32.totalorder %s101, %s102
      %p114 = scmp.eq.s32.totalorder %s24, 1
      %p115 = por %p113, %p114
      %p117 = scmp.ne.s32.totalorder %s102, %s116
      %p118 = scmp.eq.s32.totalorder %s24, 0
      %p119 = por %p117, %p118
      %s121 = sadd.s32 %s120, 1
      %p124 = scmp.eq.s32.totalorder %s18, 1
      %p125 = scmp.ne.s32.totalorder %s120, %s122
      %p126 = scmp.eq.s32.totalorder %s18, 0
      %p127 = por %p125, %p126
      %p128 = scmp.ne.s32.totalorder %s120, %s122
      %p129 = scmp.eq.s32.totalorder %s23, 1
      %p130 = por %p128, %p129
      %p131 = scmp.ne.s32.totalorder %s122, %s123
      %p132 = scmp.eq.s32.totalorder %s23, 0
      %p133 = por %p131, %p132
      %p134 = scmp.ne.s32.totalorder %s122, %s123
      %p135 = scmp.eq.s32.totalorder %s24, 1
      %p136 = por %p134, %p135
      %p138 = scmp.ne.s32.totalorder %s123, %s137
      %p139 = scmp.eq.s32.totalorder %s24, 0
      %p140 = por %p138, %p139
      %s142 = sadd.s32 %s141, 1
      %p145 = scmp.eq.s32.totalorder %s18, 1
      %p146 = scmp.ne.s32.totalorder %s141, %s143
      %p147 = scmp.eq.s32.totalorder %s18, 0
      %p148 = por %p146, %p147
      %p149 = scmp.ne.s32.totalorder %s141, %s143
      %p150 = scmp.eq.s32.totalorder %s23, 1
      %p151 = por %p149, %p150
      %p152 = scmp.ne.s32.totalorder %s143, %s144
      %p153 = scmp.eq.s32.totalorder %s23, 0
      %p154 = por %p152, %p153
      %p155 = scmp.ne.s32.totalorder %s143, %s144
      %p156 = scmp.eq.s32.totalorder %s24, 1
      %p157 = por %p155, %p156
      %p159 = scmp.ne.s32.totalorder %s144, %s158
      %p160 = scmp.eq.s32.totalorder %s24, 0
      %p161 = por %p159, %p160
      %s162 = ssub.s32 %s18, %s25
      %p163 = scmp.eq.s32.totalorder %s162, 0
      %s165 = sadd.s32 %s164, 1
      %s166 = scalar_select %p163, %s164, %s165
      %p169 = pneg %p163
      %p170 = scmp.eq.s32.totalorder %s18, 1
      %p171 = por %p169, %p170
      %p172 = scmp.ne.s32.totalorder %s164, %s167
      %p173 = scmp.eq.s32.totalorder %s18, 0
      %p174 = por %p172, %p173
      %p175 = scmp.ne.s32.totalorder %s164, %s167
      %p176 = scmp.eq.s32.totalorder %s23, 1
      %p177 = por %p175, %p176
      %p178 = scmp.ne.s32.totalorder %s167, %s168
      %p179 = scmp.eq.s32.totalorder %s23, 0
      %p180 = por %p178, %p179
      %p181 = scmp.ne.s32.totalorder %s167, %s168
      %p182 = scmp.eq.s32.totalorder %s24, 1
      %p183 = por %p181, %p182
      %p185 = scmp.ne.s32.totalorder %s168, %s184
      %p186 = scmp.eq.s32.totalorder %s24, 0
      %p187 = por %p185, %p186
      %p188 = scmp.le.s32.totalorder 1, %s18
      %p189 = scmp.lt.s32.totalorder %s18, 3
      %p190 = pnand %p188, %p189
      %p191 = pneg %p190
      // Predicated region
      $region9: #{tpu_custom_call.1} parent=5 // pred_check
        _
      $region10: #{tpu_custom_call.1} parent=5 // pred_check_branch
        %193 = sbr.rel (%p190) target = $region12
      $region11: #{tpu_custom_call.1} parent=5 // pred_region
        %s194 = ssub.s32 %s18, 1
        // Predicated region
        $region13: #{tpu_custom_call.1} parent=11 // pred_check
          %p195 = pneg %p91
        $region14: #{tpu_custom_call.1} parent=11 // pred_check_branch
          %197 = sbr.rel (%p195) target = $region16
        $region15: #{tpu_custom_call.1} parent=11 // pred_region
          _
        $region16: #{tpu_custom_call.1} parent=11 // pred_fallthru
          _
        // Predicated region
        $region17: #{tpu_custom_call.1} parent=11 // pred_check
          %p198 = pneg %p112
        $region18: #{tpu_custom_call.1} parent=11 // pred_check_branch
          %200 = sbr.rel (%p198) target = $region20
        $region19: #{tpu_custom_call.1} parent=11 // pred_region
          _
        $region20: #{tpu_custom_call.1} parent=11 // pred_fallthru
          _
        // Predicated region
        $region21: #{tpu_custom_call.1} parent=11 // pred_check
          %p201 = pneg %p133
        $region22: #{tpu_custom_call.1} parent=11 // pred_check_branch
          %203 = sbr.rel (%p201) target = $region24
        $region23: #{tpu_custom_call.1} parent=11 // pred_region
          _
        $region24: #{tpu_custom_call.1} parent=11 // pred_fallthru
          _
        // Predicated region
        $region25: #{tpu_custom_call.1} parent=11 // pred_check
          %p204 = pneg %p154
        $region26: #{tpu_custom_call.1} parent=11 // pred_check_branch
          %206 = sbr.rel (%p204) target = $region28
        $region27: #{tpu_custom_call.1} parent=11 // pred_region
          _
        $region28: #{tpu_custom_call.1} parent=11 // pred_fallthru
          _
      $region12: #{tpu_custom_call.1} parent=5 // pred_fallthru
        _
      %p207 = scmp.lt.s32.totalorder %s18, 2
      // Predicated region
      $region29: #{tpu_custom_call.1} parent=5 // pred_check
        %p208 = pneg %p207
      $region30: #{tpu_custom_call.1} parent=5 // pred_check_branch
        %210 = sbr.rel (%p208) target = $region32
      $region31: #{tpu_custom_call.1} parent=5 // pred_region
        // Predicated region
        $region33: #{tpu_custom_call.1} parent=31 // pred_check
          %p211 = pneg %p38
        $region34: #{tpu_custom_call.1} parent=31 // pred_check_branch
          %213 = sbr.rel (%p211) target = $region36
        $region35: #{tpu_custom_call.1} parent=31 // pred_region
          %s214 = sand.u32 %s28, 1
          %s215 = scalar_lea.sflag [#allocation6], %s214
          %s216 = sand.u32 %s28, 1
          %s217 = smul.addr %s216, 192
          %s218 = scalar_lea.vmem [#allocation5], %s217
          %s220 = ssub.s32 3072, 3072
          %221 = vsyncadd %s215, %s220
          %s222 = smul.addr %s18, 24
          %s223 = smul.addr %s222, 128
          %s224 = scalar_lea.hbm %s0, %s223
          %s225 = sshll.u32 %s218, 4
          %s226 = int_to_ptr.vmem [resolvable:$true] %s225
          %231 = dma.hbm_to_vmem [thread:$0]  %s224, 3072, %s226, %s215, 768, 768, 48
        $region36: #{tpu_custom_call.1} parent=31 // pred_fallthru
          _
        // Predicated region
        $region37: #{tpu_custom_call.1} parent=31 // pred_check
          %p232 = pneg %p64
        $region38: #{tpu_custom_call.1} parent=31 // pred_check_branch
          %234 = sbr.rel (%p232) target = $region40
        $region39: #{tpu_custom_call.1} parent=31 // pred_region
          %p235 = scmp.lt.s32.totalorder %s18, 1
          %s236 = scalar_select %p235, %s18, 1
          %s237 = smul.addr %s236, 4
          %s238 = smul.addr %s237, 8
          %s239 = scalar_lea.vmem %s1, %s238
        $region40: #{tpu_custom_call.1} parent=31 // pred_fallthru
          _
      $region32: #{tpu_custom_call.1} parent=5 // pred_fallthru
        _
      %p240 = scmp.le.s32.totalorder 1, %s18
      %p241 = scmp.lt.s32.totalorder %s18, 3
      %p242 = pnand %p240, %p241
      %p243 = pneg %p242
      // Predicated region
      $region41: #{tpu_custom_call.1} parent=5 // pred_check
        _
      $region42: #{tpu_custom_call.1} parent=5 // pred_check_branch
        %245 = sbr.rel (%p242) target = $region44
      $region43: #{tpu_custom_call.1} parent=5 // pred_region
        %s246 = ssub.s32 %s18, 1
        %s247 = sand.u32 %s31, 1
        %s248 = scalar_lea.sflag [#allocation6], %s247
        %s249 = sand.u32 %s31, 1
        %s250 = smul.addr %s249, 192
        %s251 = scalar_lea.vmem [#allocation5], %s250
        // Predicated region
        $region45: #{tpu_custom_call.1} parent=43 // pred_check
          %p252 = pneg %p44
        $region46: #{tpu_custom_call.1} parent=43 // pred_check_branch
          %254 = sbr.rel (%p252) target = $region48
        $region47: #{tpu_custom_call.1} parent=43 // pred_region
          %255 = dma.done %s248, 3072
        $region48: #{tpu_custom_call.1} parent=43 // pred_fallthru
          _
        %s256 = sand.u32 %s31, 1
        %s257 = scalar_lea.sflag [#allocation6], %s256
        %s258 = sand.u32 %s31, 1
        %s259 = smul.addr %s258, 192
        %s260 = scalar_lea.vmem [#allocation5], %s259
        %p261 = pneg %p44
        %p262 = pneg %p41
        %p263 = scmp.lt.s32.totalorder %s23, 1
        %s264 = scalar_select %p263, %s23, 1
        %s265 = smul.addr %s264, 4
        %s266 = smul.addr %s265, 8
        %s267 = scalar_lea.vmem %s1, %s266
        %p268 = pneg %p70
        %p269 = pneg %p67
        %p270 = pneg %p91
        %p271 = pneg %p88
        %p272 = pneg %p112
        %p273 = pneg %p109
        %p274 = pneg %p133
        %p275 = pneg %p130
        %p276 = pneg %p154
        %p277 = pneg %p151
        %p278 = pneg %p180
        %p279 = pneg %p177
        %s280 = sand.u32 %s167, 1
        %s281 = scalar_lea.sflag [#allocation7], %s280
        %s282 = sand.u32 %s167, 1
        %s283 = smul.addr %s282, 192
        %s284 = scalar_lea.vmem [#allocation8], %s283
        %p285 = scmp.lt.s32.totalorder %s23, 1
        %s286 = scalar_select %p285, %s23, 1
        %s287 = smul.addr %s286, 4
        %s288 = smul.addr %s287, 8
        %s289 = scalar_lea.vmem %s1, %s288
        %v291 = vld [vmem:[%s5] sm:$0x3f]
        %v292 = vld [vmem:[%s251] sm:$0xff]
        %v293 = vld [vmem:[%s251 + $0x8] sm:$0xff]
        %v294 = vld [vmem:[%s251 + $0x10] sm:$0xff]
        %v295 = vld [vmem:[%s251 + $0x18] sm:$0xff]
        %v296 = vld [vmem:[%s251 + $0x20] sm:$0xff]
        %v297 = vld [vmem:[%s251 + $0x28] sm:$0xff]
        %v298 = vld [vmem:[%s251 + $0x30] sm:$0xff]
        %v299 = vld [vmem:[%s251 + $0x38] sm:$0xff]
        %v300 = vld [vmem:[%s251 + $0x40] sm:$0xff]
        %v301 = vld [vmem:[%s251 + $0x48] sm:$0xff]
        %v302 = vld [vmem:[%s251 + $0x50] sm:$0xff]
        %v303 = vld [vmem:[%s251 + $0x58] sm:$0xff]
        %v304 = vld [vmem:[%s251 + $0x60] sm:$0xff]
        %v305 = vld [vmem:[%s251 + $0x68] sm:$0xff]
        %v306 = vld [vmem:[%s251 + $0x70] sm:$0xff]
        %v307 = vld [vmem:[%s251 + $0x78] sm:$0xff]
        %v308 = vld [vmem:[%s251 + $0x80] sm:$0xff]
        %v309 = vld [vmem:[%s251 + $0x88] sm:$0xff]
        %v310 = vld [vmem:[%s251 + $0x90] sm:$0xff]
        %v311 = vld [vmem:[%s251 + $0x98] sm:$0xff]
        %v312 = vld [vmem:[%s251 + $0xa0] sm:$0xff]
        %v313 = vld [vmem:[%s251 + $0xa8] sm:$0xff]
        %v314 = vld [vmem:[%s251 + $0xb0] sm:$0xff]
        %v315 = vld [vmem:[%s251 + $0xb8] sm:$0xff]
        %v316 = vxor.u32 %v292, 2147483648
        %v317 = vxor.u32 %v293, 2147483648
        %v318 = vxor.u32 %v294, 2147483648
        %v319 = vxor.u32 %v295, 2147483648
        %v320 = vxor.u32 %v296, 2147483648
        %v321 = vxor.u32 %v297, 2147483648
        %v322 = vxor.u32 %v298, 2147483648
        %v323 = vxor.u32 %v299, 2147483648
        %v324 = vxor.u32 %v300, 2147483648
        %v325 = vxor.u32 %v301, 2147483648
        %v326 = vxor.u32 %v302, 2147483648
        %v327 = vxor.u32 %v303, 2147483648
        %v328 = vxor.u32 %v304, 2147483648
        %v329 = vxor.u32 %v305, 2147483648
        %v330 = vxor.u32 %v306, 2147483648
        %v331 = vxor.u32 %v307, 2147483648
        %v332 = vxor.u32 %v308, 2147483648
        %v333 = vxor.u32 %v309, 2147483648
        %v334 = vxor.u32 %v310, 2147483648
        %v335 = vxor.u32 %v311, 2147483648
        %v336 = vxor.u32 %v312, 2147483648
        %v337 = vxor.u32 %v313, 2147483648
        %v338 = vxor.u32 %v314, 2147483648
        %v339 = vxor.u32 %v315, 2147483648
        %v340 = vmul.f32 %v316, 1.442695
        %v341 = vpow.pop %v340
        %v342 = vmul.f32 %v317, 1.442695
        %v343 = vpow.pop %v342
        %v344 = vmul.f32 %v318, 1.442695
        %v345 = vpow.pop %v344
        %v346 = vmul.f32 %v319, 1.442695
        %v347 = vpow.pop %v346
        %v348 = vmul.f32 %v320, 1.442695
        %v349 = vpow.pop %v348
        %v350 = vmul.f32 %v321, 1.442695
        %v351 = vpow.pop %v350
        %v352 = vmul.f32 %v322, 1.442695
        %v353 = vpow.pop %v352
        %v354 = vmul.f32 %v323, 1.442695
        %v355 = vpow.pop %v354
        %v356 = vmul.f32 %v324, 1.442695
        %v357 = vpow.pop %v356
        %v358 = vmul.f32 %v325, 1.442695
        %v359 = vpow.pop %v358
        %v360 = vmul.f32 %v326, 1.442695
        %v361 = vpow.pop %v360
        %v362 = vmul.f32 %v327, 1.442695
        %v363 = vpow.pop %v362
        %v364 = vmul.f32 %v328, 1.442695
        %v365 = vpow.pop %v364
        %v366 = vmul.f32 %v329, 1.442695
        %v367 = vpow.pop %v366
        %v368 = vmul.f32 %v330, 1.442695
        %v369 = vpow.pop %v368
        %v370 = vmul.f32 %v331, 1.442695
        %v371 = vpow.pop %v370
        %v372 = vmul.f32 %v332, 1.442695
        %v373 = vpow.pop %v372
        %v374 = vmul.f32 %v333, 1.442695
        %v375 = vpow.pop %v374
        %v376 = vmul.f32 %v334, 1.442695
        %v377 = vpow.pop %v376
        %v378 = vmul.f32 %v335, 1.442695
        %v379 = vpow.pop %v378
        %v380 = vmul.f32 %v336, 1.442695
        %v381 = vpow.pop %v380
        %v382 = vmul.f32 %v337, 1.442695
        %v383 = vpow.pop %v382
        %v384 = vmul.f32 %v338, 1.442695
        %v385 = vpow.pop %v384
        %v386 = vmul.f32 %v339, 1.442695
        %v387 = vpow.pop %v386
        %v388 = vadd.f32 %v341, 1.0
        %v389 = vadd.f32 %v343, 1.0
        %v390 = vadd.f32 %v345, 1.0
        %v391 = vadd.f32 %v347, 1.0
        %v392 = vadd.f32 %v349, 1.0
        %v393 = vadd.f32 %v351, 1.0
        %v394 = vadd.f32 %v353, 1.0
        %v395 = vadd.f32 %v355, 1.0
        %v396 = vadd.f32 %v357, 1.0
        %v397 = vadd.f32 %v359, 1.0
        %v398 = vadd.f32 %v361, 1.0
        %v399 = vadd.f32 %v363, 1.0
        %v400 = vadd.f32 %v365, 1.0
        %v401 = vadd.f32 %v367, 1.0
        %v402 = vadd.f32 %v369, 1.0
        %v403 = vadd.f32 %v371, 1.0
        %v404 = vadd.f32 %v373, 1.0
        %v405 = vadd.f32 %v375, 1.0
        %v406 = vadd.f32 %v377, 1.0
        %v407 = vadd.f32 %v379, 1.0
        %v408 = vadd.f32 %v381, 1.0
        %v409 = vadd.f32 %v383, 1.0
        %v410 = vadd.f32 %v385, 1.0
        %v411 = vadd.f32 %v387, 1.0
        %v412 = vrcp.pop %v388
        %v413 = vmul.f32 1.0, %v412
        %v414 = vrcp.pop %v389
        %v415 = vmul.f32 1.0, %v414
        %v416 = vrcp.pop %v390
        %v417 = vmul.f32 1.0, %v416
        %v418 = vrcp.pop %v391
        %v419 = vmul.f32 1.0, %v418
        %v420 = vrcp.pop %v392
        %v421 = vmul.f32 1.0, %v420
        %v422 = vrcp.pop %v393
        %v423 = vmul.f32 1.0, %v422
        %v424 = vrcp.pop %v394
        %v425 = vmul.f32 1.0, %v424
        %v426 = vrcp.pop %v395
        %v427 = vmul.f32 1.0, %v426
        %v428 = vrcp.pop %v396
        %v429 = vmul.f32 1.0, %v428
        %v430 = vrcp.pop %v397
        %v431 = vmul.f32 1.0, %v430
        %v432 = vrcp.pop %v398
        %v433 = vmul.f32 1.0, %v432
        %v434 = vrcp.pop %v399
        %v435 = vmul.f32 1.0, %v434
        %v436 = vrcp.pop %v400
        %v437 = vmul.f32 1.0, %v436
        %v438 = vrcp.pop %v401
        %v439 = vmul.f32 1.0, %v438
        %v440 = vrcp.pop %v402
        %v441 = vmul.f32 1.0, %v440
        %v442 = vrcp.pop %v403
        %v443 = vmul.f32 1.0, %v442
        %v444 = vrcp.pop %v404
        %v445 = vmul.f32 1.0, %v444
        %v446 = vrcp.pop %v405
        %v447 = vmul.f32 1.0, %v446
        %v448 = vrcp.pop %v406
        %v449 = vmul.f32 1.0, %v448
        %v450 = vrcp.pop %v407
        %v451 = vmul.f32 1.0, %v450
        %v452 = vrcp.pop %v408
        %v453 = vmul.f32 1.0, %v452
        %v454 = vrcp.pop %v409
        %v455 = vmul.f32 1.0, %v454
        %v456 = vrcp.pop %v410
        %v457 = vmul.f32 1.0, %v456
        %v458 = vrcp.pop %v411
        %v459 = vmul.f32 1.0, %v458
        %v460 = vmul.f32 %v292, %v413
        %v461 = vmul.f32 %v293, %v415
        %v462 = vmul.f32 %v294, %v417
        %v463 = vmul.f32 %v295, %v419
        %v464 = vmul.f32 %v296, %v421
        %v465 = vmul.f32 %v297, %v423
        %v466 = vmul.f32 %v298, %v425
        %v467 = vmul.f32 %v299, %v427
        %v468 = vmul.f32 %v300, %v429
        %v469 = vmul.f32 %v301, %v431
        %v470 = vmul.f32 %v302, %v433
        %v471 = vmul.f32 %v303, %v435
        %v472 = vmul.f32 %v304, %v437
        %v473 = vmul.f32 %v305, %v439
        %v474 = vmul.f32 %v306, %v441
        %v475 = vmul.f32 %v307, %v443
        %v476 = vmul.f32 %v308, %v445
        %v477 = vmul.f32 %v309, %v447
        %v478 = vmul.f32 %v310, %v449
        %v479 = vmul.f32 %v311, %v451
        %v480 = vmul.f32 %v312, %v453
        %v481 = vmul.f32 %v313, %v455
        %v482 = vmul.f32 %v314, %v457
        %v483 = vmul.f32 %v315, %v459
        %v484 = vadd.f32 %v460, %v461
        %v485 = vadd.f32 %v484, %v462
        %v486 = vadd.f32 %v485, %v463
        %v487 = vadd.f32 %v486, %v464
        %v488 = vadd.f32 %v487, %v465
        %489 = vadd.xlane.f32.xlu0 %v488
        %v490 = vpop.xlane.xlu0 %489
        %v491 = vadd.f32 %v466, %v467
        %v492 = vadd.f32 %v491, %v468
        %v493 = vadd.f32 %v492, %v469
        %v494 = vadd.f32 %v493, %v470
        %v495 = vadd.f32 %v494, %v471
        %496 = vadd.xlane.f32.xlu0 %v495
        %v497 = vpop.xlane.xlu0 %496
        %v498 = vadd.f32 %v472, %v473
        %v499 = vadd.f32 %v498, %v474
        %v500 = vadd.f32 %v499, %v475
        %v501 = vadd.f32 %v500, %v476
        %v502 = vadd.f32 %v501, %v477
        %503 = vadd.xlane.f32.xlu0 %v502
        %v504 = vpop.xlane.xlu0 %503
        %v505 = vadd.f32 %v478, %v479
        %v506 = vadd.f32 %v505, %v480
        %v507 = vadd.f32 %v506, %v481
        %v508 = vadd.f32 %v507, %v482
        %v509 = vadd.f32 %v508, %v483
        %510 = vadd.xlane.f32.xlu0 %v509
        %v511 = vpop.xlane.xlu0 %510
        %v512 = vmul.f32 %v490, 0.001953125
        %v513 = vmul.f32 %v497, 0.001953125
        %v514 = vmul.f32 %v504, 0.001953125
        %v515 = vmul.f32 %v511, 0.001953125
        %v516 = vmul.f32 %v460, %v460
        %v517 = vmul.f32 %v461, %v461
        %v518 = vmul.f32 %v462, %v462
        %v519 = vmul.f32 %v463, %v463
        %v520 = vmul.f32 %v464, %v464
        %v521 = vmul.f32 %v465, %v465
        %v522 = vmul.f32 %v466, %v466
        %v523 = vmul.f32 %v467, %v467
        %v524 = vmul.f32 %v468, %v468
        %v525 = vmul.f32 %v469, %v469
        %v526 = vmul.f32 %v470, %v470
        %v527 = vmul.f32 %v471, %v471
        %v528 = vmul.f32 %v472, %v472
        %v529 = vmul.f32 %v473, %v473
        %v530 = vmul.f32 %v474, %v474
        %v531 = vmul.f32 %v475, %v475
        %v532 = vmul.f32 %v476, %v476
        %v533 = vmul.f32 %v477, %v477
        %v534 = vmul.f32 %v478, %v478
        %v535 = vmul.f32 %v479, %v479
        %v536 = vmul.f32 %v480, %v480
        %v537 = vmul.f32 %v481, %v481
        %v538 = vmul.f32 %v482, %v482
        %v539 = vmul.f32 %v483, %v483
        %v540 = vadd.f32 %v516, %v517
        %v541 = vadd.f32 %v540, %v518
        %v542 = vadd.f32 %v541, %v519
        %v543 = vadd.f32 %v542, %v520
        %v544 = vadd.f32 %v543, %v521
        %545 = vadd.xlane.f32.xlu0 %v544
        %v546 = vpop.xlane.xlu0 %545
        %v547 = vadd.f32 %v522, %v523
        %v548 = vadd.f32 %v547, %v524
        %v549 = vadd.f32 %v548, %v525
        %v550 = vadd.f32 %v549, %v526
        %v551 = vadd.f32 %v550, %v527
        %552 = vadd.xlane.f32.xlu0 %v551
        %v553 = vpop.xlane.xlu0 %552
        %v554 = vadd.f32 %v528, %v529
        %v555 = vadd.f32 %v554, %v530
        %v556 = vadd.f32 %v555, %v531
        %v557 = vadd.f32 %v556, %v532
        %v558 = vadd.f32 %v557, %v533
        %559 = vadd.xlane.f32.xlu0 %v558
        %v560 = vpop.xlane.xlu0 %559
        %v561 = vadd.f32 %v534, %v535
        %v562 = vadd.f32 %v561, %v536
        %v563 = vadd.f32 %v562, %v537
        %v564 = vadd.f32 %v563, %v538
        %v565 = vadd.f32 %v564, %v539
        %566 = vadd.xlane.f32.xlu0 %v565
        %v567 = vpop.xlane.xlu0 %566
        %v568 = vmul.f32 %v546, 0.001953125
        %v569 = vmul.f32 %v553, 0.001953125
        %v570 = vmul.f32 %v560, 0.001953125
        %v571 = vmul.f32 %v567, 0.001953125
        %v572 = vld [vmem:[%s3] sm:$0xff]
        %v573 = vld [vmem:[%s3 + $0x8] sm:$0xff]
        %v574 = vld [vmem:[%s3 + $0x10] sm:$0xff]
        %v575 = vld [vmem:[%s3 + $0x18] sm:$0xff]
        %vm576 = vcmask 7168
        %v577 = vsel %vm576, %v512, %v568
        %v578 = vsel %vm576, %v513, %v569
        %v579 = vsel %vm576, %v514, %v570
        %v580 = vsel %vm576, %v515, %v571
        %vm581 = vcmask 261120
        %v583 = vsel %vm581, %v572, 0
        %v586 = vsel %vm581, %v573, 0
        %v589 = vsel %vm581, %v574, 0
        %v592 = vsel %vm581, %v575, 0
        %594 = vmatprep.subr.mxu0 0.0
        %595 = vmatpush1.msra.mxu0 0.0
        %596 = vmatprep.subr.mxu0 0.0
        %597 = vmatpush1.msra.mxu0 0.0
        %598 = vmatprep.subr.mxu0 0.0
        %599 = vmatpush1.msra.mxu0 0.0
        %600 = vmatprep.subr.mxu0 0.0
        %601 = vmatpush1.msra.mxu0 0.0
        %602 = vmatprep.subr.mxu0 0.0
        %603 = vmatpush1.msra.mxu0 0.0
        %604 = vmatprep.subr.mxu0 0.0
        %605 = vmatpush1.msra.mxu0 0.0
        %606 = vmatprep.subr.mxu0 0.0
        %607 = vmatpush1.msra.mxu0 0.0
        %608 = vmatprep.subr.mxu0 0.0
        %609 = vmatpush1.msra.mxu0 0.0
        %610 = vmatprep.subr.mxu0 0.0
        %611 = vmatpush1.msra.mxu0 0.0
        %612 = vmatprep.subr.mxu0 0.0
        %613 = vmatpush1.msra.mxu0 0.0
        %614 = vmatprep.subr.mxu0 0.0
        %615 = vmatpush1.msra.mxu0 0.0
        %616 = vmatprep.subr.mxu0 0.0
        %617 = vmatpush1.msra.mxu0 0.0
        %618 = vmatprep.subr.mxu0 0.0
        %619 = vmatpush1.msra.mxu0 %v580
        %620 = vmatprep.subr.mxu0 0.0
        %621 = vmatpush1.msra.mxu0 %v579
        %622 = vmatprep.subr.mxu0 0.0
        %623 = vmatpush1.msra.mxu0 %v578
        %624 = vmatprep.subr.mxu0 0.0
        %625 = vmatpush1.msra.mxu0 %v577
        %626 = vmatprep.subr.mxu0 0.0
        %627 = vmatpush2.msra.mxu0 0.0
        %628 = vmatprep.subr.mxu0 0.0
        %629 = vmatpush2.msra.mxu0 0.0
        %630 = vmatprep.subr.mxu0 0.0
        %631 = vmatpush2.msra.mxu0 0.0
        %632 = vmatprep.subr.mxu0 0.0
        %633 = vmatpush2.msra.mxu0 0.0
        %634 = vmatprep.subr.mxu0 0.0
        %635 = vmatpush2.msra.mxu0 0.0
        %636 = vmatprep.subr.mxu0 0.0
        %637 = vmatpush2.msra.mxu0 0.0
        %638 = vmatprep.subr.mxu0 0.0
        %639 = vmatpush2.msra.mxu0 0.0
        %640 = vmatprep.subr.mxu0 0.0
        %641 = vmatpush2.msra.mxu0 0.0
        %642 = vmatprep.subr.mxu0 0.0
        %643 = vmatpush2.msra.mxu0 0.0
        %644 = vmatprep.subr.mxu0 0.0
        %645 = vmatpush2.msra.mxu0 0.0
        %646 = vmatprep.subr.mxu0 0.0
        %647 = vmatpush2.msra.mxu0 0.0
        %648 = vmatprep.subr.mxu0 0.0
        %649 = vmatpush2.msra.mxu0 0.0
        %650 = vmatprep.subr.mxu0 0.0
        %651 = vmatpush2.msra.mxu0 0.0
        %652 = vmatprep.subr.mxu0 0.0
        %653 = vmatpush2.msra.mxu0 0.0
        %654 = vmatprep.subr.mxu0 0.0
        %655 = vmatpush2.msra.mxu0 0.0
        %656 = vmatprep.subr.mxu0 0.0
        %657 = vmatpush2.msra.mxu0 0.0
        %658 = vmatprep.mubr.f32.mxu0 0.0
        %659 = vmatmul.mubr.f32.gmra.mxu0 %v583
        %v660 = vpop.f32.mrf.mxu0
        %v661 = vadd.f32 0.0, %v660
        %v662 = vpop.f32.mrf.mxu0
        %663 = vmatprep.mubr.f32.mxu0 0.0
        %664 = vmatmul.mubr.f32.gmra.mxu0 %v586
        %v665 = vpop.f32.mrf.mxu0
        %v666 = vadd.f32 0.0, %v665
        %v667 = vpop.f32.mrf.mxu0
        %668 = vmatprep.mubr.f32.mxu0 0.0
        %669 = vmatmul.mubr.f32.gmra.mxu0 %v589
        %v670 = vpop.f32.mrf.mxu0
        %v671 = vadd.f32 0.0, %v670
        %v672 = vpop.f32.mrf.mxu0
        %673 = vmatprep.mubr.f32.mxu0 0.0
        %674 = vmatmul.mubr.f32.gmra.mxu0 %v592
        %v675 = vpop.f32.mrf.mxu0
        %v676 = vadd.f32 0.0, %v675
        %v677 = vpop.f32.mrf.mxu0
        %678 = vdwg.mxu0
        %v679 = vmul.f32 %v661, %v661
        %v680 = vmul.f32 %v666, %v666
        %v681 = vmul.f32 %v671, %v671
        %v682 = vmul.f32 %v676, %v676
        %687 = vrot.lane.b32.xlu0 %v679, 1
        %v688 = vpop.permute.xlu0 %687
        %689 = vrot.lane.b32.xlu0 %v680, 1
        %v690 = vpop.permute.xlu0 %689
        %691 = vrot.lane.b32.xlu0 %v681, 1
        %v692 = vpop.permute.xlu0 %691
        %693 = vrot.lane.b32.xlu0 %v682, 1
        %v694 = vpop.permute.xlu0 %693
        %v699 = vsub.f32 %v661, %v688
        %v700 = vsub.f32 %v666, %v690
        %v701 = vsub.f32 %v671, %v692
        %v702 = vsub.f32 %v676, %v694
        %v703 = vadd.f32 %v699, 1e-05
        %v704 = vadd.f32 %v700, 1e-05
        %v705 = vadd.f32 %v701, 1e-05
        %v706 = vadd.f32 %v702, 1e-05
        %v707 = vrsqrt.pop %v703
        %v708 = vrsqrt.pop %v704
        %v709 = vrsqrt.pop %v705
        %v710 = vrsqrt.pop %v706
        %v711 = vld [vmem:[%s2] sm:$0xff]
        %v712 = vld [vmem:[%s2 + $0x8] sm:$0xff]
        %v713 = vld [vmem:[%s2 + $0x10] sm:$0xff]
        %v714 = vld [vmem:[%s2 + $0x18] sm:$0xff]
        %716 = vset.pattern.permute.xlu0 0
        %717 = vperm.xlu0 %716, %v661
        %v718 = vpop.permute.xlu0 %717
        %721 = vset.pattern.permute.xlu0 0
        %722 = vperm.xlu0 %721, %v666
        %v723 = vpop.permute.xlu0 %722
        %726 = vset.pattern.permute.xlu0 0
        %727 = vperm.xlu0 %726, %v671
        %v728 = vpop.permute.xlu0 %727
        %731 = vset.pattern.permute.xlu0 0
        %732 = vperm.xlu0 %731, %v676
        %v733 = vpop.permute.xlu0 %732
        %v735 = vsub.f32 %v460, %v718
        %v736 = vsub.f32 %v461, %v718
        %v737 = vsub.f32 %v462, %v718
        %v738 = vsub.f32 %v463, %v718
        %v739 = vsub.f32 %v464, %v718
        %v740 = vsub.f32 %v465, %v718
        %v741 = vsub.f32 %v466, %v723
        %v742 = vsub.f32 %v467, %v723
        %v743 = vsub.f32 %v468, %v723
        %v744 = vsub.f32 %v469, %v723
        %v745 = vsub.f32 %v470, %v723
        %v746 = vsub.f32 %v471, %v723
        %v747 = vsub.f32 %v472, %v728
        %v748 = vsub.f32 %v473, %v728
        %v749 = vsub.f32 %v474, %v728
        %v750 = vsub.f32 %v475, %v728
        %v751 = vsub.f32 %v476, %v728
        %v752 = vsub.f32 %v477, %v728
        %v753 = vsub.f32 %v478, %v733
        %v754 = vsub.f32 %v479, %v733
        %v755 = vsub.f32 %v480, %v733
        %v756 = vsub.f32 %v481, %v733
        %v757 = vsub.f32 %v482, %v733
        %v758 = vsub.f32 %v483, %v733
        %763 = vrot.lane.b32.xlu0 %v711, 1
        %v764 = vpop.permute.xlu0 %763
        %765 = vrot.lane.b32.xlu0 %v712, 1
        %v766 = vpop.permute.xlu0 %765
        %767 = vrot.lane.b32.xlu0 %v713, 1
        %v768 = vpop.permute.xlu0 %767
        %769 = vrot.lane.b32.xlu0 %v714, 1
        %v770 = vpop.permute.xlu0 %769
        %v775 = vmul.f32 %v707, %v764
        %v776 = vmul.f32 %v708, %v766
        %v777 = vmul.f32 %v709, %v768
        %v778 = vmul.f32 %v710, %v770
        %780 = vset.pattern.permute.xlu0 1
        %781 = vperm.xlu0 %780, %v775
        %v782 = vpop.permute.xlu0 %781
        %785 = vset.pattern.permute.xlu0 1
        %786 = vperm.xlu0 %785, %v776
        %v787 = vpop.permute.xlu0 %786
        %790 = vset.pattern.permute.xlu0 1
        %791 = vperm.xlu0 %790, %v777
        %v792 = vpop.permute.xlu0 %791
        %795 = vset.pattern.permute.xlu0 1
        %796 = vperm.xlu0 %795, %v778
        %v797 = vpop.permute.xlu0 %796
        %v799 = vmul.f32 %v735, %v782
        %v800 = vmul.f32 %v736, %v782
        %v801 = vmul.f32 %v737, %v782
        %v802 = vmul.f32 %v738, %v782
        %v803 = vmul.f32 %v739, %v782
        %v804 = vmul.f32 %v740, %v782
        %v805 = vmul.f32 %v741, %v787
        %v806 = vmul.f32 %v742, %v787
        %v807 = vmul.f32 %v743, %v787
        %v808 = vmul.f32 %v744, %v787
        %v809 = vmul.f32 %v745, %v787
        %v810 = vmul.f32 %v746, %v787
        %v811 = vmul.f32 %v747, %v792
        %v812 = vmul.f32 %v748, %v792
        %v813 = vmul.f32 %v749, %v792
        %v814 = vmul.f32 %v750, %v792
        %v815 = vmul.f32 %v751, %v792
        %v816 = vmul.f32 %v752, %v792
        %v817 = vmul.f32 %v753, %v797
        %v818 = vmul.f32 %v754, %v797
        %v819 = vmul.f32 %v755, %v797
        %v820 = vmul.f32 %v756, %v797
        %v821 = vmul.f32 %v757, %v797
        %v822 = vmul.f32 %v758, %v797
        %823 = vset.pattern.permute.xlu0 1
        %824 = vperm.xlu0 %823, %v711
        %v825 = vpop.permute.xlu0 %824
        %827 = vset.pattern.permute.xlu0 1
        %828 = vperm.xlu0 %827, %v712
        %v829 = vpop.permute.xlu0 %828
        %831 = vset.pattern.permute.xlu0 1
        %832 = vperm.xlu0 %831, %v713
        %v833 = vpop.permute.xlu0 %832
        %835 = vset.pattern.permute.xlu0 1
        %836 = vperm.xlu0 %835, %v714
        %v837 = vpop.permute.xlu0 %836
        %v839 = vadd.f32 %v799, %v825
        %v840 = vadd.f32 %v800, %v825
        %v841 = vadd.f32 %v801, %v825
        %v842 = vadd.f32 %v802, %v825
        %v843 = vadd.f32 %v803, %v825
        %v844 = vadd.f32 %v804, %v825
        %v845 = vadd.f32 %v805, %v829
        %v846 = vadd.f32 %v806, %v829
        %v847 = vadd.f32 %v807, %v829
        %v848 = vadd.f32 %v808, %v829
        %v849 = vadd.f32 %v809, %v829
        %v850 = vadd.f32 %v810, %v829
        %v851 = vadd.f32 %v811, %v833
        %v852 = vadd.f32 %v812, %v833
        %v853 = vadd.f32 %v813, %v833
        %v854 = vadd.f32 %v814, %v833
        %v855 = vadd.f32 %v815, %v833
        %v856 = vadd.f32 %v816, %v833
        %v857 = vadd.f32 %v817, %v837
        %v858 = vadd.f32 %v818, %v837
        %v859 = vadd.f32 %v819, %v837
        %v860 = vadd.f32 %v820, %v837
        %v861 = vadd.f32 %v821, %v837
        %v862 = vadd.f32 %v822, %v837
        %v864 = vlaneseq
        %v865 = vshrl.u32 %v864, 7
        %v866 = vsub.s32 0, %v865
        %v867 = vrot.slane %v291, %v866
        %v868 = vlaneseq
        %v869 = vshrl.u32 %v868, 7
        %v870 = vsub.s32 1, %v869
        %v871 = vrot.slane %v291, %v870
        %v872 = vlaneseq
        %v873 = vshrl.u32 %v872, 7
        %v874 = vsub.s32 2, %v873
        %v875 = vrot.slane %v291, %v874
        %v876 = vlaneseq
        %v877 = vshrl.u32 %v876, 7
        %v878 = vsub.s32 3, %v877
        %v879 = vrot.slane %v291, %v878
        %v880 = vlaneseq
        %v881 = vshrl.u32 %v880, 7
        %v882 = vsub.s32 4, %v881
        %v883 = vrot.slane %v291, %v882
        %v884 = vlaneseq
        %v885 = vshrl.u32 %v884, 7
        %v886 = vsub.s32 5, %v885
        %v887 = vrot.slane %v291, %v886
        %v894 = vmul.f32 %v839, %v867
        %v895 = vmul.f32 %v840, %v871
        %v896 = vmul.f32 %v841, %v875
        %v897 = vmul.f32 %v842, %v879
        %v898 = vmul.f32 %v843, %v883
        %v899 = vmul.f32 %v844, %v887
        %v900 = vmul.f32 %v845, %v867
        %v901 = vmul.f32 %v846, %v871
        %v902 = vmul.f32 %v847, %v875
        %v903 = vmul.f32 %v848, %v879
        %v904 = vmul.f32 %v849, %v883
        %v905 = vmul.f32 %v850, %v887
        %v906 = vmul.f32 %v851, %v867
        %v907 = vmul.f32 %v852, %v871
        %v908 = vmul.f32 %v853, %v875
        %v909 = vmul.f32 %v854, %v879
        %v910 = vmul.f32 %v855, %v883
        %v911 = vmul.f32 %v856, %v887
        %v912 = vmul.f32 %v857, %v867
        %v913 = vmul.f32 %v858, %v871
        %v914 = vmul.f32 %v859, %v875
        %v915 = vmul.f32 %v860, %v879
        %v916 = vmul.f32 %v861, %v883
        %v917 = vmul.f32 %v862, %v887
        %v918 = vpack.c.bf16 %v900, %v894
        %v919 = vpack.c.bf16 %v901, %v895
        %v920 = vpack.c.bf16 %v902, %v896
        %v921 = vpack.c.bf16 %v903, %v897
        %v922 = vpack.c.bf16 %v904, %v898
        %v923 = vpack.c.bf16 %v905, %v899
        %v924 = vpack.c.bf16 %v912, %v906
        %v925 = vpack.c.bf16 %v913, %v907
        %v926 = vpack.c.bf16 %v914, %v908
        %v927 = vpack.c.bf16 %v915, %v909
        %v928 = vpack.c.bf16 %v916, %v910
        %v929 = vpack.c.bf16 %v917, %v911
        %v942 = vunpack.c.l.b16 %v918
        %v943 = vunpack.c.l.b16 %v919
        %v944 = vunpack.c.l.b16 %v920
        %v945 = vunpack.c.l.b16 %v921
        %v946 = vunpack.c.l.b16 %v922
        %v947 = vunpack.c.l.b16 %v923
        %v948 = vunpack.c.h.b16 %v918
        %v949 = vunpack.c.h.b16 %v919
        %v950 = vunpack.c.h.b16 %v920
        %v951 = vunpack.c.h.b16 %v921
        %v952 = vunpack.c.h.b16 %v922
        %v953 = vunpack.c.h.b16 %v923
        %v954 = vunpack.c.l.b16 %v924
        %v955 = vunpack.c.l.b16 %v925
        %v956 = vunpack.c.l.b16 %v926
        %v957 = vunpack.c.l.b16 %v927
        %v958 = vunpack.c.l.b16 %v928
        %v959 = vunpack.c.l.b16 %v929
        %v960 = vunpack.c.h.b16 %v924
        %v961 = vunpack.c.h.b16 %v925
        %v962 = vunpack.c.h.b16 %v926
        %v963 = vunpack.c.h.b16 %v927
        %v964 = vunpack.c.h.b16 %v928
        %v965 = vunpack.c.h.b16 %v929
        %v966 = vpack.c.b16 %v943, %v942
        %v967 = vpack.c.b16 %v945, %v944
        %v968 = vpack.c.b16 %v947, %v946
        %v969 = vpack.c.b16 %v949, %v948
        %v970 = vpack.c.b16 %v951, %v950
        %v971 = vpack.c.b16 %v953, %v952
        %v972 = vpack.c.b16 %v955, %v954
        %v973 = vpack.c.b16 %v957, %v956
        %v974 = vpack.c.b16 %v959, %v958
        %v975 = vpack.c.b16 %v961, %v960
        %v976 = vpack.c.b16 %v963, %v962
        %v977 = vpack.c.b16 %v965, %v964
        %990 = vst [vmem:[#allocation2] sm:$0xff] %v966
        %991 = vst [vmem:[#allocation2 + $0x8] sm:$0xff] %v967
        %992 = vst [vmem:[#allocation2 + $0x10] sm:$0xff] %v968
        %993 = vst [vmem:[#allocation2 + $0x1c] sm:$0xff] %v969
        %994 = vst [vmem:[#allocation2 + $0x24] sm:$0xff] %v970
        %995 = vst [vmem:[#allocation2 + $0x2c] sm:$0xff] %v971
        %996 = vst [vmem:[#allocation2 + $0x38] sm:$0xff] %v972
        %997 = vst [vmem:[#allocation2 + $0x40] sm:$0xff] %v973
        %998 = vst [vmem:[#allocation2 + $0x48] sm:$0xff] %v974
        %999 = vst [vmem:[#allocation2 + $0x54] sm:$0xff] %v975
        %1000 = vst [vmem:[#allocation2 + $0x5c] sm:$0xff] %v976
        %1001 = vst [vmem:[#allocation2 + $0x64] sm:$0xff] %v977
        %v1002 = vld [vmem:[#allocation2] sm:$0xff]
        %v1003 = vld [vmem:[#allocation2 + $0x8] sm:$0xff]
        %v1004 = vld [vmem:[#allocation2 + $0x10] sm:$0xff]
        %v1005 = vld [vmem:[#allocation2 + $0x1c] sm:$0xff]
        %v1006 = vld [vmem:[#allocation2 + $0x24] sm:$0xff]
        %v1007 = vld [vmem:[#allocation2 + $0x2c] sm:$0xff]
        %v1008 = vld [vmem:[#allocation2 + $0x38] sm:$0xff]
        %v1009 = vld [vmem:[#allocation2 + $0x40] sm:$0xff]
        %v1010 = vld [vmem:[#allocation2 + $0x48] sm:$0xff]
        %v1011 = vld [vmem:[#allocation2 + $0x54] sm:$0xff]
        %v1012 = vld [vmem:[#allocation2 + $0x5c] sm:$0xff]
        %v1013 = vld [vmem:[#allocation2 + $0x64] sm:$0xff]
        %1014 = vst [vmem:[#allocation3] sm:$0xff] %v1002
        %1015 = vst [vmem:[#allocation3 + $0x8] sm:$0xff] %v1003
        %1016 = vst [vmem:[#allocation3 + $0x10] sm:$0xff] %v1004
        %1017 = vst [vmem:[#allocation3 + $0x18] sm:$0xff] %v1005
        %1018 = vst [vmem:[#allocation3 + $0x20] sm:$0xff] %v1006
        %1019 = vst [vmem:[#allocation3 + $0x28] sm:$0xff] %v1007
        %1020 = vst [vmem:[#allocation3 + $0x30] sm:$0xff] %v1008
        %1021 = vst [vmem:[#allocation3 + $0x38] sm:$0xff] %v1009
        %1022 = vst [vmem:[#allocation3 + $0x40] sm:$0xff] %v1010
        %1023 = vst [vmem:[#allocation3 + $0x48] sm:$0xff] %v1011
        %1024 = vst [vmem:[#allocation3 + $0x50] sm:$0xff] %v1012
        %1025 = vst [vmem:[#allocation3 + $0x58] sm:$0xff] %v1013
        %v1026 = vld [vmem:[#allocation2] sm:$0xff]
        %v1027 = vld [vmem:[#allocation2 + $0x8] sm:$0xff]
        %v1028 = vld [vmem:[#allocation2 + $0x10] sm:$0xff]
        %v1029 = vld [vmem:[#allocation2 + $0x18] sm:$0xf]
        %v1030 = vld [vmem:[#allocation2 + $0x1c] sm:$0xff]
        %v1031 = vld [vmem:[#allocation2 + $0x24] sm:$0xff]
        %v1032 = vld [vmem:[#allocation2 + $0x2c] sm:$0xff]
        %v1033 = vld [vmem:[#allocation2 + $0x34] sm:$0xf]
        %v1034 = vld [vmem:[#allocation2 + $0x38] sm:$0xff]
        %v1035 = vld [vmem:[#allocation2 + $0x40] sm:$0xff]
        %v1036 = vld [vmem:[#allocation2 + $0x48] sm:$0xff]
        %v1037 = vld [vmem:[#allocation2 + $0x50] sm:$0xf]
        %v1038 = vld [vmem:[#allocation2 + $0x54] sm:$0xff]
        %v1039 = vld [vmem:[#allocation2 + $0x5c] sm:$0xff]
        %v1040 = vld [vmem:[#allocation2 + $0x64] sm:$0xff]
        %v1041 = vld [vmem:[#allocation2 + $0x6c] sm:$0xf]
        %1058 = vrot.lane.b32.xlu0 %v1026, 127
        %v1059 = vpop.permute.xlu0 %1058
        %1060 = vrot.lane.b32.xlu0 %v1027, 127
        %v1061 = vpop.permute.xlu0 %1060
        %1062 = vrot.lane.b32.xlu0 %v1028, 127
        %v1063 = vpop.permute.xlu0 %1062
        %1064 = vrot.lane.b32.xlu0 %v1029, 127
        %v1065 = vpop.permute.xlu0 %1064
        %1066 = vrot.lane.b32.xlu0 %v1030, 127
        %v1067 = vpop.permute.xlu0 %1066
        %1068 = vrot.lane.b32.xlu0 %v1031, 127
        %v1069 = vpop.permute.xlu0 %1068
        %1070 = vrot.lane.b32.xlu0 %v1032, 127
        %v1071 = vpop.permute.xlu0 %1070
        %1072 = vrot.lane.b32.xlu0 %v1033, 127
        %v1073 = vpop.permute.xlu0 %1072
        %1074 = vrot.lane.b32.xlu0 %v1034, 127
        %v1075 = vpop.permute.xlu0 %1074
        %1076 = vrot.lane.b32.xlu0 %v1035, 127
        %v1077 = vpop.permute.xlu0 %1076
        %1078 = vrot.lane.b32.xlu0 %v1036, 127
        %v1079 = vpop.permute.xlu0 %1078
        %1080 = vrot.lane.b32.xlu0 %v1037, 127
        %v1081 = vpop.permute.xlu0 %1080
        %1082 = vrot.lane.b32.xlu0 %v1038, 127
        %v1083 = vpop.permute.xlu0 %1082
        %1084 = vrot.lane.b32.xlu0 %v1039, 127
        %v1085 = vpop.permute.xlu0 %1084
        %1086 = vrot.lane.b32.xlu0 %v1040, 127
        %v1087 = vpop.permute.xlu0 %1086
        %1088 = vrot.lane.b32.xlu0 %v1041, 127
        %v1089 = vpop.permute.xlu0 %1088
        %v1090 = vrot.slane %v1059, 4
        %v1091 = vrot.slane %v1061, 4
        %v1092 = vrot.slane %v1063, 4
        %v1093 = vrot.slane %v1065, 4
        %v1094 = vrot.slane %v1067, 4
        %v1095 = vrot.slane %v1069, 4
        %v1096 = vrot.slane %v1071, 4
        %v1097 = vrot.slane %v1073, 4
        %v1098 = vrot.slane %v1075, 4
        %v1099 = vrot.slane %v1077, 4
        %v1100 = vrot.slane %v1079, 4
        %v1101 = vrot.slane %v1081, 4
        %v1102 = vrot.slane %v1083, 4
        %v1103 = vrot.slane %v1085, 4
        %v1104 = vrot.slane %v1087, 4
        %v1105 = vrot.slane %v1089, 4
        %vm1106 = vcmask 1043456
        %v1107 = vsel %vm1106, %v1090, %v1091
        %vm1108 = vcmask 1039360
        %v1109 = vsel %vm1108, %v1059, %v1107
        %v1110 = vsel %vm1106, %v1091, %v1092
        %v1111 = vsel %vm1108, %v1061, %v1110
        %v1112 = vsel %vm1106, %v1092, %v1093
        %v1113 = vsel %vm1108, %v1063, %v1112
        %v1114 = vsel %vm1106, %v1094, %v1095
        %v1115 = vsel %vm1108, %v1067, %v1114
        %v1116 = vsel %vm1106, %v1095, %v1096
        %v1117 = vsel %vm1108, %v1069, %v1116
        %v1118 = vsel %vm1106, %v1096, %v1097
        %v1119 = vsel %vm1108, %v1071, %v1118
        %v1120 = vsel %vm1106, %v1098, %v1099
        %v1121 = vsel %vm1108, %v1075, %v1120
        %v1122 = vsel %vm1106, %v1099, %v1100
        %v1123 = vsel %vm1108, %v1077, %v1122
        %v1124 = vsel %vm1106, %v1100, %v1101
        %v1125 = vsel %vm1108, %v1079, %v1124
        %v1126 = vsel %vm1106, %v1102, %v1103
        %v1127 = vsel %vm1108, %v1083, %v1126
        %v1128 = vsel %vm1106, %v1103, %v1104
        %v1129 = vsel %vm1108, %v1085, %v1128
        %v1130 = vsel %vm1106, %v1104, %v1105
        %v1131 = vsel %vm1108, %v1087, %v1130
        %1144 = vst [vmem:[#allocation3 + $0x60] sm:$0xff] %v1109
        %1145 = vst [vmem:[#allocation3 + $0x68] sm:$0xff] %v1111
        %1146 = vst [vmem:[#allocation3 + $0x70] sm:$0xff] %v1113
        %1147 = vst [vmem:[#allocation3 + $0x78] sm:$0xff] %v1115
        %1148 = vst [vmem:[#allocation3 + $0x80] sm:$0xff] %v1117
        %1149 = vst [vmem:[#allocation3 + $0x88] sm:$0xff] %v1119
        %1150 = vst [vmem:[#allocation3 + $0x90] sm:$0xff] %v1121
        %1151 = vst [vmem:[#allocation3 + $0x98] sm:$0xff] %v1123
        %1152 = vst [vmem:[#allocation3 + $0xa0] sm:$0xff] %v1125
        %1153 = vst [vmem:[#allocation3 + $0xa8] sm:$0xff] %v1127
        %1154 = vst [vmem:[#allocation3 + $0xb0] sm:$0xff] %v1129
        %1155 = vst [vmem:[#allocation3 + $0xb8] sm:$0xff] %v1131
        %v1156 = vld [vmem:[#allocation2] sm:$0xff]
        %v1157 = vld [vmem:[#allocation2 + $0x8] sm:$0xff]
        %v1158 = vld [vmem:[#allocation2 + $0x10] sm:$0xff]
        %v1159 = vld [vmem:[#allocation2 + $0x18] sm:$0xf]
        %v1160 = vld [vmem:[#allocation2 + $0x1c] sm:$0xff]
        %v1161 = vld [vmem:[#allocation2 + $0x24] sm:$0xff]
        %v1162 = vld [vmem:[#allocation2 + $0x2c] sm:$0xff]
        %v1163 = vld [vmem:[#allocation2 + $0x34] sm:$0xf]
        %v1164 = vld [vmem:[#allocation2 + $0x38] sm:$0xff]
        %v1165 = vld [vmem:[#allocation2 + $0x40] sm:$0xff]
        %v1166 = vld [vmem:[#allocation2 + $0x48] sm:$0xff]
        %v1167 = vld [vmem:[#allocation2 + $0x50] sm:$0xf]
        %v1168 = vld [vmem:[#allocation2 + $0x54] sm:$0xff]
        %v1169 = vld [vmem:[#allocation2 + $0x5c] sm:$0xff]
        %v1170 = vld [vmem:[#allocation2 + $0x64] sm:$0xff]
        %v1171 = vld [vmem:[#allocation2 + $0x6c] sm:$0xf]
        %1188 = vrot.lane.b32.xlu0 %v1156, 119
        %v1189 = vpop.permute.xlu0 %1188
        %1190 = vrot.lane.b32.xlu0 %v1157, 119
        %v1191 = vpop.permute.xlu0 %1190
        %1192 = vrot.lane.b32.xlu0 %v1158, 119
        %v1193 = vpop.permute.xlu0 %1192
        %1194 = vrot.lane.b32.xlu0 %v1159, 119
        %v1195 = vpop.permute.xlu0 %1194
        %1196 = vrot.lane.b32.xlu0 %v1160, 119
        %v1197 = vpop.permute.xlu0 %1196
        %1198 = vrot.lane.b32.xlu0 %v1161, 119
        %v1199 = vpop.permute.xlu0 %1198
        %1200 = vrot.lane.b32.xlu0 %v1162, 119
        %v1201 = vpop.permute.xlu0 %1200
        %1202 = vrot.lane.b32.xlu0 %v1163, 119
        %v1203 = vpop.permute.xlu0 %1202
        %1204 = vrot.lane.b32.xlu0 %v1164, 119
        %v1205 = vpop.permute.xlu0 %1204
        %1206 = vrot.lane.b32.xlu0 %v1165, 119
        %v1207 = vpop.permute.xlu0 %1206
        %1208 = vrot.lane.b32.xlu0 %v1166, 119
        %v1209 = vpop.permute.xlu0 %1208
        %1210 = vrot.lane.b32.xlu0 %v1167, 119
        %v1211 = vpop.permute.xlu0 %1210
        %1212 = vrot.lane.b32.xlu0 %v1168, 119
        %v1213 = vpop.permute.xlu0 %1212
        %1214 = vrot.lane.b32.xlu0 %v1169, 119
        %v1215 = vpop.permute.xlu0 %1214
        %1216 = vrot.lane.b32.xlu0 %v1170, 119
        %v1217 = vpop.permute.xlu0 %1216
        %1218 = vrot.lane.b32.xlu0 %v1171, 119
        %v1219 = vpop.permute.xlu0 %1218
        %v1220 = vrot.slane %v1189, 4
        %v1221 = vrot.slane %v1191, 4
        %v1222 = vrot.slane %v1193, 4
        %v1223 = vrot.slane %v1195, 4
        %v1224 = vrot.slane %v1197, 4
        %v1225 = vrot.slane %v1199, 4
        %v1226 = vrot.slane %v1201, 4
        %v1227 = vrot.slane %v1203, 4
        %v1228 = vrot.slane %v1205, 4
        %v1229 = vrot.slane %v1207, 4
        %v1230 = vrot.slane %v1209, 4
        %v1231 = vrot.slane %v1211, 4
        %v1232 = vrot.slane %v1213, 4
        %v1233 = vrot.slane %v1215, 4
        %v1234 = vrot.slane %v1217, 4
        %v1235 = vrot.slane %v1219, 4
        %v1236 = vsel %vm1106, %v1220, %v1221
        %vm1237 = vcmask 973824
        %v1238 = vsel %vm1237, %v1189, %v1236
        %v1239 = vsel %vm1106, %v1221, %v1222
        %v1240 = vsel %vm1237, %v1191, %v1239
        %v1241 = vsel %vm1106, %v1222, %v1223
        %v1242 = vsel %vm1237, %v1193, %v1241
        %v1243 = vsel %vm1106, %v1224, %v1225
        %v1244 = vsel %vm1237, %v1197, %v1243
        %v1245 = vsel %vm1106, %v1225, %v1226
        %v1246 = vsel %vm1237, %v1199, %v1245
        %v1247 = vsel %vm1106, %v1226, %v1227
        %v1248 = vsel %vm1237, %v1201, %v1247
        %v1249 = vsel %vm1106, %v1228, %v1229
        %v1250 = vsel %vm1237, %v1205, %v1249
        %v1251 = vsel %vm1106, %v1229, %v1230
        %v1252 = vsel %vm1237, %v1207, %v1251
        %v1253 = vsel %vm1106, %v1230, %v1231
        %v1254 = vsel %vm1237, %v1209, %v1253
        %v1255 = vsel %vm1106, %v1232, %v1233
        %v1256 = vsel %vm1237, %v1213, %v1255
        %v1257 = vsel %vm1106, %v1233, %v1234
        %v1258 = vsel %vm1237, %v1215, %v1257
        %v1259 = vsel %vm1106, %v1234, %v1235
        %v1260 = vsel %vm1237, %v1217, %v1259
        %1273 = vst [vmem:[#allocation3 + $0xc0] sm:$0xff] %v1238
        %1274 = vst [vmem:[#allocation3 + $0xc8] sm:$0xff] %v1240
        %1275 = vst [vmem:[#allocation3 + $0xd0] sm:$0xff] %v1242
        %1276 = vst [vmem:[#allocation3 + $0xd8] sm:$0xff] %v1244
        %1277 = vst [vmem:[#allocation3 + $0xe0] sm:$0xff] %v1246
        %1278 = vst [vmem:[#allocation3 + $0xe8] sm:$0xff] %v1248
        %1279 = vst [vmem:[#allocation3 + $0xf0] sm:$0xff] %v1250
        %1280 = vst [vmem:[#allocation3 + $0xf8] sm:$0xff] %v1252
        %1281 = vst [vmem:[#allocation3 + $0x100] sm:$0xff] %v1254
        %1282 = vst [vmem:[#allocation3 + $0x108] sm:$0xff] %v1256
        %1283 = vst [vmem:[#allocation3 + $0x110] sm:$0xff] %v1258
        %1284 = vst [vmem:[#allocation3 + $0x118] sm:$0xff] %v1260
        %v1285 = vld [vmem:[#allocation2] sm:$0xff]
        %v1286 = vld [vmem:[#allocation2 + $0x8] sm:$0xff]
        %v1287 = vld [vmem:[#allocation2 + $0x10] sm:$0xff]
        %v1288 = vld [vmem:[#allocation2 + $0x18] sm:$0xf]
        %v1289 = vld [vmem:[#allocation2 + $0x1c] sm:$0xff]
        %v1290 = vld [vmem:[#allocation2 + $0x24] sm:$0xff]
        %v1291 = vld [vmem:[#allocation2 + $0x2c] sm:$0xff]
        %v1292 = vld [vmem:[#allocation2 + $0x34] sm:$0xf]
        %v1293 = vld [vmem:[#allocation2 + $0x38] sm:$0xff]
        %v1294 = vld [vmem:[#allocation2 + $0x40] sm:$0xff]
        %v1295 = vld [vmem:[#allocation2 + $0x48] sm:$0xff]
        %v1296 = vld [vmem:[#allocation2 + $0x50] sm:$0xf]
        %v1297 = vld [vmem:[#allocation2 + $0x54] sm:$0xff]
        %v1298 = vld [vmem:[#allocation2 + $0x5c] sm:$0xff]
        %v1299 = vld [vmem:[#allocation2 + $0x64] sm:$0xff]
        %v1300 = vld [vmem:[#allocation2 + $0x6c] sm:$0xf]
        %1317 = vrot.lane.b32.xlu0 %v1285, 118
        %v1318 = vpop.permute.xlu0 %1317
        %1319 = vrot.lane.b32.xlu0 %v1286, 118
        %v1320 = vpop.permute.xlu0 %1319
        %1321 = vrot.lane.b32.xlu0 %v1287, 118
        %v1322 = vpop.permute.xlu0 %1321
        %1323 = vrot.lane.b32.xlu0 %v1288, 118
        %v1324 = vpop.permute.xlu0 %1323
        %1325 = vrot.lane.b32.xlu0 %v1289, 118
        %v1326 = vpop.permute.xlu0 %1325
        %1327 = vrot.lane.b32.xlu0 %v1290, 118
        %v1328 = vpop.permute.xlu0 %1327
        %1329 = vrot.lane.b32.xlu0 %v1291, 118
        %v1330 = vpop.permute.xlu0 %1329
        %1331 = vrot.lane.b32.xlu0 %v1292, 118
        %v1332 = vpop.permute.xlu0 %1331
        %1333 = vrot.lane.b32.xlu0 %v1293, 118
        %v1334 = vpop.permute.xlu0 %1333
        %1335 = vrot.lane.b32.xlu0 %v1294, 118
        %v1336 = vpop.permute.xlu0 %1335
        %1337 = vrot.lane.b32.xlu0 %v1295, 118
        %v1338 = vpop.permute.xlu0 %1337
        %1339 = vrot.lane.b32.xlu0 %v1296, 118
        %v1340 = vpop.permute.xlu0 %1339
        %1341 = vrot.lane.b32.xlu0 %v1297, 118
        %v1342 = vpop.permute.xlu0 %1341
        %1343 = vrot.lane.b32.xlu0 %v1298, 118
        %v1344 = vpop.permute.xlu0 %1343
        %1345 = vrot.lane.b32.xlu0 %v1299, 118
        %v1346 = vpop.permute.xlu0 %1345
        %1347 = vrot.lane.b32.xlu0 %v1300, 118
        %v1348 = vpop.permute.xlu0 %1347
        %v1349 = vrot.slane %v1318, 4
        %v1350 = vrot.slane %v1320, 4
        %v1351 = vrot.slane %v1322, 4
        %v1352 = vrot.slane %v1324, 4
        %v1353 = vrot.slane %v1326, 4
        %v1354 = vrot.slane %v1328, 4
        %v1355 = vrot.slane %v1330, 4
        %v1356 = vrot.slane %v1332, 4
        %v1357 = vrot.slane %v1334, 4
        %v1358 = vrot.slane %v1336, 4
        %v1359 = vrot.slane %v1338, 4
        %v1360 = vrot.slane %v1340, 4
        %v1361 = vrot.slane %v1342, 4
        %v1362 = vrot.slane %v1344, 4
        %v1363 = vrot.slane %v1346, 4
        %v1364 = vrot.slane %v1348, 4
        %v1365 = vsel %vm1106, %v1349, %v1350
        %vm1366 = vcmask 965632
        %v1367 = vsel %vm1366, %v1318, %v1365
        %v1368 = vsel %vm1106, %v1350, %v1351
        %v1369 = vsel %vm1366, %v1320, %v1368
        %v1370 = vsel %vm1106, %v1351, %v1352
        %v1371 = vsel %vm1366, %v1322, %v1370
        %v1372 = vsel %vm1106, %v1353, %v1354
        %v1373 = vsel %vm1366, %v1326, %v1372
        %v1374 = vsel %vm1106, %v1354, %v1355
        %v1375 = vsel %vm1366, %v1328, %v1374
        %v1376 = vsel %vm1106, %v1355, %v1356
        %v1377 = vsel %vm1366, %v1330, %v1376
        %v1378 = vsel %vm1106, %v1357, %v1358
        %v1379 = vsel %vm1366, %v1334, %v1378
        %v1380 = vsel %vm1106, %v1358, %v1359
        %v1381 = vsel %vm1366, %v1336, %v1380
        %v1382 = vsel %vm1106, %v1359, %v1360
        %v1383 = vsel %vm1366, %v1338, %v1382
        %v1384 = vsel %vm1106, %v1361, %v1362
        %v1385 = vsel %vm1366, %v1342, %v1384
        %v1386 = vsel %vm1106, %v1362, %v1363
        %v1387 = vsel %vm1366, %v1344, %v1386
        %v1388 = vsel %vm1106, %v1363, %v1364
        %v1389 = vsel %vm1366, %v1346, %v1388
        %1402 = vst [vmem:[#allocation3 + $0x120] sm:$0xff] %v1367
        %1403 = vst [vmem:[#allocation3 + $0x128] sm:$0xff] %v1369
        %1404 = vst [vmem:[#allocation3 + $0x130] sm:$0xff] %v1371
        %1405 = vst [vmem:[#allocation3 + $0x138] sm:$0xff] %v1373
        %1406 = vst [vmem:[#allocation3 + $0x140] sm:$0xff] %v1375
        %1407 = vst [vmem:[#allocation3 + $0x148] sm:$0xff] %v1377
        %1408 = vst [vmem:[#allocation3 + $0x150] sm:$0xff] %v1379
        %1409 = vst [vmem:[#allocation3 + $0x158] sm:$0xff] %v1381
        %1410 = vst [vmem:[#allocation3 + $0x160] sm:$0xff] %v1383
        %1411 = vst [vmem:[#allocation3 + $0x168] sm:$0xff] %v1385
        %1412 = vst [vmem:[#allocation3 + $0x170] sm:$0xff] %v1387
        %1413 = vst [vmem:[#allocation3 + $0x178] sm:$0xff] %v1389
        %v1414 = vld [vmem:[%s4] sm:$0xf]
        %v1415 = vld [vmem:[%s4 + $0x4] sm:$0xf]
        %v1416 = vld [vmem:[%s4 + $0x8] sm:$0xf]
        %v1417 = vld [vmem:[%s4 + $0xc] sm:$0xf]
        %v1418 = vld [vmem:[#allocation3] sm:$0xff]
        %v1419 = vld [vmem:[#allocation3 + $0x8] sm:$0xff]
        %v1420 = vld [vmem:[#allocation3 + $0x10] sm:$0xff]
        %v1421 = vld [vmem:[#allocation3 + $0x18] sm:$0xff]
        %v1422 = vld [vmem:[#allocation3 + $0x20] sm:$0xff]
        %v1423 = vld [vmem:[#allocation3 + $0x28] sm:$0xff]
        %v1424 = vld [vmem:[#allocation3 + $0x30] sm:$0xff]
        %v1425 = vld [vmem:[#allocation3 + $0x38] sm:$0xff]
        %v1426 = vld [vmem:[#allocation3 + $0x40] sm:$0xff]
        %v1427 = vld [vmem:[#allocation3 + $0x48] sm:$0xff]
        %v1428 = vld [vmem:[#allocation3 + $0x50] sm:$0xff]
        %v1429 = vld [vmem:[#allocation3 + $0x58] sm:$0xff]
        %v1430 = vld [vmem:[#allocation3 + $0x60] sm:$0xff]
        %v1431 = vld [vmem:[#allocation3 + $0x68] sm:$0xff]
        %v1432 = vld [vmem:[#allocation3 + $0x70] sm:$0xff]
        %v1433 = vld [vmem:[#allocation3 + $0x78] sm:$0xff]
        %v1434 = vld [vmem:[#allocation3 + $0x80] sm:$0xff]
        %v1435 = vld [vmem:[#allocation3 + $0x88] sm:$0xff]
        %v1436 = vld [vmem:[#allocation3 + $0x90] sm:$0xff]
        %v1437 = vld [vmem:[#allocation3 + $0x98] sm:$0xff]
        %v1438 = vld [vmem:[#allocation3 + $0xa0] sm:$0xff]
        %v1439 = vld [vmem:[#allocation3 + $0xa8] sm:$0xff]
        %v1440 = vld [vmem:[#allocation3 + $0xb0] sm:$0xff]
        %v1441 = vld [vmem:[#allocation3 + $0xb8] sm:$0xff]
        %v1442 = vld [vmem:[#allocation3 + $0xc0] sm:$0xff]
        %v1443 = vld [vmem:[#allocation3 + $0xc8] sm:$0xff]
        %v1444 = vld [vmem:[#allocation3 + $0xd0] sm:$0xff]
        %v1445 = vld [vmem:[#allocation3 + $0xd8] sm:$0xff]
        %v1446 = vld [vmem:[#allocation3 + $0xe0] sm:$0xff]
        %v1447 = vld [vmem:[#allocation3 + $0xe8] sm:$0xff]
        %v1448 = vld [vmem:[#allocation3 + $0xf0] sm:$0xff]
        %v1449 = vld [vmem:[#allocation3 + $0xf8] sm:$0xff]
        %v1450 = vld [vmem:[#allocation3 + $0x100] sm:$0xff]
        %v1451 = vld [vmem:[#allocation3 + $0x108] sm:$0xff]
        %v1452 = vld [vmem:[#allocation3 + $0x110] sm:$0xff]
        %v1453 = vld [vmem:[#allocation3 + $0x118] sm:$0xff]
        %v1454 = vld [vmem:[#allocation3 + $0x120] sm:$0xff]
        %v1455 = vld [vmem:[#allocation3 + $0x128] sm:$0xff]
        %v1456 = vld [vmem:[#allocation3 + $0x130] sm:$0xff]
        %v1457 = vld [vmem:[#allocation3 + $0x138] sm:$0xff]
        %v1458 = vld [vmem:[#allocation3 + $0x140] sm:$0xff]
        %v1459 = vld [vmem:[#allocation3 + $0x148] sm:$0xff]
        %v1460 = vld [vmem:[#allocation3 + $0x150] sm:$0xff]
        %v1461 = vld [vmem:[#allocation3 + $0x158] sm:$0xff]
        %v1462 = vld [vmem:[#allocation3 + $0x160] sm:$0xff]
        %v1463 = vld [vmem:[#allocation3 + $0x168] sm:$0xff]
        %v1464 = vld [vmem:[#allocation3 + $0x170] sm:$0xff]
        %v1465 = vld [vmem:[#allocation3 + $0x178] sm:$0xff]
        %v1470 = vunpack.c.l.b16 %v1414
        %v1471 = vunpack.c.l.b16 %v1415
        %v1472 = vunpack.c.l.b16 %v1416
        %v1473 = vunpack.c.l.b16 %v1417
        %v1474 = vpack.c.b16 %v1471, %v1470
        %v1475 = vpack.c.b16 %v1473, %v1472
        %v1526 = vunpack.c.l.b16 %v1418
        %v1527 = vunpack.c.h.b16 %v1418
        %v1528 = vunpack.c.l.b16 %v1419
        %v1529 = vunpack.c.h.b16 %v1419
        %v1530 = vunpack.c.l.b16 %v1420
        %v1531 = vunpack.c.h.b16 %v1420
        %v1532 = vunpack.c.l.b16 %v1421
        %v1533 = vunpack.c.h.b16 %v1421
        %v1534 = vunpack.c.l.b16 %v1422
        %v1535 = vunpack.c.h.b16 %v1422
        %v1536 = vunpack.c.l.b16 %v1423
        %v1537 = vunpack.c.h.b16 %v1423
        %v1538 = vunpack.c.l.b16 %v1424
        %v1539 = vunpack.c.h.b16 %v1424
        %v1540 = vunpack.c.l.b16 %v1425
        %v1541 = vunpack.c.h.b16 %v1425
        %v1542 = vunpack.c.l.b16 %v1426
        %v1543 = vunpack.c.h.b16 %v1426
        %v1544 = vunpack.c.l.b16 %v1427
        %v1545 = vunpack.c.h.b16 %v1427
        %v1546 = vunpack.c.l.b16 %v1428
        %v1547 = vunpack.c.h.b16 %v1428
        %v1548 = vunpack.c.l.b16 %v1429
        %v1549 = vunpack.c.h.b16 %v1429
        %v1550 = vunpack.c.l.b16 %v1430
        %v1551 = vunpack.c.h.b16 %v1430
        %v1552 = vunpack.c.l.b16 %v1431
        %v1553 = vunpack.c.h.b16 %v1431
        %v1554 = vunpack.c.l.b16 %v1432
        %v1555 = vunpack.c.h.b16 %v1432
        %v1556 = vunpack.c.l.b16 %v1433
        %v1557 = vunpack.c.h.b16 %v1433
        %v1558 = vunpack.c.l.b16 %v1434
        %v1559 = vunpack.c.h.b16 %v1434
        %v1560 = vunpack.c.l.b16 %v1435
        %v1561 = vunpack.c.h.b16 %v1435
        %v1562 = vunpack.c.l.b16 %v1436
        %v1563 = vunpack.c.h.b16 %v1436
        %v1564 = vunpack.c.l.b16 %v1437
        %v1565 = vunpack.c.h.b16 %v1437
        %v1566 = vunpack.c.l.b16 %v1438
        %v1567 = vunpack.c.h.b16 %v1438
        %v1568 = vunpack.c.l.b16 %v1439
        %v1569 = vunpack.c.h.b16 %v1439
        %v1570 = vunpack.c.l.b16 %v1440
        %v1571 = vunpack.c.h.b16 %v1440
        %v1572 = vunpack.c.l.b16 %v1441
        %v1573 = vunpack.c.h.b16 %v1441
        %v1574 = vunpack.c.l.b16 %v1442
        %v1575 = vunpack.c.h.b16 %v1442
        %v1576 = vunpack.c.l.b16 %v1443
        %v1577 = vunpack.c.h.b16 %v1443
        %v1578 = vunpack.c.l.b16 %v1444
        %v1579 = vunpack.c.h.b16 %v1444
        %v1580 = vunpack.c.l.b16 %v1445
        %v1581 = vunpack.c.h.b16 %v1445
        %v1582 = vunpack.c.l.b16 %v1446
        %v1583 = vunpack.c.h.b16 %v1446
        %v1584 = vunpack.c.l.b16 %v1447
        %v1585 = vunpack.c.h.b16 %v1447
        %v1586 = vunpack.c.l.b16 %v1448
        %v1587 = vunpack.c.h.b16 %v1448
        %v1588 = vunpack.c.l.b16 %v1449
        %v1589 = vunpack.c.h.b16 %v1449
        %v1590 = vunpack.c.l.b16 %v1450
        %v1591 = vunpack.c.h.b16 %v1450
        %v1592 = vunpack.c.l.b16 %v1451
        %v1593 = vunpack.c.h.b16 %v1451
        %v1594 = vunpack.c.l.b16 %v1452
        %v1595 = vunpack.c.h.b16 %v1452
        %v1596 = vunpack.c.l.b16 %v1453
        %v1597 = vunpack.c.h.b16 %v1453
        %v1598 = vunpack.c.l.b16 %v1454
        %v1599 = vunpack.c.h.b16 %v1454
        %v1600 = vunpack.c.l.b16 %v1455
        %v1601 = vunpack.c.h.b16 %v1455
        %v1602 = vunpack.c.l.b16 %v1456
        %v1603 = vunpack.c.h.b16 %v1456
        %v1604 = vunpack.c.l.b16 %v1457
        %v1605 = vunpack.c.h.b16 %v1457
        %v1606 = vunpack.c.l.b16 %v1458
        %v1607 = vunpack.c.h.b16 %v1458
        %v1608 = vunpack.c.l.b16 %v1459
        %v1609 = vunpack.c.h.b16 %v1459
        %v1610 = vunpack.c.l.b16 %v1460
        %v1611 = vunpack.c.h.b16 %v1460
        %v1612 = vunpack.c.l.b16 %v1461
        %v1613 = vunpack.c.h.b16 %v1461
        %v1614 = vunpack.c.l.b16 %v1462
        %v1615 = vunpack.c.h.b16 %v1462
        %v1616 = vunpack.c.l.b16 %v1463
        %v1617 = vunpack.c.h.b16 %v1463
        %v1618 = vunpack.c.l.b16 %v1464
        %v1619 = vunpack.c.h.b16 %v1464
        %v1620 = vunpack.c.l.b16 %v1465
        %v1621 = vunpack.c.h.b16 %v1465
        %v1622 = vpack.c.b16 %v1532, %v1526
        %v1623 = vpack.c.b16 %v1533, %v1527
        %v1624 = vpack.c.b16 %v1534, %v1528
        %v1625 = vpack.c.b16 %v1535, %v1529
        %v1626 = vpack.c.b16 %v1536, %v1530
        %v1627 = vpack.c.b16 %v1537, %v1531
        %v1628 = vpack.c.b16 %v1544, %v1538
        %v1629 = vpack.c.b16 %v1545, %v1539
        %v1630 = vpack.c.b16 %v1546, %v1540
        %v1631 = vpack.c.b16 %v1547, %v1541
        %v1632 = vpack.c.b16 %v1548, %v1542
        %v1633 = vpack.c.b16 %v1549, %v1543
        %v1634 = vpack.c.b16 %v1556, %v1550
        %v1635 = vpack.c.b16 %v1557, %v1551
        %v1636 = vpack.c.b16 %v1558, %v1552
        %v1637 = vpack.c.b16 %v1559, %v1553
        %v1638 = vpack.c.b16 %v1560, %v1554
        %v1639 = vpack.c.b16 %v1561, %v1555
        %v1640 = vpack.c.b16 %v1568, %v1562
        %v1641 = vpack.c.b16 %v1569, %v1563
        %v1642 = vpack.c.b16 %v1570, %v1564
        %v1643 = vpack.c.b16 %v1571, %v1565
        %v1644 = vpack.c.b16 %v1572, %v1566
        %v1645 = vpack.c.b16 %v1573, %v1567
        %v1646 = vpack.c.b16 %v1580, %v1574
        %v1647 = vpack.c.b16 %v1581, %v1575
        %v1648 = vpack.c.b16 %v1582, %v1576
        %v1649 = vpack.c.b16 %v1583, %v1577
        %v1650 = vpack.c.b16 %v1584, %v1578
        %v1651 = vpack.c.b16 %v1585, %v1579
        %v1652 = vpack.c.b16 %v1592, %v1586
        %v1653 = vpack.c.b16 %v1593, %v1587
        %v1654 = vpack.c.b16 %v1594, %v1588
        %v1655 = vpack.c.b16 %v1595, %v1589
        %v1656 = vpack.c.b16 %v1596, %v1590
        %v1657 = vpack.c.b16 %v1597, %v1591
        %v1658 = vpack.c.b16 %v1604, %v1598
        %v1659 = vpack.c.b16 %v1605, %v1599
        %v1660 = vpack.c.b16 %v1606, %v1600
        %v1661 = vpack.c.b16 %v1607, %v1601
        %v1662 = vpack.c.b16 %v1608, %v1602
        %v1663 = vpack.c.b16 %v1609, %v1603
        %v1664 = vpack.c.b16 %v1616, %v1610
        %v1665 = vpack.c.b16 %v1617, %v1611
        %v1666 = vpack.c.b16 %v1618, %v1612
        %v1667 = vpack.c.b16 %v1619, %v1613
        %v1668 = vpack.c.b16 %v1620, %v1614
        %v1669 = vpack.c.b16 %v1621, %v1615
        %1718 = vmatprep.subr.bf16.mxu0 %v1665
        %1719 = vmatpush1.bf16.msra.mxu0 %v1664
        %1720 = vmatprep.subr.bf16.mxu0 %v1659
        %1721 = vmatpush1.bf16.msra.mxu0 %v1658
        %1722 = vmatprep.subr.bf16.mxu0 %v1653
        %1723 = vmatpush1.bf16.msra.mxu0 %v1652
        %1724 = vmatprep.subr.bf16.mxu0 %v1647
        %1725 = vmatpush1.bf16.msra.mxu0 %v1646
        %1726 = vmatprep.subr.bf16.mxu0 %v1641
        %1727 = vmatpush1.bf16.msra.mxu0 %v1640
        %1728 = vmatprep.subr.bf16.mxu0 %v1635
        %1729 = vmatpush1.bf16.msra.mxu0 %v1634
        %1730 = vmatprep.subr.bf16.mxu0 %v1629
        %1731 = vmatpush1.bf16.msra.mxu0 %v1628
        %1732 = vmatprep.subr.bf16.mxu0 %v1623
        %1733 = vmatpush1.bf16.msra.mxu0 %v1622
        %1734 = vmatprep.subr.bf16.mxu0 0
        %1735 = vmatpush2.bf16.msra.mxu0 0
        %1736 = vmatprep.subr.bf16.mxu0 0
        %1737 = vmatpush2.bf16.msra.mxu0 0
        %1738 = vmatprep.subr.bf16.mxu0 0
        %1739 = vmatpush2.bf16.msra.mxu0 0
        %1740 = vmatprep.subr.bf16.mxu0 0
        %1741 = vmatpush2.bf16.msra.mxu0 0
        %1742 = vmatprep.subr.bf16.mxu0 0
        %1743 = vmatpush2.bf16.msra.mxu0 0
        %1744 = vmatprep.subr.bf16.mxu0 0
        %1745 = vmatpush2.bf16.msra.mxu0 0
        %1746 = vmatprep.subr.bf16.mxu0 0
        %1747 = vmatpush2.bf16.msra.mxu0 0
        %1748 = vmatprep.subr.bf16.mxu0 0
        %1749 = vmatpush2.bf16.msra.mxu0 0
        %1750 = vmatprep.mubr.bf16.mxu0 0
        %1751 = vmatmul.mubr.bf16.gmra.mxu0 %v1474
        %v1752 = vpop.f32.mrf.mxu0
        %v1753 = vadd.f32 0.0, %v1752
        %v1754 = vpop.f32.mrf.mxu0
        %v1755 = vadd.f32 0.0, %v1754
        %v1756 = vpop.f32.mrf.mxu0
        %v1757 = vadd.f32 0.0, %v1756
        %v1758 = vpop.f32.mrf.mxu0
        %v1759 = vadd.f32 0.0, %v1758
        %1760 = vmatprep.mubr.bf16.mxu0 0
        %1761 = vmatmul.mubr.bf16.gmra.mxu0 %v1475
        %v1762 = vpop.f32.mrf.mxu0
        %v1763 = vadd.f32 0.0, %v1762
        %v1764 = vpop.f32.mrf.mxu0
        %v1765 = vadd.f32 0.0, %v1764
        %v1766 = vpop.f32.mrf.mxu0
        %v1767 = vadd.f32 0.0, %v1766
        %v1768 = vpop.f32.mrf.mxu0
        %v1769 = vadd.f32 0.0, %v1768
        %1770 = vdwg.mxu0
        %1771 = vmatprep.subr.bf16.mxu0 %v1667
        %1772 = vmatpush1.bf16.msra.mxu0 %v1666
        %1773 = vmatprep.subr.bf16.mxu0 %v1661
        %1774 = vmatpush1.bf16.msra.mxu0 %v1660
        %1775 = vmatprep.subr.bf16.mxu0 %v1655
        %1776 = vmatpush1.bf16.msra.mxu0 %v1654
        %1777 = vmatprep.subr.bf16.mxu0 %v1649
        %1778 = vmatpush1.bf16.msra.mxu0 %v1648
        %1779 = vmatprep.subr.bf16.mxu0 %v1643
        %1780 = vmatpush1.bf16.msra.mxu0 %v1642
        %1781 = vmatprep.subr.bf16.mxu0 %v1637
        %1782 = vmatpush1.bf16.msra.mxu0 %v1636
        %1783 = vmatprep.subr.bf16.mxu0 %v1631
        %1784 = vmatpush1.bf16.msra.mxu0 %v1630
        %1785 = vmatprep.subr.bf16.mxu0 %v1625
        %1786 = vmatpush1.bf16.msra.mxu0 %v1624
        %1787 = vmatprep.subr.bf16.mxu0 0
        %1788 = vmatpush2.bf16.msra.mxu0 0
        %1789 = vmatprep.subr.bf16.mxu0 0
        %1790 = vmatpush2.bf16.msra.mxu0 0
        %1791 = vmatprep.subr.bf16.mxu0 0
        %1792 = vmatpush2.bf16.msra.mxu0 0
        %1793 = vmatprep.subr.bf16.mxu0 0
        %1794 = vmatpush2.bf16.msra.mxu0 0
        %1795 = vmatprep.subr.bf16.mxu0 0
        %1796 = vmatpush2.bf16.msra.mxu0 0
        %1797 = vmatprep.subr.bf16.mxu0 0
        %1798 = vmatpush2.bf16.msra.mxu0 0
        %1799 = vmatprep.subr.bf16.mxu0 0
        %1800 = vmatpush2.bf16.msra.mxu0 0
        %1801 = vmatprep.subr.bf16.mxu0 0
        %1802 = vmatpush2.bf16.msra.mxu0 0
        %1803 = vmatprep.mubr.bf16.mxu0 0
        %1804 = vmatmul.mubr.bf16.gmra.mxu0 %v1474
        %v1805 = vpop.f32.mrf.mxu0
        %v1806 = vadd.f32 0.0, %v1805
        %v1807 = vpop.f32.mrf.mxu0
        %v1808 = vadd.f32 0.0, %v1807
        %v1809 = vpop.f32.mrf.mxu0
        %v1810 = vadd.f32 0.0, %v1809
        %v1811 = vpop.f32.mrf.mxu0
        %v1812 = vadd.f32 0.0, %v1811
        %1813 = vmatprep.mubr.bf16.mxu0 0
        %1814 = vmatmul.mubr.bf16.gmra.mxu0 %v1475
        %v1815 = vpop.f32.mrf.mxu0
        %v1816 = vadd.f32 0.0, %v1815
        %v1817 = vpop.f32.mrf.mxu0
        %v1818 = vadd.f32 0.0, %v1817
        %v1819 = vpop.f32.mrf.mxu0
        %v1820 = vadd.f32 0.0, %v1819
        %v1821 = vpop.f32.mrf.mxu0
        %v1822 = vadd.f32 0.0, %v1821
        %1823 = vdwg.mxu0
        %1824 = vmatprep.subr.bf16.mxu0 %v1669
        %1825 = vmatpush1.bf16.msra.mxu0 %v1668
        %1826 = vmatprep.subr.bf16.mxu0 %v1663
        %1827 = vmatpush1.bf16.msra.mxu0 %v1662
        %1828 = vmatprep.subr.bf16.mxu0 %v1657
        %1829 = vmatpush1.bf16.msra.mxu0 %v1656
        %1830 = vmatprep.subr.bf16.mxu0 %v1651
        %1831 = vmatpush1.bf16.msra.mxu0 %v1650
        %1832 = vmatprep.subr.bf16.mxu0 %v1645
        %1833 = vmatpush1.bf16.msra.mxu0 %v1644
        %1834 = vmatprep.subr.bf16.mxu0 %v1639
        %1835 = vmatpush1.bf16.msra.mxu0 %v1638
        %1836 = vmatprep.subr.bf16.mxu0 %v1633
        %1837 = vmatpush1.bf16.msra.mxu0 %v1632
        %1838 = vmatprep.subr.bf16.mxu0 %v1627
        %1839 = vmatpush1.bf16.msra.mxu0 %v1626
        %1840 = vmatprep.subr.bf16.mxu0 0
        %1841 = vmatpush2.bf16.msra.mxu0 0
        %1842 = vmatprep.subr.bf16.mxu0 0
        %1843 = vmatpush2.bf16.msra.mxu0 0
        %1844 = vmatprep.subr.bf16.mxu0 0
        %1845 = vmatpush2.bf16.msra.mxu0 0
        %1846 = vmatprep.subr.bf16.mxu0 0
        %1847 = vmatpush2.bf16.msra.mxu0 0
        %1848 = vmatprep.subr.bf16.mxu0 0
        %1849 = vmatpush2.bf16.msra.mxu0 0
        %1850 = vmatprep.subr.bf16.mxu0 0
        %1851 = vmatpush2.bf16.msra.mxu0 0
        %1852 = vmatprep.subr.bf16.mxu0 0
        %1853 = vmatpush2.bf16.msra.mxu0 0
        %1854 = vmatprep.subr.bf16.mxu0 0
        %1855 = vmatpush2.bf16.msra.mxu0 0
        %1856 = vmatprep.mubr.bf16.mxu0 0
        %1857 = vmatmul.mubr.bf16.gmra.mxu0 %v1474
        %v1858 = vpop.f32.mrf.mxu0
        %v1859 = vadd.f32 0.0, %v1858
        %v1860 = vpop.f32.mrf.mxu0
        %v1861 = vadd.f32 0.0, %v1860
        %v1862 = vpop.f32.mrf.mxu0
        %v1863 = vadd.f32 0.0, %v1862
        %v1864 = vpop.f32.mrf.mxu0
        %v1865 = vadd.f32 0.0, %v1864
        %1866 = vmatprep.mubr.bf16.mxu0 0
        %1867 = vmatmul.mubr.bf16.gmra.mxu0 %v1475
        %v1868 = vpop.f32.mrf.mxu0
        %v1869 = vadd.f32 0.0, %v1868
        %v1870 = vpop.f32.mrf.mxu0
        %v1871 = vadd.f32 0.0, %v1870
        %v1872 = vpop.f32.mrf.mxu0
        %v1873 = vadd.f32 0.0, %v1872
        %v1874 = vpop.f32.mrf.mxu0
        %v1875 = vadd.f32 0.0, %v1874
        %1876 = vdwg.mxu0
        %1877 = vst [vmem:[#allocation4] sm:$0xff] %v1753
        %1878 = vst [vmem:[#allocation4 + $0x8] sm:$0xff] %v1755
        %1879 = vst [vmem:[#allocation4 + $0x10] sm:$0xff] %v1806
        %1880 = vst [vmem:[#allocation4 + $0x18] sm:$0xff] %v1808
        %1881 = vst [vmem:[#allocation4 + $0x20] sm:$0xff] %v1859
        %1882 = vst [vmem:[#allocation4 + $0x28] sm:$0xff] %v1861
        %1883 = vst [vmem:[#allocation4 + $0x30] sm:$0xff] %v1757
        %1884 = vst [vmem:[#allocation4 + $0x38] sm:$0xff] %v1759
        %1885 = vst [vmem:[#allocation4 + $0x40] sm:$0xff] %v1810
        %1886 = vst [vmem:[#allocation4 + $0x48] sm:$0xff] %v1812
        %1887 = vst [vmem:[#allocation4 + $0x50] sm:$0xff] %v1863
        %1888 = vst [vmem:[#allocation4 + $0x58] sm:$0xff] %v1865
        %1889 = vst [vmem:[#allocation4 + $0x60] sm:$0xff] %v1763
        %1890 = vst [vmem:[#allocation4 + $0x68] sm:$0xff] %v1765
        %1891 = vst [vmem:[#allocation4 + $0x70] sm:$0xff] %v1816
        %1892 = vst [vmem:[#allocation4 + $0x78] sm:$0xff] %v1818
        %1893 = vst [vmem:[#allocation4 + $0x80] sm:$0xff] %v1869
        %1894 = vst [vmem:[#allocation4 + $0x88] sm:$0xff] %v1871
        %1895 = vst [vmem:[#allocation4 + $0x90] sm:$0xff] %v1767
        %1896 = vst [vmem:[#allocation4 + $0x98] sm:$0xff] %v1769
        %1897 = vst [vmem:[#allocation4 + $0xa0] sm:$0xff] %v1820
        %1898 = vst [vmem:[#allocation4 + $0xa8] sm:$0xff] %v1822
        %1899 = vst [vmem:[#allocation4 + $0xb0] sm:$0xff] %v1873
        %1900 = vst [vmem:[#allocation4 + $0xb8] sm:$0xff] %v1875
        %v1901 = vld [vmem:[#allocation2] sm:$0xff]
        %v1902 = vld [vmem:[#allocation2 + $0x8] sm:$0xff]
        %v1903 = vld [vmem:[#allocation2 + $0x10] sm:$0xff]
        %v1904 = vld [vmem:[#allocation2 + $0x18] sm:$0xf]
        %v1905 = vld [vmem:[#allocation2 + $0x1c] sm:$0xff]
        %v1906 = vld [vmem:[#allocation2 + $0x24] sm:$0xff]
        %v1907 = vld [vmem:[#allocation2 + $0x2c] sm:$0xff]
        %v1908 = vld [vmem:[#allocation2 + $0x34] sm:$0xf]
        %v1909 = vld [vmem:[#allocation2 + $0x38] sm:$0xff]
        %v1910 = vld [vmem:[#allocation2 + $0x40] sm:$0xff]
        %v1911 = vld [vmem:[#allocation2 + $0x48] sm:$0xff]
        %v1912 = vld [vmem:[#allocation2 + $0x50] sm:$0xf]
        %v1913 = vld [vmem:[#allocation2 + $0x54] sm:$0xff]
        %v1914 = vld [vmem:[#allocation2 + $0x5c] sm:$0xff]
        %v1915 = vld [vmem:[#allocation2 + $0x64] sm:$0xff]
        %v1916 = vld [vmem:[#allocation2 + $0x6c] sm:$0xf]
        %1933 = vrot.lane.b32.xlu0 %v1901, 47
        %v1934 = vpop.permute.xlu0 %1933
        %1935 = vrot.lane.b32.xlu0 %v1902, 47
        %v1936 = vpop.permute.xlu0 %1935
        %1937 = vrot.lane.b32.xlu0 %v1903, 47
        %v1938 = vpop.permute.xlu0 %1937
        %1939 = vrot.lane.b32.xlu0 %v1904, 47
        %v1940 = vpop.permute.xlu0 %1939
        %1941 = vrot.lane.b32.xlu0 %v1905, 47
        %v1942 = vpop.permute.xlu0 %1941
        %1943 = vrot.lane.b32.xlu0 %v1906, 47
        %v1944 = vpop.permute.xlu0 %1943
        %1945 = vrot.lane.b32.xlu0 %v1907, 47
        %v1946 = vpop.permute.xlu0 %1945
        %1947 = vrot.lane.b32.xlu0 %v1908, 47
        %v1948 = vpop.permute.xlu0 %1947
        %1949 = vrot.lane.b32.xlu0 %v1909, 47
        %v1950 = vpop.permute.xlu0 %1949
        %1951 = vrot.lane.b32.xlu0 %v1910, 47
        %v1952 = vpop.permute.xlu0 %1951
        %1953 = vrot.lane.b32.xlu0 %v1911, 47
        %v1954 = vpop.permute.xlu0 %1953
        %1955 = vrot.lane.b32.xlu0 %v1912, 47
        %v1956 = vpop.permute.xlu0 %1955
        %1957 = vrot.lane.b32.xlu0 %v1913, 47
        %v1958 = vpop.permute.xlu0 %1957
        %1959 = vrot.lane.b32.xlu0 %v1914, 47
        %v1960 = vpop.permute.xlu0 %1959
        %1961 = vrot.lane.b32.xlu0 %v1915, 47
        %v1962 = vpop.permute.xlu0 %1961
        %1963 = vrot.lane.b32.xlu0 %v1916, 47
        %v1964 = vpop.permute.xlu0 %1963
        %v1965 = vrot.slane %v1934, 4
        %v1966 = vrot.slane %v1936, 4
        %v1967 = vrot.slane %v1938, 4
        %v1968 = vrot.slane %v1940, 4
        %v1969 = vrot.slane %v1942, 4
        %v1970 = vrot.slane %v1944, 4
        %v1971 = vrot.slane %v1946, 4
        %v1972 = vrot.slane %v1948, 4
        %v1973 = vrot.slane %v1950, 4
        %v1974 = vrot.slane %v1952, 4
        %v1975 = vrot.slane %v1954, 4
        %v1976 = vrot.slane %v1956, 4
        %v1977 = vrot.slane %v1958, 4
        %v1978 = vrot.slane %v1960, 4
        %v1979 = vrot.slane %v1962, 4
        %v1980 = vrot.slane %v1964, 4
        %v1981 = vsel %vm1106, %v1965, %v1966
        %vm1982 = vcmask 384000
        %v1983 = vsel %vm1982, %v1934, %v1981
        %v1984 = vsel %vm1106, %v1966, %v1967
        %v1985 = vsel %vm1982, %v1936, %v1984
        %v1986 = vsel %vm1106, %v1967, %v1968
        %v1987 = vsel %vm1982, %v1938, %v1986
        %v1988 = vsel %vm1106, %v1969, %v1970
        %v1989 = vsel %vm1982, %v1942, %v1988
        %v1990 = vsel %vm1106, %v1970, %v1971
        %v1991 = vsel %vm1982, %v1944, %v1990
        %v1992 = vsel %vm1106, %v1971, %v1972
        %v1993 = vsel %vm1982, %v1946, %v1992
        %v1994 = vsel %vm1106, %v1973, %v1974
        %v1995 = vsel %vm1982, %v1950, %v1994
        %v1996 = vsel %vm1106, %v1974, %v1975
        %v1997 = vsel %vm1982, %v1952, %v1996
        %v1998 = vsel %vm1106, %v1975, %v1976
        %v1999 = vsel %vm1982, %v1954, %v1998
        %v2000 = vsel %vm1106, %v1977, %v1978
        %v2001 = vsel %vm1982, %v1958, %v2000
        %v2002 = vsel %vm1106, %v1978, %v1979
        %v2003 = vsel %vm1982, %v1960, %v2002
        %v2004 = vsel %vm1106, %v1979, %v1980
        %v2005 = vsel %vm1982, %v1962, %v2004
        %2018 = vst [vmem:[#allocation3] sm:$0xff] %v1983
        %2019 = vst [vmem:[#allocation3 + $0x8] sm:$0xff] %v1985
        %2020 = vst [vmem:[#allocation3 + $0x10] sm:$0xff] %v1987
        %2021 = vst [vmem:[#allocation3 + $0x18] sm:$0xff] %v1989
        %2022 = vst [vmem:[#allocation3 + $0x20] sm:$0xff] %v1991
        %2023 = vst [vmem:[#allocation3 + $0x28] sm:$0xff] %v1993
        %2024 = vst [vmem:[#allocation3 + $0x30] sm:$0xff] %v1995
        %2025 = vst [vmem:[#allocation3 + $0x38] sm:$0xff] %v1997
        %2026 = vst [vmem:[#allocation3 + $0x40] sm:$0xff] %v1999
        %2027 = vst [vmem:[#allocation3 + $0x48] sm:$0xff] %v2001
        %2028 = vst [vmem:[#allocation3 + $0x50] sm:$0xff] %v2003
        %2029 = vst [vmem:[#allocation3 + $0x58] sm:$0xff] %v2005
        %v2030 = vld [vmem:[#allocation2] sm:$0xff]
        %v2031 = vld [vmem:[#allocation2 + $0x8] sm:$0xff]
        %v2032 = vld [vmem:[#allocation2 + $0x10] sm:$0xff]
        %v2033 = vld [vmem:[#allocation2 + $0x18] sm:$0xf]
        %v2034 = vld [vmem:[#allocation2 + $0x1c] sm:$0xff]
        %v2035 = vld [vmem:[#allocation2 + $0x24] sm:$0xff]
        %v2036 = vld [vmem:[#allocation2 + $0x2c] sm:$0xff]
        %v2037 = vld [vmem:[#allocation2 + $0x34] sm:$0xf]
        %v2038 = vld [vmem:[#allocation2 + $0x38] sm:$0xff]
        %v2039 = vld [vmem:[#allocation2 + $0x40] sm:$0xff]
        %v2040 = vld [vmem:[#allocation2 + $0x48] sm:$0xff]
        %v2041 = vld [vmem:[#allocation2 + $0x50] sm:$0xf]
        %v2042 = vld [vmem:[#allocation2 + $0x54] sm:$0xff]
        %v2043 = vld [vmem:[#allocation2 + $0x5c] sm:$0xff]
        %v2044 = vld [vmem:[#allocation2 + $0x64] sm:$0xff]
        %v2045 = vld [vmem:[#allocation2 + $0x6c] sm:$0xf]
        %2062 = vrot.lane.b32.xlu0 %v2030, 46
        %v2063 = vpop.permute.xlu0 %2062
        %2064 = vrot.lane.b32.xlu0 %v2031, 46
        %v2065 = vpop.permute.xlu0 %2064
        %2066 = vrot.lane.b32.xlu0 %v2032, 46
        %v2067 = vpop.permute.xlu0 %2066
        %2068 = vrot.lane.b32.xlu0 %v2033, 46
        %v2069 = vpop.permute.xlu0 %2068
        %2070 = vrot.lane.b32.xlu0 %v2034, 46
        %v2071 = vpop.permute.xlu0 %2070
        %2072 = vrot.lane.b32.xlu0 %v2035, 46
        %v2073 = vpop.permute.xlu0 %2072
        %2074 = vrot.lane.b32.xlu0 %v2036, 46
        %v2075 = vpop.permute.xlu0 %2074
        %2076 = vrot.lane.b32.xlu0 %v2037, 46
        %v2077 = vpop.permute.xlu0 %2076
        %2078 = vrot.lane.b32.xlu0 %v2038, 46
        %v2079 = vpop.permute.xlu0 %2078
        %2080 = vrot.lane.b32.xlu0 %v2039, 46
        %v2081 = vpop.permute.xlu0 %2080
        %2082 = vrot.lane.b32.xlu0 %v2040, 46
        %v2083 = vpop.permute.xlu0 %2082
        %2084 = vrot.lane.b32.xlu0 %v2041, 46
        %v2085 = vpop.permute.xlu0 %2084
        %2086 = vrot.lane.b32.xlu0 %v2042, 46
        %v2087 = vpop.permute.xlu0 %2086
        %2088 = vrot.lane.b32.xlu0 %v2043, 46
        %v2089 = vpop.permute.xlu0 %2088
        %2090 = vrot.lane.b32.xlu0 %v2044, 46
        %v2091 = vpop.permute.xlu0 %2090
        %2092 = vrot.lane.b32.xlu0 %v2045, 46
        %v2093 = vpop.permute.xlu0 %2092
        %v2094 = vrot.slane %v2063, 4
        %v2095 = vrot.slane %v2065, 4
        %v2096 = vrot.slane %v2067, 4
        %v2097 = vrot.slane %v2069, 4
        %v2098 = vrot.slane %v2071, 4
        %v2099 = vrot.slane %v2073, 4
        %v2100 = vrot.slane %v2075, 4
        %v2101 = vrot.slane %v2077, 4
        %v2102 = vrot.slane %v2079, 4
        %v2103 = vrot.slane %v2081, 4
        %v2104 = vrot.slane %v2083, 4
        %v2105 = vrot.slane %v2085, 4
        %v2106 = vrot.slane %v2087, 4
        %v2107 = vrot.slane %v2089, 4
        %v2108 = vrot.slane %v2091, 4
        %v2109 = vrot.slane %v2093, 4
        %v2110 = vsel %vm1106, %v2094, %v2095
        %vm2111 = vcmask 375808
        %v2112 = vsel %vm2111, %v2063, %v2110
        %v2113 = vsel %vm1106, %v2095, %v2096
        %v2114 = vsel %vm2111, %v2065, %v2113
        %v2115 = vsel %vm1106, %v2096, %v2097
        %v2116 = vsel %vm2111, %v2067, %v2115
        %v2117 = vsel %vm1106, %v2098, %v2099
        %v2118 = vsel %vm2111, %v2071, %v2117
        %v2119 = vsel %vm1106, %v2099, %v2100
        %v2120 = vsel %vm2111, %v2073, %v2119
        %v2121 = vsel %vm1106, %v2100, %v2101
        %v2122 = vsel %vm2111, %v2075, %v2121
        %v2123 = vsel %vm1106, %v2102, %v2103
        %v2124 = vsel %vm2111, %v2079, %v2123
        %v2125 = vsel %vm1106, %v2103, %v2104
        %v2126 = vsel %vm2111, %v2081, %v2125
        %v2127 = vsel %vm1106, %v2104, %v2105
        %v2128 = vsel %vm2111, %v2083, %v2127
        %v2129 = vsel %vm1106, %v2106, %v2107
        %v2130 = vsel %vm2111, %v2087, %v2129
        %v2131 = vsel %vm1106, %v2107, %v2108
        %v2132 = vsel %vm2111, %v2089, %v2131
        %v2133 = vsel %vm1106, %v2108, %v2109
        %v2134 = vsel %vm2111, %v2091, %v2133
        %2147 = vst [vmem:[#allocation3 + $0x60] sm:$0xff] %v2112
        %2148 = vst [vmem:[#allocation3 + $0x68] sm:$0xff] %v2114
        %2149 = vst [vmem:[#allocation3 + $0x70] sm:$0xff] %v2116
        %2150 = vst [vmem:[#allocation3 + $0x78] sm:$0xff] %v2118
        %2151 = vst [vmem:[#allocation3 + $0x80] sm:$0xff] %v2120
        %2152 = vst [vmem:[#allocation3 + $0x88] sm:$0xff] %v2122
        %2153 = vst [vmem:[#allocation3 + $0x90] sm:$0xff] %v2124
        %2154 = vst [vmem:[#allocation3 + $0x98] sm:$0xff] %v2126
        %2155 = vst [vmem:[#allocation3 + $0xa0] sm:$0xff] %v2128
        %2156 = vst [vmem:[#allocation3 + $0xa8] sm:$0xff] %v2130
        %2157 = vst [vmem:[#allocation3 + $0xb0] sm:$0xff] %v2132
        %2158 = vst [vmem:[#allocation3 + $0xb8] sm:$0xff] %v2134
        %v2159 = vld [vmem:[#allocation2] sm:$0xff]
        %v2160 = vld [vmem:[#allocation2 + $0x8] sm:$0xff]
        %v2161 = vld [vmem:[#allocation2 + $0x10] sm:$0xff]
        %v2162 = vld [vmem:[#allocation2 + $0x18] sm:$0xf]
        %v2163 = vld [vmem:[#allocation2 + $0x1c] sm:$0xff]
        %v2164 = vld [vmem:[#allocation2 + $0x24] sm:$0xff]
        %v2165 = vld [vmem:[#allocation2 + $0x2c] sm:$0xff]
        %v2166 = vld [vmem:[#allocation2 + $0x34] sm:$0xf]
        %v2167 = vld [vmem:[#allocation2 + $0x38] sm:$0xff]
        %v2168 = vld [vmem:[#allocation2 + $0x40] sm:$0xff]
        %v2169 = vld [vmem:[#allocation2 + $0x48] sm:$0xff]
        %v2170 = vld [vmem:[#allocation2 + $0x50] sm:$0xf]
        %v2171 = vld [vmem:[#allocation2 + $0x54] sm:$0xff]
        %v2172 = vld [vmem:[#allocation2 + $0x5c] sm:$0xff]
        %v2173 = vld [vmem:[#allocation2 + $0x64] sm:$0xff]
        %v2174 = vld [vmem:[#allocation2 + $0x6c] sm:$0xf]
        %2191 = vrot.lane.b32.xlu0 %v2159, 38
        %v2192 = vpop.permute.xlu0 %2191
        %2193 = vrot.lane.b32.xlu0 %v2160, 38
        %v2194 = vpop.permute.xlu0 %2193
        %2195 = vrot.lane.b32.xlu0 %v2161, 38
        %v2196 = vpop.permute.xlu0 %2195
        %2197 = vrot.lane.b32.xlu0 %v2162, 38
        %v2198 = vpop.permute.xlu0 %2197
        %2199 = vrot.lane.b32.xlu0 %v2163, 38
        %v2200 = vpop.permute.xlu0 %2199
        %2201 = vrot.lane.b32.xlu0 %v2164, 38
        %v2202 = vpop.permute.xlu0 %2201
        %2203 = vrot.lane.b32.xlu0 %v2165, 38
        %v2204 = vpop.permute.xlu0 %2203
        %2205 = vrot.lane.b32.xlu0 %v2166, 38
        %v2206 = vpop.permute.xlu0 %2205
        %2207 = vrot.lane.b32.xlu0 %v2167, 38
        %v2208 = vpop.permute.xlu0 %2207
        %2209 = vrot.lane.b32.xlu0 %v2168, 38
        %v2210 = vpop.permute.xlu0 %2209
        %2211 = vrot.lane.b32.xlu0 %v2169, 38
        %v2212 = vpop.permute.xlu0 %2211
        %2213 = vrot.lane.b32.xlu0 %v2170, 38
        %v2214 = vpop.permute.xlu0 %2213
        %2215 = vrot.lane.b32.xlu0 %v2171, 38
        %v2216 = vpop.permute.xlu0 %2215
        %2217 = vrot.lane.b32.xlu0 %v2172, 38
        %v2218 = vpop.permute.xlu0 %2217
        %2219 = vrot.lane.b32.xlu0 %v2173, 38
        %v2220 = vpop.permute.xlu0 %2219
        %2221 = vrot.lane.b32.xlu0 %v2174, 38
        %v2222 = vpop.permute.xlu0 %2221
        %v2223 = vrot.slane %v2192, 4
        %v2224 = vrot.slane %v2194, 4
        %v2225 = vrot.slane %v2196, 4
        %v2226 = vrot.slane %v2198, 4
        %v2227 = vrot.slane %v2200, 4
        %v2228 = vrot.slane %v2202, 4
        %v2229 = vrot.slane %v2204, 4
        %v2230 = vrot.slane %v2206, 4
        %v2231 = vrot.slane %v2208, 4
        %v2232 = vrot.slane %v2210, 4
        %v2233 = vrot.slane %v2212, 4
        %v2234 = vrot.slane %v2214, 4
        %v2235 = vrot.slane %v2216, 4
        %v2236 = vrot.slane %v2218, 4
        %v2237 = vrot.slane %v2220, 4
        %v2238 = vrot.slane %v2222, 4
        %v2239 = vsel %vm1106, %v2223, %v2224
        %vm2240 = vcmask 310272
        %v2241 = vsel %vm2240, %v2192, %v2239
        %v2242 = vsel %vm1106, %v2224, %v2225
        %v2243 = vsel %vm2240, %v2194, %v2242
        %v2244 = vsel %vm1106, %v2225, %v2226
        %v2245 = vsel %vm2240, %v2196, %v2244
        %v2246 = vsel %vm1106, %v2227, %v2228
        %v2247 = vsel %vm2240, %v2200, %v2246
        %v2248 = vsel %vm1106, %v2228, %v2229
        %v2249 = vsel %vm2240, %v2202, %v2248
        %v2250 = vsel %vm1106, %v2229, %v2230
        %v2251 = vsel %vm2240, %v2204, %v2250
        %v2252 = vsel %vm1106, %v2231, %v2232
        %v2253 = vsel %vm2240, %v2208, %v2252
        %v2254 = vsel %vm1106, %v2232, %v2233
        %v2255 = vsel %vm2240, %v2210, %v2254
        %v2256 = vsel %vm1106, %v2233, %v2234
        %v2257 = vsel %vm2240, %v2212, %v2256
        %v2258 = vsel %vm1106, %v2235, %v2236
        %v2259 = vsel %vm2240, %v2216, %v2258
        %v2260 = vsel %vm1106, %v2236, %v2237
        %v2261 = vsel %vm2240, %v2218, %v2260
        %v2262 = vsel %vm1106, %v2237, %v2238
        %v2263 = vsel %vm2240, %v2220, %v2262
        %2276 = vst [vmem:[#allocation3 + $0xc0] sm:$0xff] %v2241
        %2277 = vst [vmem:[#allocation3 + $0xc8] sm:$0xff] %v2243
        %2278 = vst [vmem:[#allocation3 + $0xd0] sm:$0xff] %v2245
        %2279 = vst [vmem:[#allocation3 + $0xd8] sm:$0xff] %v2247
        %2280 = vst [vmem:[#allocation3 + $0xe0] sm:$0xff] %v2249
        %2281 = vst [vmem:[#allocation3 + $0xe8] sm:$0xff] %v2251
        %2282 = vst [vmem:[#allocation3 + $0xf0] sm:$0xff] %v2253
        %2283 = vst [vmem:[#allocation3 + $0xf8] sm:$0xff] %v2255
        %2284 = vst [vmem:[#allocation3 + $0x100] sm:$0xff] %v2257
        %2285 = vst [vmem:[#allocation3 + $0x108] sm:$0xff] %v2259
        %2286 = vst [vmem:[#allocation3 + $0x110] sm:$0xff] %v2261
        %2287 = vst [vmem:[#allocation3 + $0x118] sm:$0xff] %v2263
        %v2288 = vld [vmem:[#allocation2] sm:$0xff]
        %v2289 = vld [vmem:[#allocation2 + $0x8] sm:$0xff]
        %v2290 = vld [vmem:[#allocation2 + $0x10] sm:$0xff]
        %v2291 = vld [vmem:[#allocation2 + $0x18] sm:$0xf]
        %v2292 = vld [vmem:[#allocation2 + $0x1c] sm:$0xff]
        %v2293 = vld [vmem:[#allocation2 + $0x24] sm:$0xff]
        %v2294 = vld [vmem:[#allocation2 + $0x2c] sm:$0xff]
        %v2295 = vld [vmem:[#allocation2 + $0x34] sm:$0xf]
        %v2296 = vld [vmem:[#allocation2 + $0x38] sm:$0xff]
        %v2297 = vld [vmem:[#allocation2 + $0x40] sm:$0xff]
        %v2298 = vld [vmem:[#allocation2 + $0x48] sm:$0xff]
        %v2299 = vld [vmem:[#allocation2 + $0x50] sm:$0xf]
        %v2300 = vld [vmem:[#allocation2 + $0x54] sm:$0xff]
        %v2301 = vld [vmem:[#allocation2 + $0x5c] sm:$0xff]
        %v2302 = vld [vmem:[#allocation2 + $0x64] sm:$0xff]
        %v2303 = vld [vmem:[#allocation2 + $0x6c] sm:$0xf]
        %2320 = vrot.lane.b32.xlu0 %v2288, 37
        %v2321 = vpop.permute.xlu0 %2320
        %2322 = vrot.lane.b32.xlu0 %v2289, 37
        %v2323 = vpop.permute.xlu0 %2322
        %2324 = vrot.lane.b32.xlu0 %v2290, 37
        %v2325 = vpop.permute.xlu0 %2324
        %2326 = vrot.lane.b32.xlu0 %v2291, 37
        %v2327 = vpop.permute.xlu0 %2326
        %2328 = vrot.lane.b32.xlu0 %v2292, 37
        %v2329 = vpop.permute.xlu0 %2328
        %2330 = vrot.lane.b32.xlu0 %v2293, 37
        %v2331 = vpop.permute.xlu0 %2330
        %2332 = vrot.lane.b32.xlu0 %v2294, 37
        %v2333 = vpop.permute.xlu0 %2332
        %2334 = vrot.lane.b32.xlu0 %v2295, 37
        %v2335 = vpop.permute.xlu0 %2334
        %2336 = vrot.lane.b32.xlu0 %v2296, 37
        %v2337 = vpop.permute.xlu0 %2336
        %2338 = vrot.lane.b32.xlu0 %v2297, 37
        %v2339 = vpop.permute.xlu0 %2338
        %2340 = vrot.lane.b32.xlu0 %v2298, 37
        %v2341 = vpop.permute.xlu0 %2340
        %2342 = vrot.lane.b32.xlu0 %v2299, 37
        %v2343 = vpop.permute.xlu0 %2342
        %2344 = vrot.lane.b32.xlu0 %v2300, 37
        %v2345 = vpop.permute.xlu0 %2344
        %2346 = vrot.lane.b32.xlu0 %v2301, 37
        %v2347 = vpop.permute.xlu0 %2346
        %2348 = vrot.lane.b32.xlu0 %v2302, 37
        %v2349 = vpop.permute.xlu0 %2348
        %2350 = vrot.lane.b32.xlu0 %v2303, 37
        %v2351 = vpop.permute.xlu0 %2350
        %v2352 = vrot.slane %v2321, 4
        %v2353 = vrot.slane %v2323, 4
        %v2354 = vrot.slane %v2325, 4
        %v2355 = vrot.slane %v2327, 4
        %v2356 = vrot.slane %v2329, 4
        %v2357 = vrot.slane %v2331, 4
        %v2358 = vrot.slane %v2333, 4
        %v2359 = vrot.slane %v2335, 4
        %v2360 = vrot.slane %v2337, 4
        %v2361 = vrot.slane %v2339, 4
        %v2362 = vrot.slane %v2341, 4
        %v2363 = vrot.slane %v2343, 4
        %v2364 = vrot.slane %v2345, 4
        %v2365 = vrot.slane %v2347, 4
        %v2366 = vrot.slane %v2349, 4
        %v2367 = vrot.slane %v2351, 4
        %v2368 = vsel %vm1106, %v2352, %v2353
        %vm2369 = vcmask 302080
        %v2370 = vsel %vm2369, %v2321, %v2368
        %v2371 = vsel %vm1106, %v2353, %v2354
        %v2372 = vsel %vm2369, %v2323, %v2371
        %v2373 = vsel %vm1106, %v2354, %v2355
        %v2374 = vsel %vm2369, %v2325, %v2373
        %v2375 = vsel %vm1106, %v2356, %v2357
        %v2376 = vsel %vm2369, %v2329, %v2375
        %v2377 = vsel %vm1106, %v2357, %v2358
        %v2378 = vsel %vm2369, %v2331, %v2377
        %v2379 = vsel %vm1106, %v2358, %v2359
        %v2380 = vsel %vm2369, %v2333, %v2379
        %v2381 = vsel %vm1106, %v2360, %v2361
        %v2382 = vsel %vm2369, %v2337, %v2381
        %v2383 = vsel %vm1106, %v2361, %v2362
        %v2384 = vsel %vm2369, %v2339, %v2383
        %v2385 = vsel %vm1106, %v2362, %v2363
        %v2386 = vsel %vm2369, %v2341, %v2385
        %v2387 = vsel %vm1106, %v2364, %v2365
        %v2388 = vsel %vm2369, %v2345, %v2387
        %v2389 = vsel %vm1106, %v2365, %v2366
        %v2390 = vsel %vm2369, %v2347, %v2389
        %v2391 = vsel %vm1106, %v2366, %v2367
        %v2392 = vsel %vm2369, %v2349, %v2391
        %2405 = vst [vmem:[#allocation3 + $0x120] sm:$0xff] %v2370
        %2406 = vst [vmem:[#allocation3 + $0x128] sm:$0xff] %v2372
        %2407 = vst [vmem:[#allocation3 + $0x130] sm:$0xff] %v2374
        %2408 = vst [vmem:[#allocation3 + $0x138] sm:$0xff] %v2376
        %2409 = vst [vmem:[#allocation3 + $0x140] sm:$0xff] %v2378
        %2410 = vst [vmem:[#allocation3 + $0x148] sm:$0xff] %v2380
        %2411 = vst [vmem:[#allocation3 + $0x150] sm:$0xff] %v2382
        %2412 = vst [vmem:[#allocation3 + $0x158] sm:$0xff] %v2384
        %2413 = vst [vmem:[#allocation3 + $0x160] sm:$0xff] %v2386
        %2414 = vst [vmem:[#allocation3 + $0x168] sm:$0xff] %v2388
        %2415 = vst [vmem:[#allocation3 + $0x170] sm:$0xff] %v2390
        %2416 = vst [vmem:[#allocation3 + $0x178] sm:$0xff] %v2392
        %s2417 = scalar_lea.vmem %s4, 16
        %v2418 = vld [vmem:[%s2417] sm:$0xf]
        %v2419 = vld [vmem:[%s2417 + $0x4] sm:$0xf]
        %v2420 = vld [vmem:[%s2417 + $0x8] sm:$0xf]
        %v2421 = vld [vmem:[%s2417 + $0xc] sm:$0xf]
        %v2422 = vld [vmem:[#allocation3] sm:$0xff]
        %v2423 = vld [vmem:[#allocation3 + $0x8] sm:$0xff]
        %v2424 = vld [vmem:[#allocation3 + $0x10] sm:$0xff]
        %v2425 = vld [vmem:[#allocation3 + $0x18] sm:$0xff]
        %v2426 = vld [vmem:[#allocation3 + $0x20] sm:$0xff]
        %v2427 = vld [vmem:[#allocation3 + $0x28] sm:$0xff]
        %v2428 = vld [vmem:[#allocation3 + $0x30] sm:$0xff]
        %v2429 = vld [vmem:[#allocation3 + $0x38] sm:$0xff]
        %v2430 = vld [vmem:[#allocation3 + $0x40] sm:$0xff]
        %v2431 = vld [vmem:[#allocation3 + $0x48] sm:$0xff]
        %v2432 = vld [vmem:[#allocation3 + $0x50] sm:$0xff]
        %v2433 = vld [vmem:[#allocation3 + $0x58] sm:$0xff]
        %v2434 = vld [vmem:[#allocation3 + $0x60] sm:$0xff]
        %v2435 = vld [vmem:[#allocation3 + $0x68] sm:$0xff]
        %v2436 = vld [vmem:[#allocation3 + $0x70] sm:$0xff]
        %v2437 = vld [vmem:[#allocation3 + $0x78] sm:$0xff]
        %v2438 = vld [vmem:[#allocation3 + $0x80] sm:$0xff]
        %v2439 = vld [vmem:[#allocation3 + $0x88] sm:$0xff]
        %v2440 = vld [vmem:[#allocation3 + $0x90] sm:$0xff]
        %v2441 = vld [vmem:[#allocation3 + $0x98] sm:$0xff]
        %v2442 = vld [vmem:[#allocation3 + $0xa0] sm:$0xff]
        %v2443 = vld [vmem:[#allocation3 + $0xa8] sm:$0xff]
        %v2444 = vld [vmem:[#allocation3 + $0xb0] sm:$0xff]
        %v2445 = vld [vmem:[#allocation3 + $0xb8] sm:$0xff]
        %v2446 = vld [vmem:[#allocation3 + $0xc0] sm:$0xff]
        %v2447 = vld [vmem:[#allocation3 + $0xc8] sm:$0xff]
        %v2448 = vld [vmem:[#allocation3 + $0xd0] sm:$0xff]
        %v2449 = vld [vmem:[#allocation3 + $0xd8] sm:$0xff]
        %v2450 = vld [vmem:[#allocation3 + $0xe0] sm:$0xff]
        %v2451 = vld [vmem:[#allocation3 + $0xe8] sm:$0xff]
        %v2452 = vld [vmem:[#allocation3 + $0xf0] sm:$0xff]
        %v2453 = vld [vmem:[#allocation3 + $0xf8] sm:$0xff]
        %v2454 = vld [vmem:[#allocation3 + $0x100] sm:$0xff]
        %v2455 = vld [vmem:[#allocation3 + $0x108] sm:$0xff]
        %v2456 = vld [vmem:[#allocation3 + $0x110] sm:$0xff]
        %v2457 = vld [vmem:[#allocation3 + $0x118] sm:$0xff]
        %v2458 = vld [vmem:[#allocation3 + $0x120] sm:$0xff]
        %v2459 = vld [vmem:[#allocation3 + $0x128] sm:$0xff]
        %v2460 = vld [vmem:[#allocation3 + $0x130] sm:$0xff]
        %v2461 = vld [vmem:[#allocation3 + $0x138] sm:$0xff]
        %v2462 = vld [vmem:[#allocation3 + $0x140] sm:$0xff]
        %v2463 = vld [vmem:[#allocation3 + $0x148] sm:$0xff]
        %v2464 = vld [vmem:[#allocation3 + $0x150] sm:$0xff]
        %v2465 = vld [vmem:[#allocation3 + $0x158] sm:$0xff]
        %v2466 = vld [vmem:[#allocation3 + $0x160] sm:$0xff]
        %v2467 = vld [vmem:[#allocation3 + $0x168] sm:$0xff]
        %v2468 = vld [vmem:[#allocation3 + $0x170] sm:$0xff]
        %v2469 = vld [vmem:[#allocation3 + $0x178] sm:$0xff]
        %v2474 = vunpack.c.l.b16 %v2418
        %v2475 = vunpack.c.l.b16 %v2419
        %v2476 = vunpack.c.l.b16 %v2420
        %v2477 = vunpack.c.l.b16 %v2421
        %v2478 = vpack.c.b16 %v2475, %v2474
        %v2479 = vpack.c.b16 %v2477, %v2476
        %v2530 = vunpack.c.l.b16 %v2422
        %v2531 = vunpack.c.h.b16 %v2422
        %v2532 = vunpack.c.l.b16 %v2423
        %v2533 = vunpack.c.h.b16 %v2423
        %v2534 = vunpack.c.l.b16 %v2424
        %v2535 = vunpack.c.h.b16 %v2424
        %v2536 = vunpack.c.l.b16 %v2425
        %v2537 = vunpack.c.h.b16 %v2425
        %v2538 = vunpack.c.l.b16 %v2426
        %v2539 = vunpack.c.h.b16 %v2426
        %v2540 = vunpack.c.l.b16 %v2427
        %v2541 = vunpack.c.h.b16 %v2427
        %v2542 = vunpack.c.l.b16 %v2428
        %v2543 = vunpack.c.h.b16 %v2428
        %v2544 = vunpack.c.l.b16 %v2429
        %v2545 = vunpack.c.h.b16 %v2429
        %v2546 = vunpack.c.l.b16 %v2430
        %v2547 = vunpack.c.h.b16 %v2430
        %v2548 = vunpack.c.l.b16 %v2431
        %v2549 = vunpack.c.h.b16 %v2431
        %v2550 = vunpack.c.l.b16 %v2432
        %v2551 = vunpack.c.h.b16 %v2432
        %v2552 = vunpack.c.l.b16 %v2433
        %v2553 = vunpack.c.h.b16 %v2433
        %v2554 = vunpack.c.l.b16 %v2434
        %v2555 = vunpack.c.h.b16 %v2434
        %v2556 = vunpack.c.l.b16 %v2435
        %v2557 = vunpack.c.h.b16 %v2435
        %v2558 = vunpack.c.l.b16 %v2436
        %v2559 = vunpack.c.h.b16 %v2436
        %v2560 = vunpack.c.l.b16 %v2437
        %v2561 = vunpack.c.h.b16 %v2437
        %v2562 = vunpack.c.l.b16 %v2438
        %v2563 = vunpack.c.h.b16 %v2438
        %v2564 = vunpack.c.l.b16 %v2439
        %v2565 = vunpack.c.h.b16 %v2439
        %v2566 = vunpack.c.l.b16 %v2440
        %v2567 = vunpack.c.h.b16 %v2440
        %v2568 = vunpack.c.l.b16 %v2441
        %v2569 = vunpack.c.h.b16 %v2441
        %v2570 = vunpack.c.l.b16 %v2442
        %v2571 = vunpack.c.h.b16 %v2442
        %v2572 = vunpack.c.l.b16 %v2443
        %v2573 = vunpack.c.h.b16 %v2443
        %v2574 = vunpack.c.l.b16 %v2444
        %v2575 = vunpack.c.h.b16 %v2444
        %v2576 = vunpack.c.l.b16 %v2445
        %v2577 = vunpack.c.h.b16 %v2445
        %v2578 = vunpack.c.l.b16 %v2446
        %v2579 = vunpack.c.h.b16 %v2446
        %v2580 = vunpack.c.l.b16 %v2447
        %v2581 = vunpack.c.h.b16 %v2447
        %v2582 = vunpack.c.l.b16 %v2448
        %v2583 = vunpack.c.h.b16 %v2448
        %v2584 = vunpack.c.l.b16 %v2449
        %v2585 = vunpack.c.h.b16 %v2449
        %v2586 = vunpack.c.l.b16 %v2450
        %v2587 = vunpack.c.h.b16 %v2450
        %v2588 = vunpack.c.l.b16 %v2451
        %v2589 = vunpack.c.h.b16 %v2451
        %v2590 = vunpack.c.l.b16 %v2452
        %v2591 = vunpack.c.h.b16 %v2452
        %v2592 = vunpack.c.l.b16 %v2453
        %v2593 = vunpack.c.h.b16 %v2453
        %v2594 = vunpack.c.l.b16 %v2454
        %v2595 = vunpack.c.h.b16 %v2454
        %v2596 = vunpack.c.l.b16 %v2455
        %v2597 = vunpack.c.h.b16 %v2455
        %v2598 = vunpack.c.l.b16 %v2456
        %v2599 = vunpack.c.h.b16 %v2456
        %v2600 = vunpack.c.l.b16 %v2457
        %v2601 = vunpack.c.h.b16 %v2457
        %v2602 = vunpack.c.l.b16 %v2458
        %v2603 = vunpack.c.h.b16 %v2458
        %v2604 = vunpack.c.l.b16 %v2459
        %v2605 = vunpack.c.h.b16 %v2459
        %v2606 = vunpack.c.l.b16 %v2460
        %v2607 = vunpack.c.h.b16 %v2460
        %v2608 = vunpack.c.l.b16 %v2461
        %v2609 = vunpack.c.h.b16 %v2461
        %v2610 = vunpack.c.l.b16 %v2462
        %v2611 = vunpack.c.h.b16 %v2462
        %v2612 = vunpack.c.l.b16 %v2463
        %v2613 = vunpack.c.h.b16 %v2463
        %v2614 = vunpack.c.l.b16 %v2464
        %v2615 = vunpack.c.h.b16 %v2464
        %v2616 = vunpack.c.l.b16 %v2465
        %v2617 = vunpack.c.h.b16 %v2465
        %v2618 = vunpack.c.l.b16 %v2466
        %v2619 = vunpack.c.h.b16 %v2466
        %v2620 = vunpack.c.l.b16 %v2467
        %v2621 = vunpack.c.h.b16 %v2467
        %v2622 = vunpack.c.l.b16 %v2468
        %v2623 = vunpack.c.h.b16 %v2468
        %v2624 = vunpack.c.l.b16 %v2469
        %v2625 = vunpack.c.h.b16 %v2469
        %v2626 = vpack.c.b16 %v2536, %v2530
        %v2627 = vpack.c.b16 %v2537, %v2531
        %v2628 = vpack.c.b16 %v2538, %v2532
        %v2629 = vpack.c.b16 %v2539, %v2533
        %v2630 = vpack.c.b16 %v2540, %v2534
        %v2631 = vpack.c.b16 %v2541, %v2535
        %v2632 = vpack.c.b16 %v2548, %v2542
        %v2633 = vpack.c.b16 %v2549, %v2543
        %v2634 = vpack.c.b16 %v2550, %v2544
        %v2635 = vpack.c.b16 %v2551, %v2545
        %v2636 = vpack.c.b16 %v2552, %v2546
        %v2637 = vpack.c.b16 %v2553, %v2547
        %v2638 = vpack.c.b16 %v2560, %v2554
        %v2639 = vpack.c.b16 %v2561, %v2555
        %v2640 = vpack.c.b16 %v2562, %v2556
        %v2641 = vpack.c.b16 %v2563, %v2557
        %v2642 = vpack.c.b16 %v2564, %v2558
        %v2643 = vpack.c.b16 %v2565, %v2559
        %v2644 = vpack.c.b16 %v2572, %v2566
        %v2645 = vpack.c.b16 %v2573, %v2567
        %v2646 = vpack.c.b16 %v2574, %v2568
        %v2647 = vpack.c.b16 %v2575, %v2569
        %v2648 = vpack.c.b16 %v2576, %v2570
        %v2649 = vpack.c.b16 %v2577, %v2571
        %v2650 = vpack.c.b16 %v2584, %v2578
        %v2651 = vpack.c.b16 %v2585, %v2579
        %v2652 = vpack.c.b16 %v2586, %v2580
        %v2653 = vpack.c.b16 %v2587, %v2581
        %v2654 = vpack.c.b16 %v2588, %v2582
        %v2655 = vpack.c.b16 %v2589, %v2583
        %v2656 = vpack.c.b16 %v2596, %v2590
        %v2657 = vpack.c.b16 %v2597, %v2591
        %v2658 = vpack.c.b16 %v2598, %v2592
        %v2659 = vpack.c.b16 %v2599, %v2593
        %v2660 = vpack.c.b16 %v2600, %v2594
        %v2661 = vpack.c.b16 %v2601, %v2595
        %v2662 = vpack.c.b16 %v2608, %v2602
        %v2663 = vpack.c.b16 %v2609, %v2603
        %v2664 = vpack.c.b16 %v2610, %v2604
        %v2665 = vpack.c.b16 %v2611, %v2605
        %v2666 = vpack.c.b16 %v2612, %v2606
        %v2667 = vpack.c.b16 %v2613, %v2607
        %v2668 = vpack.c.b16 %v2620, %v2614
        %v2669 = vpack.c.b16 %v2621, %v2615
        %v2670 = vpack.c.b16 %v2622, %v2616
        %v2671 = vpack.c.b16 %v2623, %v2617
        %v2672 = vpack.c.b16 %v2624, %v2618
        %v2673 = vpack.c.b16 %v2625, %v2619
        %2722 = vmatprep.subr.bf16.mxu0 %v2669
        %2723 = vmatpush1.bf16.msra.mxu0 %v2668
        %2724 = vmatprep.subr.bf16.mxu0 %v2663
        %2725 = vmatpush1.bf16.msra.mxu0 %v2662
        %2726 = vmatprep.subr.bf16.mxu0 %v2657
        %2727 = vmatpush1.bf16.msra.mxu0 %v2656
        %2728 = vmatprep.subr.bf16.mxu0 %v2651
        %2729 = vmatpush1.bf16.msra.mxu0 %v2650
        %2730 = vmatprep.subr.bf16.mxu0 %v2645
        %2731 = vmatpush1.bf16.msra.mxu0 %v2644
        %2732 = vmatprep.subr.bf16.mxu0 %v2639
        %2733 = vmatpush1.bf16.msra.mxu0 %v2638
        %2734 = vmatprep.subr.bf16.mxu0 %v2633
        %2735 = vmatpush1.bf16.msra.mxu0 %v2632
        %2736 = vmatprep.subr.bf16.mxu0 %v2627
        %2737 = vmatpush1.bf16.msra.mxu0 %v2626
        %2738 = vmatprep.subr.bf16.mxu0 0
        %2739 = vmatpush2.bf16.msra.mxu0 0
        %2740 = vmatprep.subr.bf16.mxu0 0
        %2741 = vmatpush2.bf16.msra.mxu0 0
        %2742 = vmatprep.subr.bf16.mxu0 0
        %2743 = vmatpush2.bf16.msra.mxu0 0
        %2744 = vmatprep.subr.bf16.mxu0 0
        %2745 = vmatpush2.bf16.msra.mxu0 0
        %2746 = vmatprep.subr.bf16.mxu0 0
        %2747 = vmatpush2.bf16.msra.mxu0 0
        %2748 = vmatprep.subr.bf16.mxu0 0
        %2749 = vmatpush2.bf16.msra.mxu0 0
        %2750 = vmatprep.subr.bf16.mxu0 0
        %2751 = vmatpush2.bf16.msra.mxu0 0
        %2752 = vmatprep.subr.bf16.mxu0 0
        %2753 = vmatpush2.bf16.msra.mxu0 0
        %2754 = vmatprep.mubr.bf16.mxu0 0
        %2755 = vmatmul.mubr.bf16.gmra.mxu0 %v2478
        %v2756 = vpop.f32.mrf.mxu0
        %v2757 = vadd.f32 0.0, %v2756
        %v2758 = vpop.f32.mrf.mxu0
        %v2759 = vadd.f32 0.0, %v2758
        %v2760 = vpop.f32.mrf.mxu0
        %v2761 = vadd.f32 0.0, %v2760
        %v2762 = vpop.f32.mrf.mxu0
        %v2763 = vadd.f32 0.0, %v2762
        %2764 = vmatprep.mubr.bf16.mxu0 0
        %2765 = vmatmul.mubr.bf16.gmra.mxu0 %v2479
        %v2766 = vpop.f32.mrf.mxu0
        %v2767 = vadd.f32 0.0, %v2766
        %v2768 = vpop.f32.mrf.mxu0
        %v2769 = vadd.f32 0.0, %v2768
        %v2770 = vpop.f32.mrf.mxu0
        %v2771 = vadd.f32 0.0, %v2770
        %v2772 = vpop.f32.mrf.mxu0
        %v2773 = vadd.f32 0.0, %v2772
        %2774 = vdwg.mxu0
        %2775 = vmatprep.subr.bf16.mxu0 %v2671
        %2776 = vmatpush1.bf16.msra.mxu0 %v2670
        %2777 = vmatprep.subr.bf16.mxu0 %v2665
        %2778 = vmatpush1.bf16.msra.mxu0 %v2664
        %2779 = vmatprep.subr.bf16.mxu0 %v2659
        %2780 = vmatpush1.bf16.msra.mxu0 %v2658
        %2781 = vmatprep.subr.bf16.mxu0 %v2653
        %2782 = vmatpush1.bf16.msra.mxu0 %v2652
        %2783 = vmatprep.subr.bf16.mxu0 %v2647
        %2784 = vmatpush1.bf16.msra.mxu0 %v2646
        %2785 = vmatprep.subr.bf16.mxu0 %v2641
        %2786 = vmatpush1.bf16.msra.mxu0 %v2640
        %2787 = vmatprep.subr.bf16.mxu0 %v2635
        %2788 = vmatpush1.bf16.msra.mxu0 %v2634
        %2789 = vmatprep.subr.bf16.mxu0 %v2629
        %2790 = vmatpush1.bf16.msra.mxu0 %v2628
        %2791 = vmatprep.subr.bf16.mxu0 0
        %2792 = vmatpush2.bf16.msra.mxu0 0
        %2793 = vmatprep.subr.bf16.mxu0 0
        %2794 = vmatpush2.bf16.msra.mxu0 0
        %2795 = vmatprep.subr.bf16.mxu0 0
        %2796 = vmatpush2.bf16.msra.mxu0 0
        %2797 = vmatprep.subr.bf16.mxu0 0
        %2798 = vmatpush2.bf16.msra.mxu0 0
        %2799 = vmatprep.subr.bf16.mxu0 0
        %2800 = vmatpush2.bf16.msra.mxu0 0
        %2801 = vmatprep.subr.bf16.mxu0 0
        %2802 = vmatpush2.bf16.msra.mxu0 0
        %2803 = vmatprep.subr.bf16.mxu0 0
        %2804 = vmatpush2.bf16.msra.mxu0 0
        %2805 = vmatprep.subr.bf16.mxu0 0
        %2806 = vmatpush2.bf16.msra.mxu0 0
        %2807 = vmatprep.mubr.bf16.mxu0 0
        %2808 = vmatmul.mubr.bf16.gmra.mxu0 %v2478
        %v2809 = vpop.f32.mrf.mxu0
        %v2810 = vadd.f32 0.0, %v2809
        %v2811 = vpop.f32.mrf.mxu0
        %v2812 = vadd.f32 0.0, %v2811
        %v2813 = vpop.f32.mrf.mxu0
        %v2814 = vadd.f32 0.0, %v2813
        %v2815 = vpop.f32.mrf.mxu0
        %v2816 = vadd.f32 0.0, %v2815
        %2817 = vmatprep.mubr.bf16.mxu0 0
        %2818 = vmatmul.mubr.bf16.gmra.mxu0 %v2479
        %v2819 = vpop.f32.mrf.mxu0
        %v2820 = vadd.f32 0.0, %v2819
        %v2821 = vpop.f32.mrf.mxu0
        %v2822 = vadd.f32 0.0, %v2821
        %v2823 = vpop.f32.mrf.mxu0
        %v2824 = vadd.f32 0.0, %v2823
        %v2825 = vpop.f32.mrf.mxu0
        %v2826 = vadd.f32 0.0, %v2825
        %2827 = vdwg.mxu0
        %2828 = vmatprep.subr.bf16.mxu0 %v2673
        %2829 = vmatpush1.bf16.msra.mxu0 %v2672
        %2830 = vmatprep.subr.bf16.mxu0 %v2667
        %2831 = vmatpush1.bf16.msra.mxu0 %v2666
        %2832 = vmatprep.subr.bf16.mxu0 %v2661
        %2833 = vmatpush1.bf16.msra.mxu0 %v2660
        %2834 = vmatprep.subr.bf16.mxu0 %v2655
        %2835 = vmatpush1.bf16.msra.mxu0 %v2654
        %2836 = vmatprep.subr.bf16.mxu0 %v2649
        %2837 = vmatpush1.bf16.msra.mxu0 %v2648
        %2838 = vmatprep.subr.bf16.mxu0 %v2643
        %2839 = vmatpush1.bf16.msra.mxu0 %v2642
        %2840 = vmatprep.subr.bf16.mxu0 %v2637
        %2841 = vmatpush1.bf16.msra.mxu0 %v2636
        %2842 = vmatprep.subr.bf16.mxu0 %v2631
        %2843 = vmatpush1.bf16.msra.mxu0 %v2630
        %2844 = vmatprep.subr.bf16.mxu0 0
        %2845 = vmatpush2.bf16.msra.mxu0 0
        %2846 = vmatprep.subr.bf16.mxu0 0
        %2847 = vmatpush2.bf16.msra.mxu0 0
        %2848 = vmatprep.subr.bf16.mxu0 0
        %2849 = vmatpush2.bf16.msra.mxu0 0
        %2850 = vmatprep.subr.bf16.mxu0 0
        %2851 = vmatpush2.bf16.msra.mxu0 0
        %2852 = vmatprep.subr.bf16.mxu0 0
        %2853 = vmatpush2.bf16.msra.mxu0 0
        %2854 = vmatprep.subr.bf16.mxu0 0
        %2855 = vmatpush2.bf16.msra.mxu0 0
        %2856 = vmatprep.subr.bf16.mxu0 0
        %2857 = vmatpush2.bf16.msra.mxu0 0
        %2858 = vmatprep.subr.bf16.mxu0 0
        %2859 = vmatpush2.bf16.msra.mxu0 0
        %2860 = vmatprep.mubr.bf16.mxu0 0
        %2861 = vmatmul.mubr.bf16.gmra.mxu0 %v2478
        %v2862 = vpop.f32.mrf.mxu0
        %v2863 = vadd.f32 0.0, %v2862
        %v2864 = vpop.f32.mrf.mxu0
        %v2865 = vadd.f32 0.0, %v2864
        %v2866 = vpop.f32.mrf.mxu0
        %v2867 = vadd.f32 0.0, %v2866
        %v2868 = vpop.f32.mrf.mxu0
        %v2869 = vadd.f32 0.0, %v2868
        %2870 = vmatprep.mubr.bf16.mxu0 0
        %2871 = vmatmul.mubr.bf16.gmra.mxu0 %v2479
        %v2872 = vpop.f32.mrf.mxu0
        %v2873 = vadd.f32 0.0, %v2872
        %v2874 = vpop.f32.mrf.mxu0
        %v2875 = vadd.f32 0.0, %v2874
        %v2876 = vpop.f32.mrf.mxu0
        %v2877 = vadd.f32 0.0, %v2876
        %v2878 = vpop.f32.mrf.mxu0
        %v2879 = vadd.f32 0.0, %v2878
        %2880 = vdwg.mxu0
        %v2881 = vld [vmem:[#allocation4] sm:$0xff]
        %v2882 = vld [vmem:[#allocation4 + $0x8] sm:$0xff]
        %v2883 = vld [vmem:[#allocation4 + $0x10] sm:$0xff]
        %v2884 = vld [vmem:[#allocation4 + $0x18] sm:$0xff]
        %v2885 = vld [vmem:[#allocation4 + $0x20] sm:$0xff]
        %v2886 = vld [vmem:[#allocation4 + $0x28] sm:$0xff]
        %v2887 = vld [vmem:[#allocation4 + $0x30] sm:$0xff]
        %v2888 = vld [vmem:[#allocation4 + $0x38] sm:$0xff]
        %v2889 = vld [vmem:[#allocation4 + $0x40] sm:$0xff]
        %v2890 = vld [vmem:[#allocation4 + $0x48] sm:$0xff]
        %v2891 = vld [vmem:[#allocation4 + $0x50] sm:$0xff]
        %v2892 = vld [vmem:[#allocation4 + $0x58] sm:$0xff]
        %v2893 = vld [vmem:[#allocation4 + $0x60] sm:$0xff]
        %v2894 = vld [vmem:[#allocation4 + $0x68] sm:$0xff]
        %v2895 = vld [vmem:[#allocation4 + $0x70] sm:$0xff]
        %v2896 = vld [vmem:[#allocation4 + $0x78] sm:$0xff]
        %v2897 = vld [vmem:[#allocation4 + $0x80] sm:$0xff]
        %v2898 = vld [vmem:[#allocation4 + $0x88] sm:$0xff]
        %v2899 = vld [vmem:[#allocation4 + $0x90] sm:$0xff]
        %v2900 = vld [vmem:[#allocation4 + $0x98] sm:$0xff]
        %v2901 = vld [vmem:[#allocation4 + $0xa0] sm:$0xff]
        %v2902 = vld [vmem:[#allocation4 + $0xa8] sm:$0xff]
        %v2903 = vld [vmem:[#allocation4 + $0xb0] sm:$0xff]
        %v2904 = vld [vmem:[#allocation4 + $0xb8] sm:$0xff]
        %v2905 = vadd.f32 %v2881, %v2757
        %v2906 = vadd.f32 %v2882, %v2759
        %v2907 = vadd.f32 %v2883, %v2810
        %v2908 = vadd.f32 %v2884, %v2812
        %v2909 = vadd.f32 %v2885, %v2863
        %v2910 = vadd.f32 %v2886, %v2865
        %v2911 = vadd.f32 %v2887, %v2761
        %v2912 = vadd.f32 %v2888, %v2763
        %v2913 = vadd.f32 %v2889, %v2814
        %v2914 = vadd.f32 %v2890, %v2816
        %v2915 = vadd.f32 %v2891, %v2867
        %v2916 = vadd.f32 %v2892, %v2869
        %v2917 = vadd.f32 %v2893, %v2767
        %v2918 = vadd.f32 %v2894, %v2769
        %v2919 = vadd.f32 %v2895, %v2820
        %v2920 = vadd.f32 %v2896, %v2822
        %v2921 = vadd.f32 %v2897, %v2873
        %v2922 = vadd.f32 %v2898, %v2875
        %v2923 = vadd.f32 %v2899, %v2771
        %v2924 = vadd.f32 %v2900, %v2773
        %v2925 = vadd.f32 %v2901, %v2824
        %v2926 = vadd.f32 %v2902, %v2826
        %v2927 = vadd.f32 %v2903, %v2877
        %v2928 = vadd.f32 %v2904, %v2879
        %2929 = vst [vmem:[#allocation4] sm:$0xff] %v2905
        %2930 = vst [vmem:[#allocation4 + $0x8] sm:$0xff] %v2906
        %2931 = vst [vmem:[#allocation4 + $0x10] sm:$0xff] %v2907
        %2932 = vst [vmem:[#allocation4 + $0x18] sm:$0xff] %v2908
        %2933 = vst [vmem:[#allocation4 + $0x20] sm:$0xff] %v2909
        %2934 = vst [vmem:[#allocation4 + $0x28] sm:$0xff] %v2910
        %2935 = vst [vmem:[#allocation4 + $0x30] sm:$0xff] %v2911
        %2936 = vst [vmem:[#allocation4 + $0x38] sm:$0xff] %v2912
        %2937 = vst [vmem:[#allocation4 + $0x40] sm:$0xff] %v2913
        %2938 = vst [vmem:[#allocation4 + $0x48] sm:$0xff] %v2914
        %2939 = vst [vmem:[#allocation4 + $0x50] sm:$0xff] %v2915
        %2940 = vst [vmem:[#allocation4 + $0x58] sm:$0xff] %v2916
        %2941 = vst [vmem:[#allocation4 + $0x60] sm:$0xff] %v2917
        %2942 = vst [vmem:[#allocation4 + $0x68] sm:$0xff] %v2918
        %2943 = vst [vmem:[#allocation4 + $0x70] sm:$0xff] %v2919
        %2944 = vst [vmem:[#allocation4 + $0x78] sm:$0xff] %v2920
        %2945 = vst [vmem:[#allocation4 + $0x80] sm:$0xff] %v2921
        %2946 = vst [vmem:[#allocation4 + $0x88] sm:$0xff] %v2922
        %2947 = vst [vmem:[#allocation4 + $0x90] sm:$0xff] %v2923
        %2948 = vst [vmem:[#allocation4 + $0x98] sm:$0xff] %v2924
        %2949 = vst [vmem:[#allocation4 + $0xa0] sm:$0xff] %v2925
        %2950 = vst [vmem:[#allocation4 + $0xa8] sm:$0xff] %v2926
        %2951 = vst [vmem:[#allocation4 + $0xb0] sm:$0xff] %v2927
        %2952 = vst [vmem:[#allocation4 + $0xb8] sm:$0xff] %v2928
        %v2953 = vld [vmem:[%s289] sm:$0xff]
        %v2954 = vld [vmem:[%s289 + $0x8] sm:$0xff]
        %v2955 = vld [vmem:[%s289 + $0x10] sm:$0xff]
        %v2956 = vld [vmem:[%s289 + $0x18] sm:$0xff]
        %v2957 = vld [vmem:[%s251] sm:$0xff]
        %v2958 = vld [vmem:[%s251 + $0x8] sm:$0xff]
        %v2959 = vld [vmem:[%s251 + $0x10] sm:$0xff]
        %v2960 = vld [vmem:[%s251 + $0x18] sm:$0xff]
        %v2961 = vld [vmem:[%s251 + $0x20] sm:$0xff]
        %v2962 = vld [vmem:[%s251 + $0x28] sm:$0xff]
        %v2963 = vld [vmem:[%s251 + $0x30] sm:$0xff]
        %v2964 = vld [vmem:[%s251 + $0x38] sm:$0xff]
        %v2965 = vld [vmem:[%s251 + $0x40] sm:$0xff]
        %v2966 = vld [vmem:[%s251 + $0x48] sm:$0xff]
        %v2967 = vld [vmem:[%s251 + $0x50] sm:$0xff]
        %v2968 = vld [vmem:[%s251 + $0x58] sm:$0xff]
        %v2969 = vld [vmem:[%s251 + $0x60] sm:$0xff]
        %v2970 = vld [vmem:[%s251 + $0x68] sm:$0xff]
        %v2971 = vld [vmem:[%s251 + $0x70] sm:$0xff]
        %v2972 = vld [vmem:[%s251 + $0x78] sm:$0xff]
        %v2973 = vld [vmem:[%s251 + $0x80] sm:$0xff]
        %v2974 = vld [vmem:[%s251 + $0x88] sm:$0xff]
        %v2975 = vld [vmem:[%s251 + $0x90] sm:$0xff]
        %v2976 = vld [vmem:[%s251 + $0x98] sm:$0xff]
        %v2977 = vld [vmem:[%s251 + $0xa0] sm:$0xff]
        %v2978 = vld [vmem:[%s251 + $0xa8] sm:$0xff]
        %v2979 = vld [vmem:[%s251 + $0xb0] sm:$0xff]
        %v2980 = vld [vmem:[%s251 + $0xb8] sm:$0xff]
        %v2981 = vld [vmem:[#allocation4] sm:$0xff]
        %v2982 = vld [vmem:[#allocation4 + $0x8] sm:$0xff]
        %v2983 = vld [vmem:[#allocation4 + $0x10] sm:$0xff]
        %v2984 = vld [vmem:[#allocation4 + $0x18] sm:$0xff]
        %v2985 = vld [vmem:[#allocation4 + $0x20] sm:$0xff]
        %v2986 = vld [vmem:[#allocation4 + $0x28] sm:$0xff]
        %v2987 = vld [vmem:[#allocation4 + $0x30] sm:$0xff]
        %v2988 = vld [vmem:[#allocation4 + $0x38] sm:$0xff]
        %v2989 = vld [vmem:[#allocation4 + $0x40] sm:$0xff]
        %v2990 = vld [vmem:[#allocation4 + $0x48] sm:$0xff]
        %v2991 = vld [vmem:[#allocation4 + $0x50] sm:$0xff]
        %v2992 = vld [vmem:[#allocation4 + $0x58] sm:$0xff]
        %v2993 = vld [vmem:[#allocation4 + $0x60] sm:$0xff]
        %v2994 = vld [vmem:[#allocation4 + $0x68] sm:$0xff]
        %v2995 = vld [vmem:[#allocation4 + $0x70] sm:$0xff]
        %v2996 = vld [vmem:[#allocation4 + $0x78] sm:$0xff]
        %v2997 = vld [vmem:[#allocation4 + $0x80] sm:$0xff]
        %v2998 = vld [vmem:[#allocation4 + $0x88] sm:$0xff]
        %v2999 = vld [vmem:[#allocation4 + $0x90] sm:$0xff]
        %v3000 = vld [vmem:[#allocation4 + $0x98] sm:$0xff]
        %v3001 = vld [vmem:[#allocation4 + $0xa0] sm:$0xff]
        %v3002 = vld [vmem:[#allocation4 + $0xa8] sm:$0xff]
        %v3003 = vld [vmem:[#allocation4 + $0xb0] sm:$0xff]
        %v3004 = vld [vmem:[#allocation4 + $0xb8] sm:$0xff]
        %3005 = vset.pattern.permute.xlu0 2
        %3006 = vperm.xlu0 %3005, %v711
        %v3007 = vpop.permute.xlu0 %3006
        %3009 = vset.pattern.permute.xlu0 2
        %3010 = vperm.xlu0 %3009, %v712
        %v3011 = vpop.permute.xlu0 %3010
        %3013 = vset.pattern.permute.xlu0 2
        %3014 = vperm.xlu0 %3013, %v713
        %v3015 = vpop.permute.xlu0 %3014
        %3017 = vset.pattern.permute.xlu0 2
        %3018 = vperm.xlu0 %3017, %v714
        %v3019 = vpop.permute.xlu0 %3018
        %v3021 = vadd.f32 %v2981, %v3007
        %v3022 = vadd.f32 %v2982, %v3007
        %v3023 = vadd.f32 %v2983, %v3007
        %v3024 = vadd.f32 %v2984, %v3007
        %v3025 = vadd.f32 %v2985, %v3007
        %v3026 = vadd.f32 %v2986, %v3007
        %v3027 = vadd.f32 %v2987, %v3011
        %v3028 = vadd.f32 %v2988, %v3011
        %v3029 = vadd.f32 %v2989, %v3011
        %v3030 = vadd.f32 %v2990, %v3011
        %v3031 = vadd.f32 %v2991, %v3011
        %v3032 = vadd.f32 %v2992, %v3011
        %v3033 = vadd.f32 %v2993, %v3015
        %v3034 = vadd.f32 %v2994, %v3015
        %v3035 = vadd.f32 %v2995, %v3015
        %v3036 = vadd.f32 %v2996, %v3015
        %v3037 = vadd.f32 %v2997, %v3015
        %v3038 = vadd.f32 %v2998, %v3015
        %v3039 = vadd.f32 %v2999, %v3019
        %v3040 = vadd.f32 %v3000, %v3019
        %v3041 = vadd.f32 %v3001, %v3019
        %v3042 = vadd.f32 %v3002, %v3019
        %v3043 = vadd.f32 %v3003, %v3019
        %v3044 = vadd.f32 %v3004, %v3019
        %3046 = vset.pattern.permute.xlu0 0
        %3047 = vperm.xlu0 %3046, %v2953
        %v3048 = vpop.permute.xlu0 %3047
        %3051 = vset.pattern.permute.xlu0 0
        %3052 = vperm.xlu0 %3051, %v2954
        %v3053 = vpop.permute.xlu0 %3052
        %3056 = vset.pattern.permute.xlu0 0
        %3057 = vperm.xlu0 %3056, %v2955
        %v3058 = vpop.permute.xlu0 %3057
        %3061 = vset.pattern.permute.xlu0 0
        %3062 = vperm.xlu0 %3061, %v2956
        %v3063 = vpop.permute.xlu0 %3062
        %v3065 = vmul.f32 %v3048, %v3021
        %v3066 = vmul.f32 %v3048, %v3022
        %v3067 = vmul.f32 %v3048, %v3023
        %v3068 = vmul.f32 %v3048, %v3024
        %v3069 = vmul.f32 %v3048, %v3025
        %v3070 = vmul.f32 %v3048, %v3026
        %v3071 = vmul.f32 %v3053, %v3027
        %v3072 = vmul.f32 %v3053, %v3028
        %v3073 = vmul.f32 %v3053, %v3029
        %v3074 = vmul.f32 %v3053, %v3030
        %v3075 = vmul.f32 %v3053, %v3031
        %v3076 = vmul.f32 %v3053, %v3032
        %v3077 = vmul.f32 %v3058, %v3033
        %v3078 = vmul.f32 %v3058, %v3034
        %v3079 = vmul.f32 %v3058, %v3035
        %v3080 = vmul.f32 %v3058, %v3036
        %v3081 = vmul.f32 %v3058, %v3037
        %v3082 = vmul.f32 %v3058, %v3038
        %v3083 = vmul.f32 %v3063, %v3039
        %v3084 = vmul.f32 %v3063, %v3040
        %v3085 = vmul.f32 %v3063, %v3041
        %v3086 = vmul.f32 %v3063, %v3042
        %v3087 = vmul.f32 %v3063, %v3043
        %v3088 = vmul.f32 %v3063, %v3044
        %v3089 = vadd.f32 %v2957, %v3065
        %v3090 = vadd.f32 %v2958, %v3066
        %v3091 = vadd.f32 %v2959, %v3067
        %v3092 = vadd.f32 %v2960, %v3068
        %v3093 = vadd.f32 %v2961, %v3069
        %v3094 = vadd.f32 %v2962, %v3070
        %v3095 = vadd.f32 %v2963, %v3071
        %v3096 = vadd.f32 %v2964, %v3072
        %v3097 = vadd.f32 %v2965, %v3073
        %v3098 = vadd.f32 %v2966, %v3074
        %v3099 = vadd.f32 %v2967, %v3075
        %v3100 = vadd.f32 %v2968, %v3076
        %v3101 = vadd.f32 %v2969, %v3077
        %v3102 = vadd.f32 %v2970, %v3078
        %v3103 = vadd.f32 %v2971, %v3079
        %v3104 = vadd.f32 %v2972, %v3080
        %v3105 = vadd.f32 %v2973, %v3081
        %v3106 = vadd.f32 %v2974, %v3082
        %v3107 = vadd.f32 %v2975, %v3083
        %v3108 = vadd.f32 %v2976, %v3084
        %v3109 = vadd.f32 %v2977, %v3085
        %v3110 = vadd.f32 %v2978, %v3086
        %v3111 = vadd.f32 %v2979, %v3087
        %v3112 = vadd.f32 %v2980, %v3088
        %3113 = vset.pattern.permute.xlu0 1
        %3114 = vperm.xlu0 %3113, %v2953
        %v3115 = vpop.permute.xlu0 %3114
        %3117 = vset.pattern.permute.xlu0 1
        %3118 = vperm.xlu0 %3117, %v2954
        %v3119 = vpop.permute.xlu0 %3118
        %3121 = vset.pattern.permute.xlu0 1
        %3122 = vperm.xlu0 %3121, %v2955
        %v3123 = vpop.permute.xlu0 %3122
        %3125 = vset.pattern.permute.xlu0 1
        %3126 = vperm.xlu0 %3125, %v2956
        %v3127 = vpop.permute.xlu0 %3126
        %v3129 = vadd.f32 %v3089, %v3115
        %v3130 = vadd.f32 %v3090, %v3115
        %v3131 = vadd.f32 %v3091, %v3115
        %v3132 = vadd.f32 %v3092, %v3115
        %v3133 = vadd.f32 %v3093, %v3115
        %v3134 = vadd.f32 %v3094, %v3115
        %v3135 = vadd.f32 %v3095, %v3119
        %v3136 = vadd.f32 %v3096, %v3119
        %v3137 = vadd.f32 %v3097, %v3119
        %v3138 = vadd.f32 %v3098, %v3119
        %v3139 = vadd.f32 %v3099, %v3119
        %v3140 = vadd.f32 %v3100, %v3119
        %v3141 = vadd.f32 %v3101, %v3123
        %v3142 = vadd.f32 %v3102, %v3123
        %v3143 = vadd.f32 %v3103, %v3123
        %v3144 = vadd.f32 %v3104, %v3123
        %v3145 = vadd.f32 %v3105, %v3123
        %v3146 = vadd.f32 %v3106, %v3123
        %v3147 = vadd.f32 %v3107, %v3127
        %v3148 = vadd.f32 %v3108, %v3127
        %v3149 = vadd.f32 %v3109, %v3127
        %v3150 = vadd.f32 %v3110, %v3127
        %v3151 = vadd.f32 %v3111, %v3127
        %v3152 = vadd.f32 %v3112, %v3127
        %vm3153 = vcmp.gt.f32.partialorder %v291, 0.0
        %v3154 = vsel %vm3153, 1, 0
        %v3155 = vlaneseq
        %v3156 = vshrl.u32 %v3155, 7
        %v3157 = vsub.s32 0, %v3156
        %v3158 = vrot.slane %v3154, %v3157
        %v3159 = vlaneseq
        %v3160 = vshrl.u32 %v3159, 7
        %v3161 = vsub.s32 1, %v3160
        %v3162 = vrot.slane %v3154, %v3161
        %v3163 = vlaneseq
        %v3164 = vshrl.u32 %v3163, 7
        %v3165 = vsub.s32 2, %v3164
        %v3166 = vrot.slane %v3154, %v3165
        %v3167 = vlaneseq
        %v3168 = vshrl.u32 %v3167, 7
        %v3169 = vsub.s32 3, %v3168
        %v3170 = vrot.slane %v3154, %v3169
        %v3171 = vlaneseq
        %v3172 = vshrl.u32 %v3171, 7
        %v3173 = vsub.s32 4, %v3172
        %v3174 = vrot.slane %v3154, %v3173
        %v3175 = vlaneseq
        %v3176 = vshrl.u32 %v3175, 7
        %v3177 = vsub.s32 5, %v3176
        %v3178 = vrot.slane %v3154, %v3177
        %vm3179 = vcmp.eq.s32.totalorder %v3158, 1
        %vm3180 = vcmp.eq.s32.totalorder %v3162, 1
        %vm3181 = vcmp.eq.s32.totalorder %v3166, 1
        %vm3182 = vcmp.eq.s32.totalorder %v3170, 1
        %vm3183 = vcmp.eq.s32.totalorder %v3174, 1
        %vm3184 = vcmp.eq.s32.totalorder %v3178, 1
        %v3185 = vsel %vm3179, %v3129, 0.0
        %v3186 = vsel %vm3180, %v3130, 0.0
        %v3187 = vsel %vm3181, %v3131, 0.0
        %v3188 = vsel %vm3182, %v3132, 0.0
        %v3189 = vsel %vm3183, %v3133, 0.0
        %v3190 = vsel %vm3184, %v3134, 0.0
        %v3191 = vsel %vm3179, %v3135, 0.0
        %v3192 = vsel %vm3180, %v3136, 0.0
        %v3193 = vsel %vm3181, %v3137, 0.0
        %v3194 = vsel %vm3182, %v3138, 0.0
        %v3195 = vsel %vm3183, %v3139, 0.0
        %v3196 = vsel %vm3184, %v3140, 0.0
        %v3197 = vsel %vm3179, %v3141, 0.0
        %v3198 = vsel %vm3180, %v3142, 0.0
        %v3199 = vsel %vm3181, %v3143, 0.0
        %v3200 = vsel %vm3182, %v3144, 0.0
        %v3201 = vsel %vm3183, %v3145, 0.0
        %v3202 = vsel %vm3184, %v3146, 0.0
        %v3203 = vsel %vm3179, %v3147, 0.0
        %v3204 = vsel %vm3180, %v3148, 0.0
        %v3205 = vsel %vm3181, %v3149, 0.0
        %v3206 = vsel %vm3182, %v3150, 0.0
        %v3207 = vsel %vm3183, %v3151, 0.0
        %v3208 = vsel %vm3184, %v3152, 0.0
        %3209 = vst [vmem:[%s284] sm:$0xff] %v3185
        %3210 = vst [vmem:[%s284 + $0x8] sm:$0xff] %v3186
        %3211 = vst [vmem:[%s284 + $0x10] sm:$0xff] %v3187
        %3212 = vst [vmem:[%s284 + $0x18] sm:$0xff] %v3188
        %3213 = vst [vmem:[%s284 + $0x20] sm:$0xff] %v3189
        %3214 = vst [vmem:[%s284 + $0x28] sm:$0xff] %v3190
        %3215 = vst [vmem:[%s284 + $0x30] sm:$0xff] %v3191
        %3216 = vst [vmem:[%s284 + $0x38] sm:$0xff] %v3192
        %3217 = vst [vmem:[%s284 + $0x40] sm:$0xff] %v3193
        %3218 = vst [vmem:[%s284 + $0x48] sm:$0xff] %v3194
        %3219 = vst [vmem:[%s284 + $0x50] sm:$0xff] %v3195
        %3220 = vst [vmem:[%s284 + $0x58] sm:$0xff] %v3196
        %3221 = vst [vmem:[%s284 + $0x60] sm:$0xff] %v3197
        %3222 = vst [vmem:[%s284 + $0x68] sm:$0xff] %v3198
        %3223 = vst [vmem:[%s284 + $0x70] sm:$0xff] %v3199
        %3224 = vst [vmem:[%s284 + $0x78] sm:$0xff] %v3200
        %3225 = vst [vmem:[%s284 + $0x80] sm:$0xff] %v3201
        %3226 = vst [vmem:[%s284 + $0x88] sm:$0xff] %v3202
        %3227 = vst [vmem:[%s284 + $0x90] sm:$0xff] %v3203
        %3228 = vst [vmem:[%s284 + $0x98] sm:$0xff] %v3204
        %3229 = vst [vmem:[%s284 + $0xa0] sm:$0xff] %v3205
        %3230 = vst [vmem:[%s284 + $0xa8] sm:$0xff] %v3206
        %3231 = vst [vmem:[%s284 + $0xb0] sm:$0xff] %v3207
        %3232 = vst [vmem:[%s284 + $0xb8] sm:$0xff] %v3208
        %s3233 = sand.u32 %s167, 1
        %s3234 = scalar_lea.sflag [#allocation7], %s3233
        %s3235 = sand.u32 %s167, 1
        %s3236 = smul.addr %s3235, 192
        %s3237 = scalar_lea.vmem [#allocation8], %s3236
        // Predicated region
        $region49: #{tpu_custom_call.1} parent=43 // pred_check
          %p3238 = pneg %p177
        $region50: #{tpu_custom_call.1} parent=43 // pred_check_branch
          %3240 = sbr.rel (%p3238) target = $region52
        $region51: #{tpu_custom_call.1} parent=43 // pred_region
          %s3242 = ssub.s32 3072, 3072
          %3243 = vsyncadd %s3234, %s3242
          %s3244 = smul.addr %s23, 24
          %s3245 = smul.addr %s3244, 128
          %s3246 = scalar_lea.hbm %s6, %s3245
          %s3247 = sshll.u32 %s3237, 4
          %s3248 = int_to_ptr.vmem [resolvable:$true] %s3247
          %3253 = dma.vmem_to_hbm [thread:$0]  %s3248, 3072, %s3246, %s3234, 768, 768, 48
        $region52: #{tpu_custom_call.1} parent=43 // pred_fallthru
          _
      $region44: #{tpu_custom_call.1} parent=5 // pred_fallthru
        _
      %p3254 = scmp.le.s32.totalorder 2, %s18
      // Predicated region
      $region53: #{tpu_custom_call.1} parent=5 // pred_check
        %p3255 = pneg %p3254
      $region54: #{tpu_custom_call.1} parent=5 // pred_check_branch
        %3257 = sbr.rel (%p3255) target = $region56
      $region55: #{tpu_custom_call.1} parent=5 // pred_region
        %s3258 = ssub.s32 %s18, 2
        // Predicated region
        $region57: #{tpu_custom_call.1} parent=55 // pred_check
          %p3259 = pneg %p183
        $region58: #{tpu_custom_call.1} parent=55 // pred_check_branch
          %3261 = sbr.rel (%p3259) target = $region60
        $region59: #{tpu_custom_call.1} parent=55 // pred_region
          %s3262 = sand.u32 %s168, 1
          %s3263 = scalar_lea.sflag [#allocation7], %s3262
          %s3264 = sand.u32 %s168, 1
          %s3265 = smul.addr %s3264, 192
          %s3266 = scalar_lea.vmem [#allocation8], %s3265
          %3267 = dma.done %s3263, 3072
        $region60: #{tpu_custom_call.1} parent=55 // pred_fallthru
          _
      $region56: #{tpu_custom_call.1} parent=5 // pred_fallthru
        _
    $region6: #{tpu_custom_call.1} parent=1 // loop_footer
      %s22 = sadd.s32 1, %s18
    $region7: #{tpu_custom_call.1} parent=1 // loop_footer_branch
      %17 = sbr.rel target = $region3
    $region8: #{tpu_custom_call.1} parent=1 // loop_exit
      _
    %3268 = vsyncpa [#allocation6], 1
    %s3269 = scalar_lea.sflag [#allocation6], 1
    %3270 = vsyncpa %s3269, 1
    %3271 = vsyncpa [#allocation7], 1
    %s3272 = scalar_lea.sflag [#allocation7], 1
    %3273 = vsyncpa %s3272, 1

</llo_original>
